<compile_context>
chip_gen: v6e
topology: v6e:2x2x1
jax: 0.10.0
libtpu: 0.0.40
codegen_flags: <defaults>
</compile_context>

<pallas_src>
import jax
import jax.numpy as jnp
from jax.experimental import pallas as pl
from jax.experimental.pallas import tpu as pltpu

N_FEATURES = 256   # constructor param (default 10000); small value for the demo
H1 = 2048
H2 = 512
OUT = 1
OUT_PAD = 128      # lane-dense final layer: pad fc3 output columns to 128


def _round_up(x, m):
    return ((x + m - 1) // m) * m


def _tpu_config():
    """Generation-aware (tb_target, tk_target, vmem_limit_bytes).

    v7x: 64 MiB VMEM per TC, ~3.2 TB/s HBM -> roofline crossover ~310 rows;
         tb=512 / tk=1024 fits well under a 56 MiB scoped limit.
    v5e/v6e: 128 MiB VMEM; tb=768 / tk=1024 moves fc1 toward compute-bound on
         v6e and is still cheap on v5e.
    """
    try:
        cap = int(pltpu.get_tpu_info().vmem_capacity_bytes)
    except Exception:
        cap = 128 << 20
    if cap <= (64 << 20):          # v7x-class part
        return 512, 1024, 56 << 20
    return 768, 1024, 96 << 20     # v5e / v6e


def mlp_kernel(x_ref, w1_ref, b1_ref, w2_ref, b2_ref, w3_ref, b3_ref,
               o_ref, h1_acc):
    k = pl.program_id(1)

    # Fold the fc1 bias into accumulator init (removes a (tb, 2048) f32 add
    # and a broadcast from the already-busy last-K epilogue).
    @pl.when(k == 0)
    def _init():
        h1_acc[...] = jnp.broadcast_to(b1_ref[...], h1_acc.shape)

    # fc1 partial product for this K chunk (bf16 x bf16 -> f32 accumulate).
    h1_acc[...] += jnp.dot(x_ref[...], w1_ref[...],
                           preferred_element_type=jnp.float32)

    @pl.when(k == pl.num_programs(1) - 1)
    def _finish():
        h1 = jnp.maximum(h1_acc[...], 0.0).astype(jnp.bfloat16)
        h2 = jnp.dot(h1, w2_ref[...], preferred_element_type=jnp.float32) + b2_ref[...]
        h2 = jnp.maximum(h2, 0.0).astype(jnp.bfloat16)
        # Lane-dense store: (tb, 128) f32, unmasked vst; col 0 sliced in wrapper.
        o_ref[...] = jnp.dot(h2, w3_ref[...],
                             preferred_element_type=jnp.float32) + b3_ref[...]


def mlp_forward(x, w1, b1, w2, b2, w3, b3, *, tb_target=None, tk_target=None):
    """x: (B, K) float. Weights (in, out). Returns (B, 1) f32."""
    B, K = x.shape
    assert w1.shape == (K, H1)
    assert w2.shape == (H1, H2) and w3.shape == (H2, OUT)

    cfg_tb, cfg_tk, vmem_limit = _tpu_config()
    tb_target = cfg_tb if tb_target is None else tb_target
    tk_target = cfg_tk if tk_target is None else tk_target

    # Batch tiling: pad to a multiple of 16 (bf16 sublane packing), tile by tb.
    Bp = max(16, _round_up(B, 16))
    tb = min(tb_target, Bp)
    Bp = _round_up(Bp, tb)

    # K (n_features) tiling: chunks are multiples of 128 for the MXU.
    tk = min(tk_target, _round_up(K, 128))
    Kp = _round_up(K, tk)

    xb = jnp.pad(x.astype(jnp.bfloat16), ((0, Bp - B), (0, Kp - K)))
    w1b = jnp.pad(w1.astype(jnp.bfloat16), ((0, Kp - K), (0, 0)))
    w2b = w2.astype(jnp.bfloat16)
    w3b = jnp.pad(w3.astype(jnp.bfloat16), ((0, 0), (0, OUT_PAD - OUT)))
    b1f = b1.astype(jnp.float32).reshape(1, H1)
    b2f = b2.astype(jnp.float32).reshape(1, H2)
    b3f = jnp.pad(b3.astype(jnp.float32).reshape(1, OUT),
                  ((0, 0), (0, OUT_PAD - OUT)))

    grid = (Bp // tb, Kp // tk)
    single = pl.Buffered(1)   # invariant operands: drop the second VMEM buffer

    out = pl.pallas_call(
        mlp_kernel,
        out_shape=jax.ShapeDtypeStruct((Bp, OUT_PAD), jnp.float32),
        grid_spec=pltpu.PrefetchScalarGridSpec(
            num_scalar_prefetch=0,
            grid=grid,
            in_specs=[
                pl.BlockSpec((tb, tk), lambda i, k: (i, k)),       # x (streams)
                pl.BlockSpec((tk, H1), lambda i, k: (k, 0)),       # w1 (streams over K)
                pl.BlockSpec((1, H1), lambda i, k: (0, 0),         # b1 (invariant)
                             pipeline_mode=single),
                pl.BlockSpec((H1, H2), lambda i, k: (0, 0),        # w2 (invariant)
                             pipeline_mode=single),
                pl.BlockSpec((1, H2), lambda i, k: (0, 0),         # b2 (invariant)
                             pipeline_mode=single),
                pl.BlockSpec((H2, OUT_PAD), lambda i, k: (0, 0),   # w3 (invariant, lane-dense)
                             pipeline_mode=single),
                pl.BlockSpec((1, OUT_PAD), lambda i, k: (0, 0),    # b3 (invariant)
                             pipeline_mode=single),
            ],
            out_specs=pl.BlockSpec((tb, OUT_PAD), lambda i, k: (i, 0)),
            scratch_shapes=[pltpu.VMEM((tb, H1), jnp.float32)],    # fc1 accumulator
        ),
        compiler_params=pltpu.CompilerParams(
            # Batch tiles are independent (megacore-parallel); the K axis is
            # the fc1 reduction -> "arbitrary".
            dimension_semantics=("parallel", "arbitrary"),
            vmem_limit_bytes=vmem_limit,
        ),
    )(xb, w1b, b1f, w2b, b2f, w3b, b3f)
    return out[:B, :OUT]


def init_params(key):
    """Deterministic init mimicking nn.Linear's U(-1/sqrt(fan_in), 1/sqrt(fan_in))."""
    k1, k2, k3, k4, k5, k6 = jax.random.split(key, 6)

    def lin(kw, kb, fan_in, fan_out):
        bound = 1.0 / jnp.sqrt(jnp.float32(fan_in))
        w = jax.random.uniform(kw, (fan_in, fan_out), jnp.float32, -bound, bound)
        b = jax.random.uniform(kb, (1, fan_out), jnp.float32, -bound, bound)
        return w, b

    w1, b1 = lin(k1, k2, N_FEATURES, H1)
    w2, b2 = lin(k3, k4, H1, H2)          # fc2 input widened to 2048 (see TODO above)
    w3, b3 = lin(k5, k6, H2, OUT)
    return w1, b1, w2, b2, w3, b3


if __name__ == "__main__":
    key = jax.random.PRNGKey(0)
    kx, kp = jax.random.split(key)

    B = 2
    x = jax.random.normal(kx, (B, N_FEATURES), jnp.float32)
    w1, b1, w2, b2, w3, b3 = init_params(kp)

    y = mlp_forward(x, w1, b1, w2, b2, w3, b3)
    y = jax.block_until_ready(y)
    assert y.shape == (B, OUT)

    # Pure-JAX reference with the same bf16 weight/activation quantization
    # (bf16 products are exact in f32, so this matches the MXU path up to
    # accumulation order).
    f32 = jnp.float32
    hi = jax.lax.Precision.HIGHEST
    xb = x.astype(jnp.bfloat16).astype(f32)
    w1b = w1.astype(jnp.bfloat16).astype(f32)
    w2b = w2.astype(jnp.bfloat16).astype(f32)
    w3b = w3.astype(jnp.bfloat16).astype(f32)
    h1 = jnp.maximum(jnp.dot(xb, w1b, precision=hi) + b1, 0.0)
    h1 = h1.astype(jnp.bfloat16).astype(f32)
    h2 = jnp.maximum(jnp.dot(h1, w2b, precision=hi) + b2, 0.0)
    h2 = h2.astype(jnp.bfloat16).astype(f32)
    y_ref = jnp.dot(h2, w3b, precision=hi) + b3
    assert jnp.allclose(y, y_ref, atol=2e-3, rtol=2e-3), "mismatch vs JAX reference"

    print("KERNEL_OK")
</pallas_src>

<mosaic_0001>
module attributes {stable_mosaic.version = 11 : i64} {
  func.func @mlp_kernel(%arg0: i32, %arg1: i32, %arg2: memref<16x256xbf16, #tpu.memory_space<vmem>>, %arg3: memref<256x2048xbf16, #tpu.memory_space<vmem>>, %arg4: memref<1x2048xf32, #tpu.memory_space<vmem>>, %arg5: memref<2048x512xbf16, #tpu.memory_space<vmem>>, %arg6: memref<1x512xf32, #tpu.memory_space<vmem>>, %arg7: memref<512x128xbf16, #tpu.memory_space<vmem>>, %arg8: memref<1x128xf32, #tpu.memory_space<vmem>>, %arg9: memref<16x128xf32, #tpu.memory_space<vmem>>, %arg10: memref<16x2048xf32, #tpu.memory_space<vmem>>) attributes {dimension_semantics = [#tpu.dimension_semantics<parallel>, #tpu.dimension_semantics<arbitrary>], iteration_bounds = array<i64: 1, 1>, scalar_prefetch = 0 : i64, scratch_operands = 1 : i64, tpu.core_type = #tpu.core_type<tc>, window_params = [{transform_indices = @transform_0, window_bounds = array<i64: 16, 256>}, {transform_indices = @transform_1, window_bounds = array<i64: 256, 2048>}, {pipeline_mode = #tpu.pipeline_mode<synchronous>, transform_indices = @transform_2, window_bounds = array<i64: 1, 2048>}, {pipeline_mode = #tpu.pipeline_mode<synchronous>, transform_indices = @transform_3, window_bounds = array<i64: 2048, 512>}, {pipeline_mode = #tpu.pipeline_mode<synchronous>, transform_indices = @transform_4, window_bounds = array<i64: 1, 512>}, {pipeline_mode = #tpu.pipeline_mode<synchronous>, transform_indices = @transform_5, window_bounds = array<i64: 512, 128>}, {pipeline_mode = #tpu.pipeline_mode<synchronous>, transform_indices = @transform_6, window_bounds = array<i64: 1, 128>}, {transform_indices = @transform_7, window_bounds = array<i64: 16, 128>}]} {
    %c0_i32 = arith.constant 0 : i32
    %0 = arith.cmpi eq, %arg1, %c0_i32 : i32
    %1 = arith.extui %0 : i1 to i32
    %c0_i32_0 = arith.constant 0 : i32
    %2 = arith.cmpi ne, %1, %c0_i32_0 : i32
    scf.if %2 {
      %c0_10 = arith.constant 0 : index
      %c0_11 = arith.constant 0 : index
      %12 = vector.load %arg4[%c0_10, %c0_11] : memref<1x2048xf32, #tpu.memory_space<vmem>>, vector<1x2048xf32>
      %13 = vector.shape_cast %12 : vector<1x2048xf32> to vector<1x2048xf32>
      %14 = vector.broadcast %13 : vector<1x2048xf32> to vector<16x2048xf32>
      %c0_12 = arith.constant 0 : index
      %c0_13 = arith.constant 0 : index
      %15 = vector.load %arg10[%c0_12, %c0_13] : memref<16x2048xf32, #tpu.memory_space<vmem>>, vector<16x2048xf32>
      tpu.vector_store %arg10[%c0_12, %c0_13], %14 {strides = array<i32>} : memref<16x2048xf32, #tpu.memory_space<vmem>>, vector<16x2048xf32>,
    } else {
    }
    %c0 = arith.constant 0 : index
    %c0_1 = arith.constant 0 : index
    %3 = vector.load %arg10[%c0, %c0_1] : memref<16x2048xf32, #tpu.memory_space<vmem>>, vector<16x2048xf32>
    %c0_2 = arith.constant 0 : index
    %c0_3 = arith.constant 0 : index
    %4 = vector.load %arg2[%c0_2, %c0_3] : memref<16x256xbf16, #tpu.memory_space<vmem>>, vector<16x256xbf16>
    %c0_4 = arith.constant 0 : index
    %c0_5 = arith.constant 0 : index
    %5 = vector.load %arg3[%c0_4, %c0_5] : memref<256x2048xbf16, #tpu.memory_space<vmem>>, vector<256x2048xbf16>
    %cst = arith.constant dense<0.000000e+00> : vector<16x2048xf32>
    %6 = tpu.matmul %4, %5, %cst {dimension_numbers = #tpu.dot_dimension_numbers<[1], [0], [0], [1], [0, 0, 1, 1], [], []>} : vector<16x256xbf16>, vector<256x2048xbf16>, vector<16x2048xf32> -> vector<16x2048xf32>
    %7 = arith.addf %3, %6 : vector<16x2048xf32>
    %c0_6 = arith.constant 0 : index
    %c0_7 = arith.constant 0 : index
    %8 = vector.load %arg10[%c0_6, %c0_7] : memref<16x2048xf32, #tpu.memory_space<vmem>>, vector<16x2048xf32>
    tpu.vector_store %arg10[%c0_6, %c0_7], %7 {strides = array<i32>} : memref<16x2048xf32, #tpu.memory_space<vmem>>, vector<16x2048xf32>,
    %c0_i32_8 = arith.constant 0 : i32
    %9 = arith.cmpi eq, %arg1, %c0_i32_8 : i32
    %10 = arith.extui %9 : i1 to i32
    %c0_i32_9 = arith.constant 0 : i32
    %11 = arith.cmpi ne, %10, %c0_i32_9 : i32
    scf.if %11 {
      %c0_10 = arith.constant 0 : index
      %c0_11 = arith.constant 0 : index
      %12 = vector.load %arg10[%c0_10, %c0_11] : memref<16x2048xf32, #tpu.memory_space<vmem>>, vector<16x2048xf32>
      %cst_12 = arith.constant 0.000000e+00 : f32
      %13 = vector.broadcast %cst_12 : f32 to vector<16x2048xf32>
      %14 = arith.maximumf %12, %13 : vector<16x2048xf32>
      %15 = arith.truncf %14 : vector<16x2048xf32> to vector<16x2048xbf16>
      %c0_13 = arith.constant 0 : index
      %c0_14 = arith.constant 0 : index
      %16 = vector.load %arg5[%c0_13, %c0_14] : memref<2048x512xbf16, #tpu.memory_space<vmem>>, vector<2048x512xbf16>
      %cst_15 = arith.constant dense<0.000000e+00> : vector<16x512xf32>
      %17 = tpu.matmul %15, %16, %cst_15 {dimension_numbers = #tpu.dot_dimension_numbers<[1], [0], [0], [1], [0, 0, 1, 1], [], []>} : vector<16x2048xbf16>, vector<2048x512xbf16>, vector<16x512xf32> -> vector<16x512xf32>
      %c0_16 = arith.constant 0 : index
      %c0_17 = arith.constant 0 : index
      %18 = vector.load %arg6[%c0_16, %c0_17] : memref<1x512xf32, #tpu.memory_space<vmem>>, vector<1x512xf32>
      %19 = vector.broadcast %18 : vector<1x512xf32> to vector<16x512xf32>
      %20 = arith.addf %17, %19 : vector<16x512xf32>
      %cst_18 = arith.constant 0.000000e+00 : f32
      %21 = vector.broadcast %cst_18 : f32 to vector<16x512xf32>
      %22 = arith.maximumf %20, %21 : vector<16x512xf32>
      %23 = arith.truncf %22 : vector<16x512xf32> to vector<16x512xbf16>
      %c0_19 = arith.constant 0 : index
      %c0_20 = arith.constant 0 : index
      %24 = vector.load %arg7[%c0_19, %c0_20] : memref<512x128xbf16, #tpu.memory_space<vmem>>, vector<512x128xbf16>
      %cst_21 = arith.constant dense<0.000000e+00> : vector<16x128xf32>
      %25 = tpu.matmul %23, %24, %cst_21 {dimension_numbers = #tpu.dot_dimension_numbers<[1], [0], [0], [1], [0, 0, 1, 1], [], []>} : vector<16x512xbf16>, vector<512x128xbf16>, vector<16x128xf32> -> vector<16x128xf32>
      %c0_22 = arith.constant 0 : index
      %c0_23 = arith.constant 0 : index
      %26 = vector.load %arg8[%c0_22, %c0_23] : memref<1x128xf32, #tpu.memory_space<vmem>>, vector<1x128xf32>
      %27 = vector.broadcast %26 : vector<1x128xf32> to vector<16x128xf32>
      %28 = arith.addf %25, %27 : vector<16x128xf32>
      %c0_24 = arith.constant 0 : index
      %c0_25 = arith.constant 0 : index
      %29 = vector.load %arg9[%c0_24, %c0_25] : memref<16x128xf32, #tpu.memory_space<vmem>>, vector<16x128xf32>
      tpu.vector_store %arg9[%c0_24, %c0_25], %28 {strides = array<i32>} : memref<16x128xf32, #tpu.memory_space<vmem>>, vector<16x128xf32>,
    } else {
    }
    return
  }
  func.func @transform_0(%arg0: i32, %arg1: i32) -> (i32, i32) {
    %c0_i32 = arith.constant 0 : i32
    return %arg0, %arg1 : i32, i32
  }
  func.func @transform_1(%arg0: i32, %arg1: i32) -> (i32, i32) {
    %c0_i32 = arith.constant 0 : i32
    %c0_i32_0 = arith.constant 0 : i32
    return %arg1, %c0_i32 : i32, i32
  }
  func.func @transform_2(%arg0: i32, %arg1: i32) -> (i32, i32) {
    %c0_i32 = arith.constant 0 : i32
    %c0_i32_0 = arith.constant 0 : i32
    %c0_i32_1 = arith.constant 0 : i32
    return %c0_i32, %c0_i32_0 : i32, i32
  }
  func.func @transform_3(%arg0: i32, %arg1: i32) -> (i32, i32) {
    %c0_i32 = arith.constant 0 : i32
    %c0_i32_0 = arith.constant 0 : i32
    %c0_i32_1 = arith.constant 0 : i32
    return %c0_i32, %c0_i32_0 : i32, i32
  }
  func.func @transform_4(%arg0: i32, %arg1: i32) -> (i32, i32) {
    %c0_i32 = arith.constant 0 : i32
    %c0_i32_0 = arith.constant 0 : i32
    %c0_i32_1 = arith.constant 0 : i32
    return %c0_i32, %c0_i32_0 : i32, i32
  }
  func.func @transform_5(%arg0: i32, %arg1: i32) -> (i32, i32) {
    %c0_i32 = arith.constant 0 : i32
    %c0_i32_0 = arith.constant 0 : i32
    %c0_i32_1 = arith.constant 0 : i32
    return %c0_i32, %c0_i32_0 : i32, i32
  }
  func.func @transform_6(%arg0: i32, %arg1: i32) -> (i32, i32) {
    %c0_i32 = arith.constant 0 : i32
    %c0_i32_0 = arith.constant 0 : i32
    %c0_i32_1 = arith.constant 0 : i32
    return %c0_i32, %c0_i32_0 : i32, i32
  }
  func.func @transform_7(%arg0: i32, %arg1: i32) -> (i32, i32) {
    %c0_i32 = arith.constant 0 : i32
    %c0_i32_0 = arith.constant 0 : i32
    return %arg0, %c0_i32 : i32, i32
  }
}

</mosaic_0001>

<llo_original>
// kernel: tpu_custom_call.1
$region0: #{tpu_custom_call.1}
  #allocation0 [shape = 'u32[]', space=smem, size = 0x4, offset = 0x4, fixed_abs, tag = 'smem constant byte address 0x4 - core index']
  #allocation1 [shape = 'u32[144,128]{1,0:T(1,128)}', space=vmem, size = 0x12000, scoped, tag = 'internal scratch']
  #allocation2 [shape = 'f32[16,2048]{1,0:T(8,128)}', space=vmem, size = 0x20000, scoped, tag = 'scratch operand']
  %s0 = inlined_call_operand.hbm [shape: bf16[16,256], index: 0, kind: input, shape index: {}]
  %s1 = inlined_call_operand.hbm [shape: bf16[256,2048], index: 1, kind: input, shape index: {}]
  %s2 = inlined_call_operand.hbm [shape: f32[1,2048], index: 2, kind: input, shape index: {}]
  %s3 = inlined_call_operand.hbm [shape: bf16[2048,512], index: 3, kind: input, shape index: {}]
  %s4 = inlined_call_operand.hbm [shape: f32[1,512], index: 4, kind: input, shape index: {}]
  %s5 = inlined_call_operand.hbm [shape: bf16[512,128], index: 5, kind: input, shape index: {}]
  %s6 = inlined_call_operand.hbm [shape: f32[1,128], index: 6, kind: input, shape index: {}]
  %s7 = inlined_call_operand.hbm [shape: f32[16,128], index: 7, kind: output, shape index: {}]
  %s8 = sld [smem:[#allocation0]]
  $region74: #{tpu_custom_call.1} parent=0
    _
  %s10 = ssub.s32 1, %s8
  %s11 = scalar_select 0, %s10, %s8
  $region1: #{tpu_custom_call.1} parent=0
    #allocation3 [shape = 'u8[8192]{0}', space=vmem, size = 0x2000, scoped, tag = 'input window, operand 0, single buffered']
    #allocation4 [shape = 's32[1]{0}', space=sflag, size = 0x4, scoped, tag = 'scoped memory for tpu_custom_call.1']
    #allocation5 [shape = 's32[1]{0}', space=sflag, size = 0x4, scoped, tag = 'scoped memory for tpu_custom_call.1']
    #allocation6 [shape = 'u8[1048576]{0}', space=vmem, size = 0x100000, scoped, tag = 'input window, operand 1, single buffered']
    #allocation7 [shape = 's32[1]{0}', space=sflag, size = 0x4, scoped, tag = 'scoped memory for tpu_custom_call.1']
    #allocation8 [shape = 'u8[8192]{0}', space=vmem, size = 0x2000, scoped, tag = 'input window, operand 2, single buffered']
    #allocation9 [shape = 'u8[2097152]{0}', space=vmem, size = 0x200000, scoped, tag = 'input window, operand 3, single buffered']
    #allocation10 [shape = 's32[1]{0}', space=sflag, size = 0x4, scoped, tag = 'scoped memory for tpu_custom_call.1']
    #allocation11 [shape = 'u8[2048]{0}', space=vmem, size = 0x800, scoped, tag = 'input window, operand 4, single buffered']
    #allocation12 [shape = 'u8[131072]{0}', space=vmem, size = 0x20000, scoped, tag = 'input window, operand 5, single buffered']
    #allocation13 [shape = 's32[1]{0}', space=sflag, size = 0x4, scoped, tag = 'scoped memory for tpu_custom_call.1']
    #allocation14 [shape = 'u8[512]{0}', space=vmem, size = 0x400, scoped, tag = 'input window, operand 6, single buffered']
    #allocation15 [shape = 'u8[8192]{0}', space=vmem, size = 0x2000, scoped, tag = 'output window, operand 0, single buffered']
    %12 = vsyncpa [#allocation4], 0
    %13 = vsyncpa [#allocation7], 0
    %14 = vsyncpa [#allocation10], 0
    %15 = vsyncpa [#allocation13], 0
    %16 = vsyncpa [#allocation5], 0
    // Predicated region
    $region2: #{tpu_custom_call.1} parent=1 // pred_check
      _
    $region3: #{tpu_custom_call.1} parent=1 // pred_check_branch
      %18 = sbr.rel (0) target = $region5
    $region4: #{tpu_custom_call.1} parent=1 // pred_region
      %s20 = ssub.s32 256, 256
      %21 = vsyncadd [#allocation4], %s20
      %s22 = sshll.u32 [#allocation3], 4
      %s23 = int_to_ptr.vmem [resolvable:$true] %s22
      %28 = dma.hbm_to_vmem [thread:$0]  %s0, 256, %s23, [#allocation4], 128, 128, 8
    $region5: #{tpu_custom_call.1} parent=1 // pred_fallthru
      _
    // Predicated region
    $region6: #{tpu_custom_call.1} parent=1 // pred_check
      _
    $region7: #{tpu_custom_call.1} parent=1 // pred_check_branch
      %30 = sbr.rel (0) target = $region9
    $region8: #{tpu_custom_call.1} parent=1 // pred_region
      %s32 = ssub.s32 32768, 32768
      %33 = vsyncadd [#allocation7], %s32
      %s34 = sshll.u32 [#allocation6], 4
      %s35 = int_to_ptr.vmem [resolvable:$true] %s34
      %40 = dma.hbm_to_vmem [thread:$0]  %s1, 32768, %s35, [#allocation7], 1024, 1024, 64
    $region9: #{tpu_custom_call.1} parent=1 // pred_fallthru
      _
    // Predicated region
    $region10: #{tpu_custom_call.1} parent=1 // pred_check
      _
    $region11: #{tpu_custom_call.1} parent=1 // pred_check_branch
      %42 = sbr.rel (0) target = $region13
    $region12: #{tpu_custom_call.1} parent=1 // pred_region
      %s44 = ssub.s32 256, 256
      %45 = vsyncadd [#allocation7], %s44
      %s47 = sshll.u32 [#allocation8], 4
      %s48 = int_to_ptr.vmem [resolvable:$true] %s47
      %50 = dma.hbm_to_vmem [thread:$0]  %s2, 256, %s48, [#allocation7]
    $region13: #{tpu_custom_call.1} parent=1 // pred_fallthru
      _
    // Predicated region
    $region14: #{tpu_custom_call.1} parent=1 // pred_check
      _
    $region15: #{tpu_custom_call.1} parent=1 // pred_check_branch
      %52 = sbr.rel (0) target = $region17
    $region16: #{tpu_custom_call.1} parent=1 // pred_region
      %s54 = ssub.s32 65536, 65536
      %55 = vsyncadd [#allocation10], %s54
      %s56 = sshll.u32 [#allocation9], 4
      %s57 = int_to_ptr.vmem [resolvable:$true] %s56
      %62 = dma.hbm_to_vmem [thread:$0]  %s3, 65536, %s57, [#allocation10], 256, 256, 16
    $region17: #{tpu_custom_call.1} parent=1 // pred_fallthru
      _
    // Predicated region
    $region18: #{tpu_custom_call.1} parent=1 // pred_check
      _
    $region19: #{tpu_custom_call.1} parent=1 // pred_check_branch
      %64 = sbr.rel (0) target = $region21
    $region20: #{tpu_custom_call.1} parent=1 // pred_region
      %s66 = ssub.s32 64, 64
      %67 = vsyncadd [#allocation10], %s66
      %s69 = sshll.u32 [#allocation11], 4
      %s70 = int_to_ptr.vmem [resolvable:$true] %s69
      %72 = dma.hbm_to_vmem [thread:$0]  %s4, 64, %s70, [#allocation10]
    $region21: #{tpu_custom_call.1} parent=1 // pred_fallthru
      _
    // Predicated region
    $region22: #{tpu_custom_call.1} parent=1 // pred_check
      _
    $region23: #{tpu_custom_call.1} parent=1 // pred_check_branch
      %74 = sbr.rel (0) target = $region25
    $region24: #{tpu_custom_call.1} parent=1 // pred_region
      %s76 = ssub.s32 4096, 4096
      %77 = vsyncadd [#allocation13], %s76
      %s78 = sshll.u32 [#allocation12], 4
      %s79 = int_to_ptr.vmem [resolvable:$true] %s78
      %84 = dma.hbm_to_vmem [thread:$0]  %s5, 4096, %s79, [#allocation13], 64, 64, 4
    $region25: #{tpu_custom_call.1} parent=1 // pred_fallthru
      _
    // Predicated region
    $region26: #{tpu_custom_call.1} parent=1 // pred_check
      _
    $region27: #{tpu_custom_call.1} parent=1 // pred_check_branch
      %86 = sbr.rel (0) target = $region29
    $region28: #{tpu_custom_call.1} parent=1 // pred_region
      %s88 = ssub.s32 16, 16
      %89 = vsyncadd [#allocation13], %s88
      %s91 = sshll.u32 [#allocation14], 4
      %s92 = int_to_ptr.vmem [resolvable:$true] %s91
      %94 = dma.hbm_to_vmem [thread:$0]  %s6, 16, %s92, [#allocation13]
    $region29: #{tpu_custom_call.1} parent=1 // pred_fallthru
      _
    // Predicated region
    $region30: #{tpu_custom_call.1} parent=1 // pred_check
      _
    $region31: #{tpu_custom_call.1} parent=1 // pred_check_branch
      %96 = sbr.rel (0) target = $region33
    $region32: #{tpu_custom_call.1} parent=1 // pred_region
      %97 = dma.done [#allocation4], 256
    $region33: #{tpu_custom_call.1} parent=1 // pred_fallthru
      _
    // Predicated region
    $region34: #{tpu_custom_call.1} parent=1 // pred_check
      _
    $region35: #{tpu_custom_call.1} parent=1 // pred_check_branch
      %99 = sbr.rel (0) target = $region37
    $region36: #{tpu_custom_call.1} parent=1 // pred_region
      %100 = dma.done [#allocation7], 32768
    $region37: #{tpu_custom_call.1} parent=1 // pred_fallthru
      _
    // Predicated region
    $region38: #{tpu_custom_call.1} parent=1 // pred_check
      _
    $region39: #{tpu_custom_call.1} parent=1 // pred_check_branch
      %102 = sbr.rel (0) target = $region41
    $region40: #{tpu_custom_call.1} parent=1 // pred_region
      %103 = dma.done [#allocation7], 256
    $region41: #{tpu_custom_call.1} parent=1 // pred_fallthru
      _
    // Predicated region
    $region42: #{tpu_custom_call.1} parent=1 // pred_check
      _
    $region43: #{tpu_custom_call.1} parent=1 // pred_check_branch
      %105 = sbr.rel (0) target = $region45
    $region44: #{tpu_custom_call.1} parent=1 // pred_region
      %106 = dma.done [#allocation10], 65536
    $region45: #{tpu_custom_call.1} parent=1 // pred_fallthru
      _
    // Predicated region
    $region46: #{tpu_custom_call.1} parent=1 // pred_check
      _
    $region47: #{tpu_custom_call.1} parent=1 // pred_check_branch
      %108 = sbr.rel (0) target = $region49
    $region48: #{tpu_custom_call.1} parent=1 // pred_region
      %109 = dma.done [#allocation10], 64
    $region49: #{tpu_custom_call.1} parent=1 // pred_fallthru
      _
    // Predicated region
    $region50: #{tpu_custom_call.1} parent=1 // pred_check
      _
    $region51: #{tpu_custom_call.1} parent=1 // pred_check_branch
      %111 = sbr.rel (0) target = $region53
    $region52: #{tpu_custom_call.1} parent=1 // pred_region
      %112 = dma.done [#allocation13], 4096
    $region53: #{tpu_custom_call.1} parent=1 // pred_fallthru
      _
    // Predicated region
    $region54: #{tpu_custom_call.1} parent=1 // pred_check
      _
    $region55: #{tpu_custom_call.1} parent=1 // pred_check_branch
      %114 = sbr.rel (0) target = $region57
    $region56: #{tpu_custom_call.1} parent=1 // pred_region
      %115 = dma.done [#allocation13], 16
    $region57: #{tpu_custom_call.1} parent=1 // pred_fallthru
      _
    %p117 = scmp.eq.s32.totalorder 0, 0
    // Predicated region
    $region58: #{tpu_custom_call.1} parent=1 // pred_check
      %p118 = pneg %p117
    $region59: #{tpu_custom_call.1} parent=1 // pred_check_branch
      %120 = sbr.rel (%p118) target = $region61
    $region60: #{tpu_custom_call.1} parent=1 // pred_region
      %v121 = vld [vmem:[#allocation8] sm:$0xff]
      %v122 = vld [vmem:[#allocation8 + $0x8] sm:$0xff]
      %v125 = vlaneseq
      %v126 = vshrl.u32 %v125, 7
      %v127 = vsub.s32 0, %v126
      %v128 = vrot.slane %v121, %v127
      %v129 = vlaneseq
      %v130 = vshrl.u32 %v129, 7
      %v131 = vsub.s32 1, %v130
      %v132 = vrot.slane %v121, %v131
      %v133 = vlaneseq
      %v134 = vshrl.u32 %v133, 7
      %v135 = vsub.s32 2, %v134
      %v136 = vrot.slane %v121, %v135
      %v137 = vlaneseq
      %v138 = vshrl.u32 %v137, 7
      %v139 = vsub.s32 3, %v138
      %v140 = vrot.slane %v121, %v139
      %v141 = vlaneseq
      %v142 = vshrl.u32 %v141, 7
      %v143 = vsub.s32 4, %v142
      %v144 = vrot.slane %v121, %v143
      %v145 = vlaneseq
      %v146 = vshrl.u32 %v145, 7
      %v147 = vsub.s32 5, %v146
      %v148 = vrot.slane %v121, %v147
      %v149 = vlaneseq
      %v150 = vshrl.u32 %v149, 7
      %v151 = vsub.s32 6, %v150
      %v152 = vrot.slane %v121, %v151
      %v153 = vlaneseq
      %v154 = vshrl.u32 %v153, 7
      %v155 = vsub.s32 7, %v154
      %v156 = vrot.slane %v121, %v155
      %v157 = vlaneseq
      %v158 = vshrl.u32 %v157, 7
      %v159 = vsub.s32 0, %v158
      %v160 = vrot.slane %v122, %v159
      %v161 = vlaneseq
      %v162 = vshrl.u32 %v161, 7
      %v163 = vsub.s32 1, %v162
      %v164 = vrot.slane %v122, %v163
      %v165 = vlaneseq
      %v166 = vshrl.u32 %v165, 7
      %v167 = vsub.s32 2, %v166
      %v168 = vrot.slane %v122, %v167
      %v169 = vlaneseq
      %v170 = vshrl.u32 %v169, 7
      %v171 = vsub.s32 3, %v170
      %v172 = vrot.slane %v122, %v171
      %v173 = vlaneseq
      %v174 = vshrl.u32 %v173, 7
      %v175 = vsub.s32 4, %v174
      %v176 = vrot.slane %v122, %v175
      %v177 = vlaneseq
      %v178 = vshrl.u32 %v177, 7
      %v179 = vsub.s32 5, %v178
      %v180 = vrot.slane %v122, %v179
      %v181 = vlaneseq
      %v182 = vshrl.u32 %v181, 7
      %v183 = vsub.s32 6, %v182
      %v184 = vrot.slane %v122, %v183
      %v185 = vlaneseq
      %v186 = vshrl.u32 %v185, 7
      %v187 = vsub.s32 7, %v186
      %v188 = vrot.slane %v122, %v187
      %205 = vst [vmem:[#allocation2] sm:$0xff] %v128
      %206 = vst [vmem:[#allocation2 + $0x8] sm:$0xff] %v132
      %207 = vst [vmem:[#allocation2 + $0x10] sm:$0xff] %v136
      %208 = vst [vmem:[#allocation2 + $0x18] sm:$0xff] %v140
      %209 = vst [vmem:[#allocation2 + $0x20] sm:$0xff] %v144
      %210 = vst [vmem:[#allocation2 + $0x28] sm:$0xff] %v148
      %211 = vst [vmem:[#allocation2 + $0x30] sm:$0xff] %v152
      %212 = vst [vmem:[#allocation2 + $0x38] sm:$0xff] %v156
      %213 = vst [vmem:[#allocation2 + $0x40] sm:$0xff] %v160
      %214 = vst [vmem:[#allocation2 + $0x48] sm:$0xff] %v164
      %215 = vst [vmem:[#allocation2 + $0x50] sm:$0xff] %v168
      %216 = vst [vmem:[#allocation2 + $0x58] sm:$0xff] %v172
      %217 = vst [vmem:[#allocation2 + $0x60] sm:$0xff] %v176
      %218 = vst [vmem:[#allocation2 + $0x68] sm:$0xff] %v180
      %219 = vst [vmem:[#allocation2 + $0x70] sm:$0xff] %v184
      %220 = vst [vmem:[#allocation2 + $0x78] sm:$0xff] %v188
      %221 = vst [vmem:[#allocation2 + $0x80] sm:$0xff] %v128
      %222 = vst [vmem:[#allocation2 + $0x88] sm:$0xff] %v132
      %223 = vst [vmem:[#allocation2 + $0x90] sm:$0xff] %v136
      %224 = vst [vmem:[#allocation2 + $0x98] sm:$0xff] %v140
      %225 = vst [vmem:[#allocation2 + $0xa0] sm:$0xff] %v144
      %226 = vst [vmem:[#allocation2 + $0xa8] sm:$0xff] %v148
      %227 = vst [vmem:[#allocation2 + $0xb0] sm:$0xff] %v152
      %228 = vst [vmem:[#allocation2 + $0xb8] sm:$0xff] %v156
      %229 = vst [vmem:[#allocation2 + $0xc0] sm:$0xff] %v160
      %230 = vst [vmem:[#allocation2 + $0xc8] sm:$0xff] %v164
      %231 = vst [vmem:[#allocation2 + $0xd0] sm:$0xff] %v168
      %232 = vst [vmem:[#allocation2 + $0xd8] sm:$0xff] %v172
      %233 = vst [vmem:[#allocation2 + $0xe0] sm:$0xff] %v176
      %234 = vst [vmem:[#allocation2 + $0xe8] sm:$0xff] %v180
      %235 = vst [vmem:[#allocation2 + $0xf0] sm:$0xff] %v184
      %236 = vst [vmem:[#allocation2 + $0xf8] sm:$0xff] %v188
    $region61: #{tpu_custom_call.1} parent=1 // pred_fallthru
      _
    %v237 = vld [vmem:[#allocation2] sm:$0xff]
    %v238 = vld [vmem:[#allocation2 + $0x8] sm:$0xff]
    %v239 = vld [vmem:[#allocation2 + $0x10] sm:$0xff]
    %v240 = vld [vmem:[#allocation2 + $0x18] sm:$0xff]
    %v241 = vld [vmem:[#allocation2 + $0x20] sm:$0xff]
    %v242 = vld [vmem:[#allocation2 + $0x28] sm:$0xff]
    %v243 = vld [vmem:[#allocation2 + $0x30] sm:$0xff]
    %v244 = vld [vmem:[#allocation2 + $0x38] sm:$0xff]
    %v245 = vld [vmem:[#allocation2 + $0x40] sm:$0xff]
    %v246 = vld [vmem:[#allocation2 + $0x48] sm:$0xff]
    %v247 = vld [vmem:[#allocation2 + $0x50] sm:$0xff]
    %v248 = vld [vmem:[#allocation2 + $0x58] sm:$0xff]
    %v249 = vld [vmem:[#allocation2 + $0x60] sm:$0xff]
    %v250 = vld [vmem:[#allocation2 + $0x68] sm:$0xff]
    %v251 = vld [vmem:[#allocation2 + $0x70] sm:$0xff]
    %v252 = vld [vmem:[#allocation2 + $0x78] sm:$0xff]
    %v253 = vld [vmem:[#allocation2 + $0x80] sm:$0xff]
    %v254 = vld [vmem:[#allocation2 + $0x88] sm:$0xff]
    %v255 = vld [vmem:[#allocation2 + $0x90] sm:$0xff]
    %v256 = vld [vmem:[#allocation2 + $0x98] sm:$0xff]
    %v257 = vld [vmem:[#allocation2 + $0xa0] sm:$0xff]
    %v258 = vld [vmem:[#allocation2 + $0xa8] sm:$0xff]
    %v259 = vld [vmem:[#allocation2 + $0xb0] sm:$0xff]
    %v260 = vld [vmem:[#allocation2 + $0xb8] sm:$0xff]
    %v261 = vld [vmem:[#allocation2 + $0xc0] sm:$0xff]
    %v262 = vld [vmem:[#allocation2 + $0xc8] sm:$0xff]
    %v263 = vld [vmem:[#allocation2 + $0xd0] sm:$0xff]
    %v264 = vld [vmem:[#allocation2 + $0xd8] sm:$0xff]
    %v265 = vld [vmem:[#allocation2 + $0xe0] sm:$0xff]
    %v266 = vld [vmem:[#allocation2 + $0xe8] sm:$0xff]
    %v267 = vld [vmem:[#allocation2 + $0xf0] sm:$0xff]
    %v268 = vld [vmem:[#allocation2 + $0xf8] sm:$0xff]
    %v269 = vld [vmem:[#allocation3] sm:$0xff]
    %v270 = vld [vmem:[#allocation3 + $0x8] sm:$0xff]
    %v271 = vld [vmem:[#allocation6] sm:$0xff]
    %v272 = vld [vmem:[#allocation6 + $0x8] sm:$0xff]
    %v273 = vld [vmem:[#allocation6 + $0x10] sm:$0xff]
    %v274 = vld [vmem:[#allocation6 + $0x18] sm:$0xff]
    %v275 = vld [vmem:[#allocation6 + $0x20] sm:$0xff]
    %v276 = vld [vmem:[#allocation6 + $0x28] sm:$0xff]
    %v277 = vld [vmem:[#allocation6 + $0x30] sm:$0xff]
    %v278 = vld [vmem:[#allocation6 + $0x38] sm:$0xff]
    %v279 = vld [vmem:[#allocation6 + $0x40] sm:$0xff]
    %v280 = vld [vmem:[#allocation6 + $0x48] sm:$0xff]
    %v281 = vld [vmem:[#allocation6 + $0x50] sm:$0xff]
    %v282 = vld [vmem:[#allocation6 + $0x58] sm:$0xff]
    %v283 = vld [vmem:[#allocation6 + $0x60] sm:$0xff]
    %v284 = vld [vmem:[#allocation6 + $0x68] sm:$0xff]
    %v285 = vld [vmem:[#allocation6 + $0x70] sm:$0xff]
    %v286 = vld [vmem:[#allocation6 + $0x78] sm:$0xff]
    %v287 = vld [vmem:[#allocation6 + $0x80] sm:$0xff]
    %v288 = vld [vmem:[#allocation6 + $0x88] sm:$0xff]
    %v289 = vld [vmem:[#allocation6 + $0x90] sm:$0xff]
    %v290 = vld [vmem:[#allocation6 + $0x98] sm:$0xff]
    %v291 = vld [vmem:[#allocation6 + $0xa0] sm:$0xff]
    %v292 = vld [vmem:[#allocation6 + $0xa8] sm:$0xff]
    %v293 = vld [vmem:[#allocation6 + $0xb0] sm:$0xff]
    %v294 = vld [vmem:[#allocation6 + $0xb8] sm:$0xff]
    %v295 = vld [vmem:[#allocation6 + $0xc0] sm:$0xff]
    %v296 = vld [vmem:[#allocation6 + $0xc8] sm:$0xff]
    %v297 = vld [vmem:[#allocation6 + $0xd0] sm:$0xff]
    %v298 = vld [vmem:[#allocation6 + $0xd8] sm:$0xff]
    %v299 = vld [vmem:[#allocation6 + $0xe0] sm:$0xff]
    %v300 = vld [vmem:[#allocation6 + $0xe8] sm:$0xff]
    %v301 = vld [vmem:[#allocation6 + $0xf0] sm:$0xff]
    %v302 = vld [vmem:[#allocation6 + $0xf8] sm:$0xff]
    %v303 = vld [vmem:[#allocation6 + $0x100] sm:$0xff]
    %v304 = vld [vmem:[#allocation6 + $0x108] sm:$0xff]
    %v305 = vld [vmem:[#allocation6 + $0x110] sm:$0xff]
    %v306 = vld [vmem:[#allocation6 + $0x118] sm:$0xff]
    %v307 = vld [vmem:[#allocation6 + $0x120] sm:$0xff]
    %v308 = vld [vmem:[#allocation6 + $0x128] sm:$0xff]
    %v309 = vld [vmem:[#allocation6 + $0x130] sm:$0xff]
    %v310 = vld [vmem:[#allocation6 + $0x138] sm:$0xff]
    %v311 = vld [vmem:[#allocation6 + $0x140] sm:$0xff]
    %v312 = vld [vmem:[#allocation6 + $0x148] sm:$0xff]
    %v313 = vld [vmem:[#allocation6 + $0x150] sm:$0xff]
    %v314 = vld [vmem:[#allocation6 + $0x158] sm:$0xff]
    %v315 = vld [vmem:[#allocation6 + $0x160] sm:$0xff]
    %v316 = vld [vmem:[#allocation6 + $0x168] sm:$0xff]
    %v317 = vld [vmem:[#allocation6 + $0x170] sm:$0xff]
    %v318 = vld [vmem:[#allocation6 + $0x178] sm:$0xff]
    %v319 = vld [vmem:[#allocation6 + $0x180] sm:$0xff]
    %v320 = vld [vmem:[#allocation6 + $0x188] sm:$0xff]
    %v321 = vld [vmem:[#allocation6 + $0x190] sm:$0xff]
    %v322 = vld [vmem:[#allocation6 + $0x198] sm:$0xff]
    %v323 = vld [vmem:[#allocation6 + $0x1a0] sm:$0xff]
    %v324 = vld [vmem:[#allocation6 + $0x1a8] sm:$0xff]
    %v325 = vld [vmem:[#allocation6 + $0x1b0] sm:$0xff]
    %v326 = vld [vmem:[#allocation6 + $0x1b8] sm:$0xff]
    %v327 = vld [vmem:[#allocation6 + $0x1c0] sm:$0xff]
    %v328 = vld [vmem:[#allocation6 + $0x1c8] sm:$0xff]
    %v329 = vld [vmem:[#allocation6 + $0x1d0] sm:$0xff]
    %v330 = vld [vmem:[#allocation6 + $0x1d8] sm:$0xff]
    %v331 = vld [vmem:[#allocation6 + $0x1e0] sm:$0xff]
    %v332 = vld [vmem:[#allocation6 + $0x1e8] sm:$0xff]
    %v333 = vld [vmem:[#allocation6 + $0x1f0] sm:$0xff]
    %v334 = vld [vmem:[#allocation6 + $0x1f8] sm:$0xff]
    %v335 = vld [vmem:[#allocation6 + $0x200] sm:$0xff]
    %v336 = vld [vmem:[#allocation6 + $0x208] sm:$0xff]
    %v337 = vld [vmem:[#allocation6 + $0x210] sm:$0xff]
    %v338 = vld [vmem:[#allocation6 + $0x218] sm:$0xff]
    %v339 = vld [vmem:[#allocation6 + $0x220] sm:$0xff]
    %v340 = vld [vmem:[#allocation6 + $0x228] sm:$0xff]
    %v341 = vld [vmem:[#allocation6 + $0x230] sm:$0xff]
    %v342 = vld [vmem:[#allocation6 + $0x238] sm:$0xff]
    %v343 = vld [vmem:[#allocation6 + $0x240] sm:$0xff]
    %v344 = vld [vmem:[#allocation6 + $0x248] sm:$0xff]
    %v345 = vld [vmem:[#allocation6 + $0x250] sm:$0xff]
    %v346 = vld [vmem:[#allocation6 + $0x258] sm:$0xff]
    %v347 = vld [vmem:[#allocation6 + $0x260] sm:$0xff]
    %v348 = vld [vmem:[#allocation6 + $0x268] sm:$0xff]
    %v349 = vld [vmem:[#allocation6 + $0x270] sm:$0xff]
    %v350 = vld [vmem:[#allocation6 + $0x278] sm:$0xff]
    %v351 = vld [vmem:[#allocation6 + $0x280] sm:$0xff]
    %v352 = vld [vmem:[#allocation6 + $0x288] sm:$0xff]
    %v353 = vld [vmem:[#allocation6 + $0x290] sm:$0xff]
    %v354 = vld [vmem:[#allocation6 + $0x298] sm:$0xff]
    %v355 = vld [vmem:[#allocation6 + $0x2a0] sm:$0xff]
    %v356 = vld [vmem:[#allocation6 + $0x2a8] sm:$0xff]
    %v357 = vld [vmem:[#allocation6 + $0x2b0] sm:$0xff]
    %v358 = vld [vmem:[#allocation6 + $0x2b8] sm:$0xff]
    %v359 = vld [vmem:[#allocation6 + $0x2c0] sm:$0xff]
    %v360 = vld [vmem:[#allocation6 + $0x2c8] sm:$0xff]
    %v361 = vld [vmem:[#allocation6 + $0x2d0] sm:$0xff]
    %v362 = vld [vmem:[#allocation6 + $0x2d8] sm:$0xff]
    %v363 = vld [vmem:[#allocation6 + $0x2e0] sm:$0xff]
    %v364 = vld [vmem:[#allocation6 + $0x2e8] sm:$0xff]
    %v365 = vld [vmem:[#allocation6 + $0x2f0] sm:$0xff]
    %v366 = vld [vmem:[#allocation6 + $0x2f8] sm:$0xff]
    %v367 = vld [vmem:[#allocation6 + $0x300] sm:$0xff]
    %v368 = vld [vmem:[#allocation6 + $0x308] sm:$0xff]
    %v369 = vld [vmem:[#allocation6 + $0x310] sm:$0xff]
    %v370 = vld [vmem:[#allocation6 + $0x318] sm:$0xff]
    %v371 = vld [vmem:[#allocation6 + $0x320] sm:$0xff]
    %v372 = vld [vmem:[#allocation6 + $0x328] sm:$0xff]
    %v373 = vld [vmem:[#allocation6 + $0x330] sm:$0xff]
    %v374 = vld [vmem:[#allocation6 + $0x338] sm:$0xff]
    %v375 = vld [vmem:[#allocation6 + $0x340] sm:$0xff]
    %v376 = vld [vmem:[#allocation6 + $0x348] sm:$0xff]
    %v377 = vld [vmem:[#allocation6 + $0x350] sm:$0xff]
    %v378 = vld [vmem:[#allocation6 + $0x358] sm:$0xff]
    %v379 = vld [vmem:[#allocation6 + $0x360] sm:$0xff]
    %v380 = vld [vmem:[#allocation6 + $0x368] sm:$0xff]
    %v381 = vld [vmem:[#allocation6 + $0x370] sm:$0xff]
    %v382 = vld [vmem:[#allocation6 + $0x378] sm:$0xff]
    %v383 = vld [vmem:[#allocation6 + $0x380] sm:$0xff]
    %v384 = vld [vmem:[#allocation6 + $0x388] sm:$0xff]
    %v385 = vld [vmem:[#allocation6 + $0x390] sm:$0xff]
    %v386 = vld [vmem:[#allocation6 + $0x398] sm:$0xff]
    %v387 = vld [vmem:[#allocation6 + $0x3a0] sm:$0xff]
    %v388 = vld [vmem:[#allocation6 + $0x3a8] sm:$0xff]
    %v389 = vld [vmem:[#allocation6 + $0x3b0] sm:$0xff]
    %v390 = vld [vmem:[#allocation6 + $0x3b8] sm:$0xff]
    %v391 = vld [vmem:[#allocation6 + $0x3c0] sm:$0xff]
    %v392 = vld [vmem:[#allocation6 + $0x3c8] sm:$0xff]
    %v393 = vld [vmem:[#allocation6 + $0x3d0] sm:$0xff]
    %v394 = vld [vmem:[#allocation6 + $0x3d8] sm:$0xff]
    %v395 = vld [vmem:[#allocation6 + $0x3e0] sm:$0xff]
    %v396 = vld [vmem:[#allocation6 + $0x3e8] sm:$0xff]
    %v397 = vld [vmem:[#allocation6 + $0x3f0] sm:$0xff]
    %v398 = vld [vmem:[#allocation6 + $0x3f8] sm:$0xff]
    %v399 = vld [vmem:[#allocation6 + $0x400] sm:$0xff]
    %v400 = vld [vmem:[#allocation6 + $0x408] sm:$0xff]
    %v401 = vld [vmem:[#allocation6 + $0x410] sm:$0xff]
    %v402 = vld [vmem:[#allocation6 + $0x418] sm:$0xff]
    %v403 = vld [vmem:[#allocation6 + $0x420] sm:$0xff]
    %v404 = vld [vmem:[#allocation6 + $0x428] sm:$0xff]
    %v405 = vld [vmem:[#allocation6 + $0x430] sm:$0xff]
    %v406 = vld [vmem:[#allocation6 + $0x438] sm:$0xff]
    %v407 = vld [vmem:[#allocation6 + $0x440] sm:$0xff]
    %v408 = vld [vmem:[#allocation6 + $0x448] sm:$0xff]
    %v409 = vld [vmem:[#allocation6 + $0x450] sm:$0xff]
    %v410 = vld [vmem:[#allocation6 + $0x458] sm:$0xff]
    %v411 = vld [vmem:[#allocation6 + $0x460] sm:$0xff]
    %v412 = vld [vmem:[#allocation6 + $0x468] sm:$0xff]
    %v413 = vld [vmem:[#allocation6 + $0x470] sm:$0xff]
    %v414 = vld [vmem:[#allocation6 + $0x478] sm:$0xff]
    %v415 = vld [vmem:[#allocation6 + $0x480] sm:$0xff]
    %v416 = vld [vmem:[#allocation6 + $0x488] sm:$0xff]
    %v417 = vld [vmem:[#allocation6 + $0x490] sm:$0xff]
    %v418 = vld [vmem:[#allocation6 + $0x498] sm:$0xff]
    %v419 = vld [vmem:[#allocation6 + $0x4a0] sm:$0xff]
    %v420 = vld [vmem:[#allocation6 + $0x4a8] sm:$0xff]
    %v421 = vld [vmem:[#allocation6 + $0x4b0] sm:$0xff]
    %v422 = vld [vmem:[#allocation6 + $0x4b8] sm:$0xff]
    %v423 = vld [vmem:[#allocation6 + $0x4c0] sm:$0xff]
    %v424 = vld [vmem:[#allocation6 + $0x4c8] sm:$0xff]
    %v425 = vld [vmem:[#allocation6 + $0x4d0] sm:$0xff]
    %v426 = vld [vmem:[#allocation6 + $0x4d8] sm:$0xff]
    %v427 = vld [vmem:[#allocation6 + $0x4e0] sm:$0xff]
    %v428 = vld [vmem:[#allocation6 + $0x4e8] sm:$0xff]
    %v429 = vld [vmem:[#allocation6 + $0x4f0] sm:$0xff]
    %v430 = vld [vmem:[#allocation6 + $0x4f8] sm:$0xff]
    %v431 = vld [vmem:[#allocation6 + $0x500] sm:$0xff]
    %v432 = vld [vmem:[#allocation6 + $0x508] sm:$0xff]
    %v433 = vld [vmem:[#allocation6 + $0x510] sm:$0xff]
    %v434 = vld [vmem:[#allocation6 + $0x518] sm:$0xff]
    %v435 = vld [vmem:[#allocation6 + $0x520] sm:$0xff]
    %v436 = vld [vmem:[#allocation6 + $0x528] sm:$0xff]
    %v437 = vld [vmem:[#allocation6 + $0x530] sm:$0xff]
    %v438 = vld [vmem:[#allocation6 + $0x538] sm:$0xff]
    %v439 = vld [vmem:[#allocation6 + $0x540] sm:$0xff]
    %v440 = vld [vmem:[#allocation6 + $0x548] sm:$0xff]
    %v441 = vld [vmem:[#allocation6 + $0x550] sm:$0xff]
    %v442 = vld [vmem:[#allocation6 + $0x558] sm:$0xff]
    %v443 = vld [vmem:[#allocation6 + $0x560] sm:$0xff]
    %v444 = vld [vmem:[#allocation6 + $0x568] sm:$0xff]
    %v445 = vld [vmem:[#allocation6 + $0x570] sm:$0xff]
    %v446 = vld [vmem:[#allocation6 + $0x578] sm:$0xff]
    %v447 = vld [vmem:[#allocation6 + $0x580] sm:$0xff]
    %v448 = vld [vmem:[#allocation6 + $0x588] sm:$0xff]
    %v449 = vld [vmem:[#allocation6 + $0x590] sm:$0xff]
    %v450 = vld [vmem:[#allocation6 + $0x598] sm:$0xff]
    %v451 = vld [vmem:[#allocation6 + $0x5a0] sm:$0xff]
    %v452 = vld [vmem:[#allocation6 + $0x5a8] sm:$0xff]
    %v453 = vld [vmem:[#allocation6 + $0x5b0] sm:$0xff]
    %v454 = vld [vmem:[#allocation6 + $0x5b8] sm:$0xff]
    %v455 = vld [vmem:[#allocation6 + $0x5c0] sm:$0xff]
    %v456 = vld [vmem:[#allocation6 + $0x5c8] sm:$0xff]
    %v457 = vld [vmem:[#allocation6 + $0x5d0] sm:$0xff]
    %v458 = vld [vmem:[#allocation6 + $0x5d8] sm:$0xff]
    %v459 = vld [vmem:[#allocation6 + $0x5e0] sm:$0xff]
    %v460 = vld [vmem:[#allocation6 + $0x5e8] sm:$0xff]
    %v461 = vld [vmem:[#allocation6 + $0x5f0] sm:$0xff]
    %v462 = vld [vmem:[#allocation6 + $0x5f8] sm:$0xff]
    %v463 = vld [vmem:[#allocation6 + $0x600] sm:$0xff]
    %v464 = vld [vmem:[#allocation6 + $0x608] sm:$0xff]
    %v465 = vld [vmem:[#allocation6 + $0x610] sm:$0xff]
    %v466 = vld [vmem:[#allocation6 + $0x618] sm:$0xff]
    %v467 = vld [vmem:[#allocation6 + $0x620] sm:$0xff]
    %v468 = vld [vmem:[#allocation6 + $0x628] sm:$0xff]
    %v469 = vld [vmem:[#allocation6 + $0x630] sm:$0xff]
    %v470 = vld [vmem:[#allocation6 + $0x638] sm:$0xff]
    %v471 = vld [vmem:[#allocation6 + $0x640] sm:$0xff]
    %v472 = vld [vmem:[#allocation6 + $0x648] sm:$0xff]
    %v473 = vld [vmem:[#allocation6 + $0x650] sm:$0xff]
    %v474 = vld [vmem:[#allocation6 + $0x658] sm:$0xff]
    %v475 = vld [vmem:[#allocation6 + $0x660] sm:$0xff]
    %v476 = vld [vmem:[#allocation6 + $0x668] sm:$0xff]
    %v477 = vld [vmem:[#allocation6 + $0x670] sm:$0xff]
    %v478 = vld [vmem:[#allocation6 + $0x678] sm:$0xff]
    %v479 = vld [vmem:[#allocation6 + $0x680] sm:$0xff]
    %v480 = vld [vmem:[#allocation6 + $0x688] sm:$0xff]
    %v481 = vld [vmem:[#allocation6 + $0x690] sm:$0xff]
    %v482 = vld [vmem:[#allocation6 + $0x698] sm:$0xff]
    %v483 = vld [vmem:[#allocation6 + $0x6a0] sm:$0xff]
    %v484 = vld [vmem:[#allocation6 + $0x6a8] sm:$0xff]
    %v485 = vld [vmem:[#allocation6 + $0x6b0] sm:$0xff]
    %v486 = vld [vmem:[#allocation6 + $0x6b8] sm:$0xff]
    %v487 = vld [vmem:[#allocation6 + $0x6c0] sm:$0xff]
    %v488 = vld [vmem:[#allocation6 + $0x6c8] sm:$0xff]
    %v489 = vld [vmem:[#allocation6 + $0x6d0] sm:$0xff]
    %v490 = vld [vmem:[#allocation6 + $0x6d8] sm:$0xff]
    %v491 = vld [vmem:[#allocation6 + $0x6e0] sm:$0xff]
    %v492 = vld [vmem:[#allocation6 + $0x6e8] sm:$0xff]
    %v493 = vld [vmem:[#allocation6 + $0x6f0] sm:$0xff]
    %v494 = vld [vmem:[#allocation6 + $0x6f8] sm:$0xff]
    %v495 = vld [vmem:[#allocation6 + $0x700] sm:$0xff]
    %v496 = vld [vmem:[#allocation6 + $0x708] sm:$0xff]
    %v497 = vld [vmem:[#allocation6 + $0x710] sm:$0xff]
    %v498 = vld [vmem:[#allocation6 + $0x718] sm:$0xff]
    %v499 = vld [vmem:[#allocation6 + $0x720] sm:$0xff]
    %v500 = vld [vmem:[#allocation6 + $0x728] sm:$0xff]
    %v501 = vld [vmem:[#allocation6 + $0x730] sm:$0xff]
    %v502 = vld [vmem:[#allocation6 + $0x738] sm:$0xff]
    %v503 = vld [vmem:[#allocation6 + $0x740] sm:$0xff]
    %v504 = vld [vmem:[#allocation6 + $0x748] sm:$0xff]
    %v505 = vld [vmem:[#allocation6 + $0x750] sm:$0xff]
    %v506 = vld [vmem:[#allocation6 + $0x758] sm:$0xff]
    %v507 = vld [vmem:[#allocation6 + $0x760] sm:$0xff]
    %v508 = vld [vmem:[#allocation6 + $0x768] sm:$0xff]
    %v509 = vld [vmem:[#allocation6 + $0x770] sm:$0xff]
    %v510 = vld [vmem:[#allocation6 + $0x778] sm:$0xff]
    %v511 = vld [vmem:[#allocation6 + $0x780] sm:$0xff]
    %v512 = vld [vmem:[#allocation6 + $0x788] sm:$0xff]
    %v513 = vld [vmem:[#allocation6 + $0x790] sm:$0xff]
    %v514 = vld [vmem:[#allocation6 + $0x798] sm:$0xff]
    %v515 = vld [vmem:[#allocation6 + $0x7a0] sm:$0xff]
    %v516 = vld [vmem:[#allocation6 + $0x7a8] sm:$0xff]
    %v517 = vld [vmem:[#allocation6 + $0x7b0] sm:$0xff]
    %v518 = vld [vmem:[#allocation6 + $0x7b8] sm:$0xff]
    %v519 = vld [vmem:[#allocation6 + $0x7c0] sm:$0xff]
    %v520 = vld [vmem:[#allocation6 + $0x7c8] sm:$0xff]
    %v521 = vld [vmem:[#allocation6 + $0x7d0] sm:$0xff]
    %v522 = vld [vmem:[#allocation6 + $0x7d8] sm:$0xff]
    %v523 = vld [vmem:[#allocation6 + $0x7e0] sm:$0xff]
    %v524 = vld [vmem:[#allocation6 + $0x7e8] sm:$0xff]
    %v525 = vld [vmem:[#allocation6 + $0x7f0] sm:$0xff]
    %v526 = vld [vmem:[#allocation6 + $0x7f8] sm:$0xff]
    %v529 = vunpack.c.l.b16 %v269
    %v530 = vunpack.c.h.b16 %v269
    %v531 = vunpack.c.l.b16 %v270
    %v532 = vunpack.c.h.b16 %v270
    %v533 = vpack.c.b16 %v531, %v529
    %v534 = vpack.c.b16 %v532, %v530
    %v793 = vunpack.c.l.b16 %v271
    %v794 = vunpack.c.h.b16 %v271
    %v795 = vunpack.c.l.b16 %v272
    %v796 = vunpack.c.h.b16 %v272
    %v797 = vunpack.c.l.b16 %v273
    %v798 = vunpack.c.h.b16 %v273
    %v799 = vunpack.c.l.b16 %v274
    %v800 = vunpack.c.h.b16 %v274
    %v801 = vunpack.c.l.b16 %v275
    %v802 = vunpack.c.h.b16 %v275
    %v803 = vunpack.c.l.b16 %v276
    %v804 = vunpack.c.h.b16 %v276
    %v805 = vunpack.c.l.b16 %v277
    %v806 = vunpack.c.h.b16 %v277
    %v807 = vunpack.c.l.b16 %v278
    %v808 = vunpack.c.h.b16 %v278
    %v809 = vunpack.c.l.b16 %v279
    %v810 = vunpack.c.h.b16 %v279
    %v811 = vunpack.c.l.b16 %v280
    %v812 = vunpack.c.h.b16 %v280
    %v813 = vunpack.c.l.b16 %v281
    %v814 = vunpack.c.h.b16 %v281
    %v815 = vunpack.c.l.b16 %v282
    %v816 = vunpack.c.h.b16 %v282
    %v817 = vunpack.c.l.b16 %v283
    %v818 = vunpack.c.h.b16 %v283
    %v819 = vunpack.c.l.b16 %v284
    %v820 = vunpack.c.h.b16 %v284
    %v821 = vunpack.c.l.b16 %v285
    %v822 = vunpack.c.h.b16 %v285
    %v823 = vunpack.c.l.b16 %v286
    %v824 = vunpack.c.h.b16 %v286
    %v825 = vunpack.c.l.b16 %v287
    %v826 = vunpack.c.h.b16 %v287
    %v827 = vunpack.c.l.b16 %v288
    %v828 = vunpack.c.h.b16 %v288
    %v829 = vunpack.c.l.b16 %v289
    %v830 = vunpack.c.h.b16 %v289
    %v831 = vunpack.c.l.b16 %v290
    %v832 = vunpack.c.h.b16 %v290
    %v833 = vunpack.c.l.b16 %v291
    %v834 = vunpack.c.h.b16 %v291
    %v835 = vunpack.c.l.b16 %v292
    %v836 = vunpack.c.h.b16 %v292
    %v837 = vunpack.c.l.b16 %v293
    %v838 = vunpack.c.h.b16 %v293
    %v839 = vunpack.c.l.b16 %v294
    %v840 = vunpack.c.h.b16 %v294
    %v841 = vunpack.c.l.b16 %v295
    %v842 = vunpack.c.h.b16 %v295
    %v843 = vunpack.c.l.b16 %v296
    %v844 = vunpack.c.h.b16 %v296
    %v845 = vunpack.c.l.b16 %v297
    %v846 = vunpack.c.h.b16 %v297
    %v847 = vunpack.c.l.b16 %v298
    %v848 = vunpack.c.h.b16 %v298
    %v849 = vunpack.c.l.b16 %v299
    %v850 = vunpack.c.h.b16 %v299
    %v851 = vunpack.c.l.b16 %v300
    %v852 = vunpack.c.h.b16 %v300
    %v853 = vunpack.c.l.b16 %v301
    %v854 = vunpack.c.h.b16 %v301
    %v855 = vunpack.c.l.b16 %v302
    %v856 = vunpack.c.h.b16 %v302
    %v857 = vunpack.c.l.b16 %v303
    %v858 = vunpack.c.h.b16 %v303
    %v859 = vunpack.c.l.b16 %v304
    %v860 = vunpack.c.h.b16 %v304
    %v861 = vunpack.c.l.b16 %v305
    %v862 = vunpack.c.h.b16 %v305
    %v863 = vunpack.c.l.b16 %v306
    %v864 = vunpack.c.h.b16 %v306
    %v865 = vunpack.c.l.b16 %v307
    %v866 = vunpack.c.h.b16 %v307
    %v867 = vunpack.c.l.b16 %v308
    %v868 = vunpack.c.h.b16 %v308
    %v869 = vunpack.c.l.b16 %v309
    %v870 = vunpack.c.h.b16 %v309
    %v871 = vunpack.c.l.b16 %v310
    %v872 = vunpack.c.h.b16 %v310
    %v873 = vunpack.c.l.b16 %v311
    %v874 = vunpack.c.h.b16 %v311
    %v875 = vunpack.c.l.b16 %v312
    %v876 = vunpack.c.h.b16 %v312
    %v877 = vunpack.c.l.b16 %v313
    %v878 = vunpack.c.h.b16 %v313
    %v879 = vunpack.c.l.b16 %v314
    %v880 = vunpack.c.h.b16 %v314
    %v881 = vunpack.c.l.b16 %v315
    %v882 = vunpack.c.h.b16 %v315
    %v883 = vunpack.c.l.b16 %v316
    %v884 = vunpack.c.h.b16 %v316
    %v885 = vunpack.c.l.b16 %v317
    %v886 = vunpack.c.h.b16 %v317
    %v887 = vunpack.c.l.b16 %v318
    %v888 = vunpack.c.h.b16 %v318
    %v889 = vunpack.c.l.b16 %v319
    %v890 = vunpack.c.h.b16 %v319
    %v891 = vunpack.c.l.b16 %v320
    %v892 = vunpack.c.h.b16 %v320
    %v893 = vunpack.c.l.b16 %v321
    %v894 = vunpack.c.h.b16 %v321
    %v895 = vunpack.c.l.b16 %v322
    %v896 = vunpack.c.h.b16 %v322
    %v897 = vunpack.c.l.b16 %v323
    %v898 = vunpack.c.h.b16 %v323
    %v899 = vunpack.c.l.b16 %v324
    %v900 = vunpack.c.h.b16 %v324
    %v901 = vunpack.c.l.b16 %v325
    %v902 = vunpack.c.h.b16 %v325
    %v903 = vunpack.c.l.b16 %v326
    %v904 = vunpack.c.h.b16 %v326
    %v905 = vunpack.c.l.b16 %v327
    %v906 = vunpack.c.h.b16 %v327
    %v907 = vunpack.c.l.b16 %v328
    %v908 = vunpack.c.h.b16 %v328
    %v909 = vunpack.c.l.b16 %v329
    %v910 = vunpack.c.h.b16 %v329
    %v911 = vunpack.c.l.b16 %v330
    %v912 = vunpack.c.h.b16 %v330
    %v913 = vunpack.c.l.b16 %v331
    %v914 = vunpack.c.h.b16 %v331
    %v915 = vunpack.c.l.b16 %v332
    %v916 = vunpack.c.h.b16 %v332
    %v917 = vunpack.c.l.b16 %v333
    %v918 = vunpack.c.h.b16 %v333
    %v919 = vunpack.c.l.b16 %v334
    %v920 = vunpack.c.h.b16 %v334
    %v921 = vunpack.c.l.b16 %v335
    %v922 = vunpack.c.h.b16 %v335
    %v923 = vunpack.c.l.b16 %v336
    %v924 = vunpack.c.h.b16 %v336
    %v925 = vunpack.c.l.b16 %v337
    %v926 = vunpack.c.h.b16 %v337
    %v927 = vunpack.c.l.b16 %v338
    %v928 = vunpack.c.h.b16 %v338
    %v929 = vunpack.c.l.b16 %v339
    %v930 = vunpack.c.h.b16 %v339
    %v931 = vunpack.c.l.b16 %v340
    %v932 = vunpack.c.h.b16 %v340
    %v933 = vunpack.c.l.b16 %v341
    %v934 = vunpack.c.h.b16 %v341
    %v935 = vunpack.c.l.b16 %v342
    %v936 = vunpack.c.h.b16 %v342
    %v937 = vunpack.c.l.b16 %v343
    %v938 = vunpack.c.h.b16 %v343
    %v939 = vunpack.c.l.b16 %v344
    %v940 = vunpack.c.h.b16 %v344
    %v941 = vunpack.c.l.b16 %v345
    %v942 = vunpack.c.h.b16 %v345
    %v943 = vunpack.c.l.b16 %v346
    %v944 = vunpack.c.h.b16 %v346
    %v945 = vunpack.c.l.b16 %v347
    %v946 = vunpack.c.h.b16 %v347
    %v947 = vunpack.c.l.b16 %v348
    %v948 = vunpack.c.h.b16 %v348
    %v949 = vunpack.c.l.b16 %v349
    %v950 = vunpack.c.h.b16 %v349
    %v951 = vunpack.c.l.b16 %v350
    %v952 = vunpack.c.h.b16 %v350
    %v953 = vunpack.c.l.b16 %v351
    %v954 = vunpack.c.h.b16 %v351
    %v955 = vunpack.c.l.b16 %v352
    %v956 = vunpack.c.h.b16 %v352
    %v957 = vunpack.c.l.b16 %v353
    %v958 = vunpack.c.h.b16 %v353
    %v959 = vunpack.c.l.b16 %v354
    %v960 = vunpack.c.h.b16 %v354
    %v961 = vunpack.c.l.b16 %v355
    %v962 = vunpack.c.h.b16 %v355
    %v963 = vunpack.c.l.b16 %v356
    %v964 = vunpack.c.h.b16 %v356
    %v965 = vunpack.c.l.b16 %v357
    %v966 = vunpack.c.h.b16 %v357
    %v967 = vunpack.c.l.b16 %v358
    %v968 = vunpack.c.h.b16 %v358
    %v969 = vunpack.c.l.b16 %v359
    %v970 = vunpack.c.h.b16 %v359
    %v971 = vunpack.c.l.b16 %v360
    %v972 = vunpack.c.h.b16 %v360
    %v973 = vunpack.c.l.b16 %v361
    %v974 = vunpack.c.h.b16 %v361
    %v975 = vunpack.c.l.b16 %v362
    %v976 = vunpack.c.h.b16 %v362
    %v977 = vunpack.c.l.b16 %v363
    %v978 = vunpack.c.h.b16 %v363
    %v979 = vunpack.c.l.b16 %v364
    %v980 = vunpack.c.h.b16 %v364
    %v981 = vunpack.c.l.b16 %v365
    %v982 = vunpack.c.h.b16 %v365
    %v983 = vunpack.c.l.b16 %v366
    %v984 = vunpack.c.h.b16 %v366
    %v985 = vunpack.c.l.b16 %v367
    %v986 = vunpack.c.h.b16 %v367
    %v987 = vunpack.c.l.b16 %v368
    %v988 = vunpack.c.h.b16 %v368
    %v989 = vunpack.c.l.b16 %v369
    %v990 = vunpack.c.h.b16 %v369
    %v991 = vunpack.c.l.b16 %v370
    %v992 = vunpack.c.h.b16 %v370
    %v993 = vunpack.c.l.b16 %v371
    %v994 = vunpack.c.h.b16 %v371
    %v995 = vunpack.c.l.b16 %v372
    %v996 = vunpack.c.h.b16 %v372
    %v997 = vunpack.c.l.b16 %v373
    %v998 = vunpack.c.h.b16 %v373
    %v999 = vunpack.c.l.b16 %v374
    %v1000 = vunpack.c.h.b16 %v374
    %v1001 = vunpack.c.l.b16 %v375
    %v1002 = vunpack.c.h.b16 %v375
    %v1003 = vunpack.c.l.b16 %v376
    %v1004 = vunpack.c.h.b16 %v376
    %v1005 = vunpack.c.l.b16 %v377
    %v1006 = vunpack.c.h.b16 %v377
    %v1007 = vunpack.c.l.b16 %v378
    %v1008 = vunpack.c.h.b16 %v378
    %v1009 = vunpack.c.l.b16 %v379
    %v1010 = vunpack.c.h.b16 %v379
    %v1011 = vunpack.c.l.b16 %v380
    %v1012 = vunpack.c.h.b16 %v380
    %v1013 = vunpack.c.l.b16 %v381
    %v1014 = vunpack.c.h.b16 %v381
    %v1015 = vunpack.c.l.b16 %v382
    %v1016 = vunpack.c.h.b16 %v382
    %v1017 = vunpack.c.l.b16 %v383
    %v1018 = vunpack.c.h.b16 %v383
    %v1019 = vunpack.c.l.b16 %v384
    %v1020 = vunpack.c.h.b16 %v384
    %v1021 = vunpack.c.l.b16 %v385
    %v1022 = vunpack.c.h.b16 %v385
    %v1023 = vunpack.c.l.b16 %v386
    %v1024 = vunpack.c.h.b16 %v386
    %v1025 = vunpack.c.l.b16 %v387
    %v1026 = vunpack.c.h.b16 %v387
    %v1027 = vunpack.c.l.b16 %v388
    %v1028 = vunpack.c.h.b16 %v388
    %v1029 = vunpack.c.l.b16 %v389
    %v1030 = vunpack.c.h.b16 %v389
    %v1031 = vunpack.c.l.b16 %v390
    %v1032 = vunpack.c.h.b16 %v390
    %v1033 = vunpack.c.l.b16 %v391
    %v1034 = vunpack.c.h.b16 %v391
    %v1035 = vunpack.c.l.b16 %v392
    %v1036 = vunpack.c.h.b16 %v392
    %v1037 = vunpack.c.l.b16 %v393
    %v1038 = vunpack.c.h.b16 %v393
    %v1039 = vunpack.c.l.b16 %v394
    %v1040 = vunpack.c.h.b16 %v394
    %v1041 = vunpack.c.l.b16 %v395
    %v1042 = vunpack.c.h.b16 %v395
    %v1043 = vunpack.c.l.b16 %v396
    %v1044 = vunpack.c.h.b16 %v396
    %v1045 = vunpack.c.l.b16 %v397
    %v1046 = vunpack.c.h.b16 %v397
    %v1047 = vunpack.c.l.b16 %v398
    %v1048 = vunpack.c.h.b16 %v398
    %v1049 = vunpack.c.l.b16 %v399
    %v1050 = vunpack.c.h.b16 %v399
    %v1051 = vunpack.c.l.b16 %v400
    %v1052 = vunpack.c.h.b16 %v400
    %v1053 = vunpack.c.l.b16 %v401
    %v1054 = vunpack.c.h.b16 %v401
    %v1055 = vunpack.c.l.b16 %v402
    %v1056 = vunpack.c.h.b16 %v402
    %v1057 = vunpack.c.l.b16 %v403
    %v1058 = vunpack.c.h.b16 %v403
    %v1059 = vunpack.c.l.b16 %v404
    %v1060 = vunpack.c.h.b16 %v404
    %v1061 = vunpack.c.l.b16 %v405
    %v1062 = vunpack.c.h.b16 %v405
    %v1063 = vunpack.c.l.b16 %v406
    %v1064 = vunpack.c.h.b16 %v406
    %v1065 = vunpack.c.l.b16 %v407
    %v1066 = vunpack.c.h.b16 %v407
    %v1067 = vunpack.c.l.b16 %v408
    %v1068 = vunpack.c.h.b16 %v408
    %v1069 = vunpack.c.l.b16 %v409
    %v1070 = vunpack.c.h.b16 %v409
    %v1071 = vunpack.c.l.b16 %v410
    %v1072 = vunpack.c.h.b16 %v410
    %v1073 = vunpack.c.l.b16 %v411
    %v1074 = vunpack.c.h.b16 %v411
    %v1075 = vunpack.c.l.b16 %v412
    %v1076 = vunpack.c.h.b16 %v412
    %v1077 = vunpack.c.l.b16 %v413
    %v1078 = vunpack.c.h.b16 %v413
    %v1079 = vunpack.c.l.b16 %v414
    %v1080 = vunpack.c.h.b16 %v414
    %v1081 = vunpack.c.l.b16 %v415
    %v1082 = vunpack.c.h.b16 %v415
    %v1083 = vunpack.c.l.b16 %v416
    %v1084 = vunpack.c.h.b16 %v416
    %v1085 = vunpack.c.l.b16 %v417
    %v1086 = vunpack.c.h.b16 %v417
    %v1087 = vunpack.c.l.b16 %v418
    %v1088 = vunpack.c.h.b16 %v418
    %v1089 = vunpack.c.l.b16 %v419
    %v1090 = vunpack.c.h.b16 %v419
    %v1091 = vunpack.c.l.b16 %v420
    %v1092 = vunpack.c.h.b16 %v420
    %v1093 = vunpack.c.l.b16 %v421
    %v1094 = vunpack.c.h.b16 %v421
    %v1095 = vunpack.c.l.b16 %v422
    %v1096 = vunpack.c.h.b16 %v422
    %v1097 = vunpack.c.l.b16 %v423
    %v1098 = vunpack.c.h.b16 %v423
    %v1099 = vunpack.c.l.b16 %v424
    %v1100 = vunpack.c.h.b16 %v424
    %v1101 = vunpack.c.l.b16 %v425
    %v1102 = vunpack.c.h.b16 %v425
    %v1103 = vunpack.c.l.b16 %v426
    %v1104 = vunpack.c.h.b16 %v426
    %v1105 = vunpack.c.l.b16 %v427
    %v1106 = vunpack.c.h.b16 %v427
    %v1107 = vunpack.c.l.b16 %v428
    %v1108 = vunpack.c.h.b16 %v428
    %v1109 = vunpack.c.l.b16 %v429
    %v1110 = vunpack.c.h.b16 %v429
    %v1111 = vunpack.c.l.b16 %v430
    %v1112 = vunpack.c.h.b16 %v430
    %v1113 = vunpack.c.l.b16 %v431
    %v1114 = vunpack.c.h.b16 %v431
    %v1115 = vunpack.c.l.b16 %v432
    %v1116 = vunpack.c.h.b16 %v432
    %v1117 = vunpack.c.l.b16 %v433
    %v1118 = vunpack.c.h.b16 %v433
    %v1119 = vunpack.c.l.b16 %v434
    %v1120 = vunpack.c.h.b16 %v434
    %v1121 = vunpack.c.l.b16 %v435
    %v1122 = vunpack.c.h.b16 %v435
    %v1123 = vunpack.c.l.b16 %v436
    %v1124 = vunpack.c.h.b16 %v436
    %v1125 = vunpack.c.l.b16 %v437
    %v1126 = vunpack.c.h.b16 %v437
    %v1127 = vunpack.c.l.b16 %v438
    %v1128 = vunpack.c.h.b16 %v438
    %v1129 = vunpack.c.l.b16 %v439
    %v1130 = vunpack.c.h.b16 %v439
    %v1131 = vunpack.c.l.b16 %v440
    %v1132 = vunpack.c.h.b16 %v440
    %v1133 = vunpack.c.l.b16 %v441
    %v1134 = vunpack.c.h.b16 %v441
    %v1135 = vunpack.c.l.b16 %v442
    %v1136 = vunpack.c.h.b16 %v442
    %v1137 = vunpack.c.l.b16 %v443
    %v1138 = vunpack.c.h.b16 %v443
    %v1139 = vunpack.c.l.b16 %v444
    %v1140 = vunpack.c.h.b16 %v444
    %v1141 = vunpack.c.l.b16 %v445
    %v1142 = vunpack.c.h.b16 %v445
    %v1143 = vunpack.c.l.b16 %v446
    %v1144 = vunpack.c.h.b16 %v446
    %v1145 = vunpack.c.l.b16 %v447
    %v1146 = vunpack.c.h.b16 %v447
    %v1147 = vunpack.c.l.b16 %v448
    %v1148 = vunpack.c.h.b16 %v448
    %v1149 = vunpack.c.l.b16 %v449
    %v1150 = vunpack.c.h.b16 %v449
    %v1151 = vunpack.c.l.b16 %v450
    %v1152 = vunpack.c.h.b16 %v450
    %v1153 = vunpack.c.l.b16 %v451
    %v1154 = vunpack.c.h.b16 %v451
    %v1155 = vunpack.c.l.b16 %v452
    %v1156 = vunpack.c.h.b16 %v452
    %v1157 = vunpack.c.l.b16 %v453
    %v1158 = vunpack.c.h.b16 %v453
    %v1159 = vunpack.c.l.b16 %v454
    %v1160 = vunpack.c.h.b16 %v454
    %v1161 = vunpack.c.l.b16 %v455
    %v1162 = vunpack.c.h.b16 %v455
    %v1163 = vunpack.c.l.b16 %v456
    %v1164 = vunpack.c.h.b16 %v456
    %v1165 = vunpack.c.l.b16 %v457
    %v1166 = vunpack.c.h.b16 %v457
    %v1167 = vunpack.c.l.b16 %v458
    %v1168 = vunpack.c.h.b16 %v458
    %v1169 = vunpack.c.l.b16 %v459
    %v1170 = vunpack.c.h.b16 %v459
    %v1171 = vunpack.c.l.b16 %v460
    %v1172 = vunpack.c.h.b16 %v460
    %v1173 = vunpack.c.l.b16 %v461
    %v1174 = vunpack.c.h.b16 %v461
    %v1175 = vunpack.c.l.b16 %v462
    %v1176 = vunpack.c.h.b16 %v462
    %v1177 = vunpack.c.l.b16 %v463
    %v1178 = vunpack.c.h.b16 %v463
    %v1179 = vunpack.c.l.b16 %v464
    %v1180 = vunpack.c.h.b16 %v464
    %v1181 = vunpack.c.l.b16 %v465
    %v1182 = vunpack.c.h.b16 %v465
    %v1183 = vunpack.c.l.b16 %v466
    %v1184 = vunpack.c.h.b16 %v466
    %v1185 = vunpack.c.l.b16 %v467
    %v1186 = vunpack.c.h.b16 %v467
    %v1187 = vunpack.c.l.b16 %v468
    %v1188 = vunpack.c.h.b16 %v468
    %v1189 = vunpack.c.l.b16 %v469
    %v1190 = vunpack.c.h.b16 %v469
    %v1191 = vunpack.c.l.b16 %v470
    %v1192 = vunpack.c.h.b16 %v470
    %v1193 = vunpack.c.l.b16 %v471
    %v1194 = vunpack.c.h.b16 %v471
    %v1195 = vunpack.c.l.b16 %v472
    %v1196 = vunpack.c.h.b16 %v472
    %v1197 = vunpack.c.l.b16 %v473
    %v1198 = vunpack.c.h.b16 %v473
    %v1199 = vunpack.c.l.b16 %v474
    %v1200 = vunpack.c.h.b16 %v474
    %v1201 = vunpack.c.l.b16 %v475
    %v1202 = vunpack.c.h.b16 %v475
    %v1203 = vunpack.c.l.b16 %v476
    %v1204 = vunpack.c.h.b16 %v476
    %v1205 = vunpack.c.l.b16 %v477
    %v1206 = vunpack.c.h.b16 %v477
    %v1207 = vunpack.c.l.b16 %v478
    %v1208 = vunpack.c.h.b16 %v478
    %v1209 = vunpack.c.l.b16 %v479
    %v1210 = vunpack.c.h.b16 %v479
    %v1211 = vunpack.c.l.b16 %v480
    %v1212 = vunpack.c.h.b16 %v480
    %v1213 = vunpack.c.l.b16 %v481
    %v1214 = vunpack.c.h.b16 %v481
    %v1215 = vunpack.c.l.b16 %v482
    %v1216 = vunpack.c.h.b16 %v482
    %v1217 = vunpack.c.l.b16 %v483
    %v1218 = vunpack.c.h.b16 %v483
    %v1219 = vunpack.c.l.b16 %v484
    %v1220 = vunpack.c.h.b16 %v484
    %v1221 = vunpack.c.l.b16 %v485
    %v1222 = vunpack.c.h.b16 %v485
    %v1223 = vunpack.c.l.b16 %v486
    %v1224 = vunpack.c.h.b16 %v486
    %v1225 = vunpack.c.l.b16 %v487
    %v1226 = vunpack.c.h.b16 %v487
    %v1227 = vunpack.c.l.b16 %v488
    %v1228 = vunpack.c.h.b16 %v488
    %v1229 = vunpack.c.l.b16 %v489
    %v1230 = vunpack.c.h.b16 %v489
    %v1231 = vunpack.c.l.b16 %v490
    %v1232 = vunpack.c.h.b16 %v490
    %v1233 = vunpack.c.l.b16 %v491
    %v1234 = vunpack.c.h.b16 %v491
    %v1235 = vunpack.c.l.b16 %v492
    %v1236 = vunpack.c.h.b16 %v492
    %v1237 = vunpack.c.l.b16 %v493
    %v1238 = vunpack.c.h.b16 %v493
    %v1239 = vunpack.c.l.b16 %v494
    %v1240 = vunpack.c.h.b16 %v494
    %v1241 = vunpack.c.l.b16 %v495
    %v1242 = vunpack.c.h.b16 %v495
    %v1243 = vunpack.c.l.b16 %v496
    %v1244 = vunpack.c.h.b16 %v496
    %v1245 = vunpack.c.l.b16 %v497
    %v1246 = vunpack.c.h.b16 %v497
    %v1247 = vunpack.c.l.b16 %v498
    %v1248 = vunpack.c.h.b16 %v498
    %v1249 = vunpack.c.l.b16 %v499
    %v1250 = vunpack.c.h.b16 %v499
    %v1251 = vunpack.c.l.b16 %v500
    %v1252 = vunpack.c.h.b16 %v500
    %v1253 = vunpack.c.l.b16 %v501
    %v1254 = vunpack.c.h.b16 %v501
    %v1255 = vunpack.c.l.b16 %v502
    %v1256 = vunpack.c.h.b16 %v502
    %v1257 = vunpack.c.l.b16 %v503
    %v1258 = vunpack.c.h.b16 %v503
    %v1259 = vunpack.c.l.b16 %v504
    %v1260 = vunpack.c.h.b16 %v504
    %v1261 = vunpack.c.l.b16 %v505
    %v1262 = vunpack.c.h.b16 %v505
    %v1263 = vunpack.c.l.b16 %v506
    %v1264 = vunpack.c.h.b16 %v506
    %v1265 = vunpack.c.l.b16 %v507
    %v1266 = vunpack.c.h.b16 %v507
    %v1267 = vunpack.c.l.b16 %v508
    %v1268 = vunpack.c.h.b16 %v508
    %v1269 = vunpack.c.l.b16 %v509
    %v1270 = vunpack.c.h.b16 %v509
    %v1271 = vunpack.c.l.b16 %v510
    %v1272 = vunpack.c.h.b16 %v510
    %v1273 = vunpack.c.l.b16 %v511
    %v1274 = vunpack.c.h.b16 %v511
    %v1275 = vunpack.c.l.b16 %v512
    %v1276 = vunpack.c.h.b16 %v512
    %v1277 = vunpack.c.l.b16 %v513
    %v1278 = vunpack.c.h.b16 %v513
    %v1279 = vunpack.c.l.b16 %v514
    %v1280 = vunpack.c.h.b16 %v514
    %v1281 = vunpack.c.l.b16 %v515
    %v1282 = vunpack.c.h.b16 %v515
    %v1283 = vunpack.c.l.b16 %v516
    %v1284 = vunpack.c.h.b16 %v516
    %v1285 = vunpack.c.l.b16 %v517
    %v1286 = vunpack.c.h.b16 %v517
    %v1287 = vunpack.c.l.b16 %v518
    %v1288 = vunpack.c.h.b16 %v518
    %v1289 = vunpack.c.l.b16 %v519
    %v1290 = vunpack.c.h.b16 %v519
    %v1291 = vunpack.c.l.b16 %v520
    %v1292 = vunpack.c.h.b16 %v520
    %v1293 = vunpack.c.l.b16 %v521
    %v1294 = vunpack.c.h.b16 %v521
    %v1295 = vunpack.c.l.b16 %v522
    %v1296 = vunpack.c.h.b16 %v522
    %v1297 = vunpack.c.l.b16 %v523
    %v1298 = vunpack.c.h.b16 %v523
    %v1299 = vunpack.c.l.b16 %v524
    %v1300 = vunpack.c.h.b16 %v524
    %v1301 = vunpack.c.l.b16 %v525
    %v1302 = vunpack.c.h.b16 %v525
    %v1303 = vunpack.c.l.b16 %v526
    %v1304 = vunpack.c.h.b16 %v526
    %v1305 = vpack.c.b16 %v809, %v793
    %v1306 = vpack.c.b16 %v810, %v794
    %v1307 = vpack.c.b16 %v811, %v795
    %v1308 = vpack.c.b16 %v812, %v796
    %v1309 = vpack.c.b16 %v813, %v797
    %v1310 = vpack.c.b16 %v814, %v798
    %v1311 = vpack.c.b16 %v815, %v799
    %v1312 = vpack.c.b16 %v816, %v800
    %v1313 = vpack.c.b16 %v817, %v801
    %v1314 = vpack.c.b16 %v818, %v802
    %v1315 = vpack.c.b16 %v819, %v803
    %v1316 = vpack.c.b16 %v820, %v804
    %v1317 = vpack.c.b16 %v821, %v805
    %v1318 = vpack.c.b16 %v822, %v806
    %v1319 = vpack.c.b16 %v823, %v807
    %v1320 = vpack.c.b16 %v824, %v808
    %v1321 = vpack.c.b16 %v841, %v825
    %v1322 = vpack.c.b16 %v842, %v826
    %v1323 = vpack.c.b16 %v843, %v827
    %v1324 = vpack.c.b16 %v844, %v828
    %v1325 = vpack.c.b16 %v845, %v829
    %v1326 = vpack.c.b16 %v846, %v830
    %v1327 = vpack.c.b16 %v847, %v831
    %v1328 = vpack.c.b16 %v848, %v832
    %v1329 = vpack.c.b16 %v849, %v833
    %v1330 = vpack.c.b16 %v850, %v834
    %v1331 = vpack.c.b16 %v851, %v835
    %v1332 = vpack.c.b16 %v852, %v836
    %v1333 = vpack.c.b16 %v853, %v837
    %v1334 = vpack.c.b16 %v854, %v838
    %v1335 = vpack.c.b16 %v855, %v839
    %v1336 = vpack.c.b16 %v856, %v840
    %v1337 = vpack.c.b16 %v873, %v857
    %v1338 = vpack.c.b16 %v874, %v858
    %v1339 = vpack.c.b16 %v875, %v859
    %v1340 = vpack.c.b16 %v876, %v860
    %v1341 = vpack.c.b16 %v877, %v861
    %v1342 = vpack.c.b16 %v878, %v862
    %v1343 = vpack.c.b16 %v879, %v863
    %v1344 = vpack.c.b16 %v880, %v864
    %v1345 = vpack.c.b16 %v881, %v865
    %v1346 = vpack.c.b16 %v882, %v866
    %v1347 = vpack.c.b16 %v883, %v867
    %v1348 = vpack.c.b16 %v884, %v868
    %v1349 = vpack.c.b16 %v885, %v869
    %v1350 = vpack.c.b16 %v886, %v870
    %v1351 = vpack.c.b16 %v887, %v871
    %v1352 = vpack.c.b16 %v888, %v872
    %v1353 = vpack.c.b16 %v905, %v889
    %v1354 = vpack.c.b16 %v906, %v890
    %v1355 = vpack.c.b16 %v907, %v891
    %v1356 = vpack.c.b16 %v908, %v892
    %v1357 = vpack.c.b16 %v909, %v893
    %v1358 = vpack.c.b16 %v910, %v894
    %v1359 = vpack.c.b16 %v911, %v895
    %v1360 = vpack.c.b16 %v912, %v896
    %v1361 = vpack.c.b16 %v913, %v897
    %v1362 = vpack.c.b16 %v914, %v898
    %v1363 = vpack.c.b16 %v915, %v899
    %v1364 = vpack.c.b16 %v916, %v900
    %v1365 = vpack.c.b16 %v917, %v901
    %v1366 = vpack.c.b16 %v918, %v902
    %v1367 = vpack.c.b16 %v919, %v903
    %v1368 = vpack.c.b16 %v920, %v904
    %v1369 = vpack.c.b16 %v937, %v921
    %v1370 = vpack.c.b16 %v938, %v922
    %v1371 = vpack.c.b16 %v939, %v923
    %v1372 = vpack.c.b16 %v940, %v924
    %v1373 = vpack.c.b16 %v941, %v925
    %v1374 = vpack.c.b16 %v942, %v926
    %v1375 = vpack.c.b16 %v943, %v927
    %v1376 = vpack.c.b16 %v944, %v928
    %v1377 = vpack.c.b16 %v945, %v929
    %v1378 = vpack.c.b16 %v946, %v930
    %v1379 = vpack.c.b16 %v947, %v931
    %v1380 = vpack.c.b16 %v948, %v932
    %v1381 = vpack.c.b16 %v949, %v933
    %v1382 = vpack.c.b16 %v950, %v934
    %v1383 = vpack.c.b16 %v951, %v935
    %v1384 = vpack.c.b16 %v952, %v936
    %v1385 = vpack.c.b16 %v969, %v953
    %v1386 = vpack.c.b16 %v970, %v954
    %v1387 = vpack.c.b16 %v971, %v955
    %v1388 = vpack.c.b16 %v972, %v956
    %v1389 = vpack.c.b16 %v973, %v957
    %v1390 = vpack.c.b16 %v974, %v958
    %v1391 = vpack.c.b16 %v975, %v959
    %v1392 = vpack.c.b16 %v976, %v960
    %v1393 = vpack.c.b16 %v977, %v961
    %v1394 = vpack.c.b16 %v978, %v962
    %v1395 = vpack.c.b16 %v979, %v963
    %v1396 = vpack.c.b16 %v980, %v964
    %v1397 = vpack.c.b16 %v981, %v965
    %v1398 = vpack.c.b16 %v982, %v966
    %v1399 = vpack.c.b16 %v983, %v967
    %v1400 = vpack.c.b16 %v984, %v968
    %v1401 = vpack.c.b16 %v1001, %v985
    %v1402 = vpack.c.b16 %v1002, %v986
    %v1403 = vpack.c.b16 %v1003, %v987
    %v1404 = vpack.c.b16 %v1004, %v988
    %v1405 = vpack.c.b16 %v1005, %v989
    %v1406 = vpack.c.b16 %v1006, %v990
    %v1407 = vpack.c.b16 %v1007, %v991
    %v1408 = vpack.c.b16 %v1008, %v992
    %v1409 = vpack.c.b16 %v1009, %v993
    %v1410 = vpack.c.b16 %v1010, %v994
    %v1411 = vpack.c.b16 %v1011, %v995
    %v1412 = vpack.c.b16 %v1012, %v996
    %v1413 = vpack.c.b16 %v1013, %v997
    %v1414 = vpack.c.b16 %v1014, %v998
    %v1415 = vpack.c.b16 %v1015, %v999
    %v1416 = vpack.c.b16 %v1016, %v1000
    %v1417 = vpack.c.b16 %v1033, %v1017
    %v1418 = vpack.c.b16 %v1034, %v1018
    %v1419 = vpack.c.b16 %v1035, %v1019
    %v1420 = vpack.c.b16 %v1036, %v1020
    %v1421 = vpack.c.b16 %v1037, %v1021
    %v1422 = vpack.c.b16 %v1038, %v1022
    %v1423 = vpack.c.b16 %v1039, %v1023
    %v1424 = vpack.c.b16 %v1040, %v1024
    %v1425 = vpack.c.b16 %v1041, %v1025
    %v1426 = vpack.c.b16 %v1042, %v1026
    %v1427 = vpack.c.b16 %v1043, %v1027
    %v1428 = vpack.c.b16 %v1044, %v1028
    %v1429 = vpack.c.b16 %v1045, %v1029
    %v1430 = vpack.c.b16 %v1046, %v1030
    %v1431 = vpack.c.b16 %v1047, %v1031
    %v1432 = vpack.c.b16 %v1048, %v1032
    %v1433 = vpack.c.b16 %v1065, %v1049
    %v1434 = vpack.c.b16 %v1066, %v1050
    %v1435 = vpack.c.b16 %v1067, %v1051
    %v1436 = vpack.c.b16 %v1068, %v1052
    %v1437 = vpack.c.b16 %v1069, %v1053
    %v1438 = vpack.c.b16 %v1070, %v1054
    %v1439 = vpack.c.b16 %v1071, %v1055
    %v1440 = vpack.c.b16 %v1072, %v1056
    %v1441 = vpack.c.b16 %v1073, %v1057
    %v1442 = vpack.c.b16 %v1074, %v1058
    %v1443 = vpack.c.b16 %v1075, %v1059
    %v1444 = vpack.c.b16 %v1076, %v1060
    %v1445 = vpack.c.b16 %v1077, %v1061
    %v1446 = vpack.c.b16 %v1078, %v1062
    %v1447 = vpack.c.b16 %v1079, %v1063
    %v1448 = vpack.c.b16 %v1080, %v1064
    %v1449 = vpack.c.b16 %v1097, %v1081
    %v1450 = vpack.c.b16 %v1098, %v1082
    %v1451 = vpack.c.b16 %v1099, %v1083
    %v1452 = vpack.c.b16 %v1100, %v1084
    %v1453 = vpack.c.b16 %v1101, %v1085
    %v1454 = vpack.c.b16 %v1102, %v1086
    %v1455 = vpack.c.b16 %v1103, %v1087
    %v1456 = vpack.c.b16 %v1104, %v1088
    %v1457 = vpack.c.b16 %v1105, %v1089
    %v1458 = vpack.c.b16 %v1106, %v1090
    %v1459 = vpack.c.b16 %v1107, %v1091
    %v1460 = vpack.c.b16 %v1108, %v1092
    %v1461 = vpack.c.b16 %v1109, %v1093
    %v1462 = vpack.c.b16 %v1110, %v1094
    %v1463 = vpack.c.b16 %v1111, %v1095
    %v1464 = vpack.c.b16 %v1112, %v1096
    %v1465 = vpack.c.b16 %v1129, %v1113
    %v1466 = vpack.c.b16 %v1130, %v1114
    %v1467 = vpack.c.b16 %v1131, %v1115
    %v1468 = vpack.c.b16 %v1132, %v1116
    %v1469 = vpack.c.b16 %v1133, %v1117
    %v1470 = vpack.c.b16 %v1134, %v1118
    %v1471 = vpack.c.b16 %v1135, %v1119
    %v1472 = vpack.c.b16 %v1136, %v1120
    %v1473 = vpack.c.b16 %v1137, %v1121
    %v1474 = vpack.c.b16 %v1138, %v1122
    %v1475 = vpack.c.b16 %v1139, %v1123
    %v1476 = vpack.c.b16 %v1140, %v1124
    %v1477 = vpack.c.b16 %v1141, %v1125
    %v1478 = vpack.c.b16 %v1142, %v1126
    %v1479 = vpack.c.b16 %v1143, %v1127
    %v1480 = vpack.c.b16 %v1144, %v1128
    %v1481 = vpack.c.b16 %v1161, %v1145
    %v1482 = vpack.c.b16 %v1162, %v1146
    %v1483 = vpack.c.b16 %v1163, %v1147
    %v1484 = vpack.c.b16 %v1164, %v1148
    %v1485 = vpack.c.b16 %v1165, %v1149
    %v1486 = vpack.c.b16 %v1166, %v1150
    %v1487 = vpack.c.b16 %v1167, %v1151
    %v1488 = vpack.c.b16 %v1168, %v1152
    %v1489 = vpack.c.b16 %v1169, %v1153
    %v1490 = vpack.c.b16 %v1170, %v1154
    %v1491 = vpack.c.b16 %v1171, %v1155
    %v1492 = vpack.c.b16 %v1172, %v1156
    %v1493 = vpack.c.b16 %v1173, %v1157
    %v1494 = vpack.c.b16 %v1174, %v1158
    %v1495 = vpack.c.b16 %v1175, %v1159
    %v1496 = vpack.c.b16 %v1176, %v1160
    %v1497 = vpack.c.b16 %v1193, %v1177
    %v1498 = vpack.c.b16 %v1194, %v1178
    %v1499 = vpack.c.b16 %v1195, %v1179
    %v1500 = vpack.c.b16 %v1196, %v1180
    %v1501 = vpack.c.b16 %v1197, %v1181
    %v1502 = vpack.c.b16 %v1198, %v1182
    %v1503 = vpack.c.b16 %v1199, %v1183
    %v1504 = vpack.c.b16 %v1200, %v1184
    %v1505 = vpack.c.b16 %v1201, %v1185
    %v1506 = vpack.c.b16 %v1202, %v1186
    %v1507 = vpack.c.b16 %v1203, %v1187
    %v1508 = vpack.c.b16 %v1204, %v1188
    %v1509 = vpack.c.b16 %v1205, %v1189
    %v1510 = vpack.c.b16 %v1206, %v1190
    %v1511 = vpack.c.b16 %v1207, %v1191
    %v1512 = vpack.c.b16 %v1208, %v1192
    %v1513 = vpack.c.b16 %v1225, %v1209
    %v1514 = vpack.c.b16 %v1226, %v1210
    %v1515 = vpack.c.b16 %v1227, %v1211
    %v1516 = vpack.c.b16 %v1228, %v1212
    %v1517 = vpack.c.b16 %v1229, %v1213
    %v1518 = vpack.c.b16 %v1230, %v1214
    %v1519 = vpack.c.b16 %v1231, %v1215
    %v1520 = vpack.c.b16 %v1232, %v1216
    %v1521 = vpack.c.b16 %v1233, %v1217
    %v1522 = vpack.c.b16 %v1234, %v1218
    %v1523 = vpack.c.b16 %v1235, %v1219
    %v1524 = vpack.c.b16 %v1236, %v1220
    %v1525 = vpack.c.b16 %v1237, %v1221
    %v1526 = vpack.c.b16 %v1238, %v1222
    %v1527 = vpack.c.b16 %v1239, %v1223
    %v1528 = vpack.c.b16 %v1240, %v1224
    %v1529 = vpack.c.b16 %v1257, %v1241
    %v1530 = vpack.c.b16 %v1258, %v1242
    %v1531 = vpack.c.b16 %v1259, %v1243
    %v1532 = vpack.c.b16 %v1260, %v1244
    %v1533 = vpack.c.b16 %v1261, %v1245
    %v1534 = vpack.c.b16 %v1262, %v1246
    %v1535 = vpack.c.b16 %v1263, %v1247
    %v1536 = vpack.c.b16 %v1264, %v1248
    %v1537 = vpack.c.b16 %v1265, %v1249
    %v1538 = vpack.c.b16 %v1266, %v1250
    %v1539 = vpack.c.b16 %v1267, %v1251
    %v1540 = vpack.c.b16 %v1268, %v1252
    %v1541 = vpack.c.b16 %v1269, %v1253
    %v1542 = vpack.c.b16 %v1270, %v1254
    %v1543 = vpack.c.b16 %v1271, %v1255
    %v1544 = vpack.c.b16 %v1272, %v1256
    %v1545 = vpack.c.b16 %v1289, %v1273
    %v1546 = vpack.c.b16 %v1290, %v1274
    %v1547 = vpack.c.b16 %v1291, %v1275
    %v1548 = vpack.c.b16 %v1292, %v1276
    %v1549 = vpack.c.b16 %v1293, %v1277
    %v1550 = vpack.c.b16 %v1294, %v1278
    %v1551 = vpack.c.b16 %v1295, %v1279
    %v1552 = vpack.c.b16 %v1296, %v1280
    %v1553 = vpack.c.b16 %v1297, %v1281
    %v1554 = vpack.c.b16 %v1298, %v1282
    %v1555 = vpack.c.b16 %v1299, %v1283
    %v1556 = vpack.c.b16 %v1300, %v1284
    %v1557 = vpack.c.b16 %v1301, %v1285
    %v1558 = vpack.c.b16 %v1302, %v1286
    %v1559 = vpack.c.b16 %v1303, %v1287
    %v1560 = vpack.c.b16 %v1304, %v1288
    %1817 = vmatprep.subr.bf16.mxu0 %v1418
    %1818 = vmatpush1.bf16.msra.mxu0 %v1417
    %1819 = vmatprep.subr.bf16.mxu0 %v1402
    %1820 = vmatpush1.bf16.msra.mxu0 %v1401
    %1821 = vmatprep.subr.bf16.mxu0 %v1386
    %1822 = vmatpush1.bf16.msra.mxu0 %v1385
    %1823 = vmatprep.subr.bf16.mxu0 %v1370
    %1824 = vmatpush1.bf16.msra.mxu0 %v1369
    %1825 = vmatprep.subr.bf16.mxu0 %v1354
    %1826 = vmatpush1.bf16.msra.mxu0 %v1353
    %1827 = vmatprep.subr.bf16.mxu0 %v1338
    %1828 = vmatpush1.bf16.msra.mxu0 %v1337
    %1829 = vmatprep.subr.bf16.mxu0 %v1322
    %1830 = vmatpush1.bf16.msra.mxu0 %v1321
    %1831 = vmatprep.subr.bf16.mxu0 %v1306
    %1832 = vmatpush1.bf16.msra.mxu0 %v1305
    %1833 = vmatprep.subr.bf16.mxu0 %v1546
    %1834 = vmatpush2.bf16.msra.mxu0 %v1545
    %1835 = vmatprep.subr.bf16.mxu0 %v1530
    %1836 = vmatpush2.bf16.msra.mxu0 %v1529
    %1837 = vmatprep.subr.bf16.mxu0 %v1514
    %1838 = vmatpush2.bf16.msra.mxu0 %v1513
    %1839 = vmatprep.subr.bf16.mxu0 %v1498
    %1840 = vmatpush2.bf16.msra.mxu0 %v1497
    %1841 = vmatprep.subr.bf16.mxu0 %v1482
    %1842 = vmatpush2.bf16.msra.mxu0 %v1481
    %1843 = vmatprep.subr.bf16.mxu0 %v1466
    %1844 = vmatpush2.bf16.msra.mxu0 %v1465
    %1845 = vmatprep.subr.bf16.mxu0 %v1450
    %1846 = vmatpush2.bf16.msra.mxu0 %v1449
    %1847 = vmatprep.subr.bf16.mxu0 %v1434
    %1848 = vmatpush2.bf16.msra.mxu0 %v1433
    %1849 = vmatprep.mubr.bf16.mxu0 %v534
    %1850 = vmatmul.mubr.bf16.gmra.mxu0 %v533
    %v1851 = vpop.f32.mrf.mxu0
    %v1852 = vadd.f32 0.0, %v1851
    %v1853 = vpop.f32.mrf.mxu0
    %v1854 = vadd.f32 0.0, %v1853
    %v1855 = vpop.f32.mrf.mxu0
    %v1856 = vadd.f32 0.0, %v1855
    %v1857 = vpop.f32.mrf.mxu0
    %v1858 = vadd.f32 0.0, %v1857
    %1859 = vdwg.mxu0
    %1860 = vmatprep.subr.bf16.mxu0 %v1420
    %1861 = vmatpush1.bf16.msra.mxu0 %v1419
    %1862 = vmatprep.subr.bf16.mxu0 %v1404
    %1863 = vmatpush1.bf16.msra.mxu0 %v1403
    %1864 = vmatprep.subr.bf16.mxu0 %v1388
    %1865 = vmatpush1.bf16.msra.mxu0 %v1387
    %1866 = vmatprep.subr.bf16.mxu0 %v1372
    %1867 = vmatpush1.bf16.msra.mxu0 %v1371
    %1868 = vmatprep.subr.bf16.mxu0 %v1356
    %1869 = vmatpush1.bf16.msra.mxu0 %v1355
    %1870 = vmatprep.subr.bf16.mxu0 %v1340
    %1871 = vmatpush1.bf16.msra.mxu0 %v1339
    %1872 = vmatprep.subr.bf16.mxu0 %v1324
    %1873 = vmatpush1.bf16.msra.mxu0 %v1323
    %1874 = vmatprep.subr.bf16.mxu0 %v1308
    %1875 = vmatpush1.bf16.msra.mxu0 %v1307
    %1876 = vmatprep.subr.bf16.mxu0 %v1548
    %1877 = vmatpush2.bf16.msra.mxu0 %v1547
    %1878 = vmatprep.subr.bf16.mxu0 %v1532
    %1879 = vmatpush2.bf16.msra.mxu0 %v1531
    %1880 = vmatprep.subr.bf16.mxu0 %v1516
    %1881 = vmatpush2.bf16.msra.mxu0 %v1515
    %1882 = vmatprep.subr.bf16.mxu0 %v1500
    %1883 = vmatpush2.bf16.msra.mxu0 %v1499
    %1884 = vmatprep.subr.bf16.mxu0 %v1484
    %1885 = vmatpush2.bf16.msra.mxu0 %v1483
    %1886 = vmatprep.subr.bf16.mxu0 %v1468
    %1887 = vmatpush2.bf16.msra.mxu0 %v1467
    %1888 = vmatprep.subr.bf16.mxu0 %v1452
    %1889 = vmatpush2.bf16.msra.mxu0 %v1451
    %1890 = vmatprep.subr.bf16.mxu0 %v1436
    %1891 = vmatpush2.bf16.msra.mxu0 %v1435
    %1892 = vmatprep.mubr.bf16.mxu0 %v534
    %1893 = vmatmul.mubr.bf16.gmra.mxu0 %v533
    %v1894 = vpop.f32.mrf.mxu0
    %v1895 = vadd.f32 0.0, %v1894
    %v1896 = vpop.f32.mrf.mxu0
    %v1897 = vadd.f32 0.0, %v1896
    %v1898 = vpop.f32.mrf.mxu0
    %v1899 = vadd.f32 0.0, %v1898
    %v1900 = vpop.f32.mrf.mxu0
    %v1901 = vadd.f32 0.0, %v1900
    %1902 = vdwg.mxu0
    %1903 = vmatprep.subr.bf16.mxu0 %v1422
    %1904 = vmatpush1.bf16.msra.mxu0 %v1421
    %1905 = vmatprep.subr.bf16.mxu0 %v1406
    %1906 = vmatpush1.bf16.msra.mxu0 %v1405
    %1907 = vmatprep.subr.bf16.mxu0 %v1390
    %1908 = vmatpush1.bf16.msra.mxu0 %v1389
    %1909 = vmatprep.subr.bf16.mxu0 %v1374
    %1910 = vmatpush1.bf16.msra.mxu0 %v1373
    %1911 = vmatprep.subr.bf16.mxu0 %v1358
    %1912 = vmatpush1.bf16.msra.mxu0 %v1357
    %1913 = vmatprep.subr.bf16.mxu0 %v1342
    %1914 = vmatpush1.bf16.msra.mxu0 %v1341
    %1915 = vmatprep.subr.bf16.mxu0 %v1326
    %1916 = vmatpush1.bf16.msra.mxu0 %v1325
    %1917 = vmatprep.subr.bf16.mxu0 %v1310
    %1918 = vmatpush1.bf16.msra.mxu0 %v1309
    %1919 = vmatprep.subr.bf16.mxu0 %v1550
    %1920 = vmatpush2.bf16.msra.mxu0 %v1549
    %1921 = vmatprep.subr.bf16.mxu0 %v1534
    %1922 = vmatpush2.bf16.msra.mxu0 %v1533
    %1923 = vmatprep.subr.bf16.mxu0 %v1518
    %1924 = vmatpush2.bf16.msra.mxu0 %v1517
    %1925 = vmatprep.subr.bf16.mxu0 %v1502
    %1926 = vmatpush2.bf16.msra.mxu0 %v1501
    %1927 = vmatprep.subr.bf16.mxu0 %v1486
    %1928 = vmatpush2.bf16.msra.mxu0 %v1485
    %1929 = vmatprep.subr.bf16.mxu0 %v1470
    %1930 = vmatpush2.bf16.msra.mxu0 %v1469
    %1931 = vmatprep.subr.bf16.mxu0 %v1454
    %1932 = vmatpush2.bf16.msra.mxu0 %v1453
    %1933 = vmatprep.subr.bf16.mxu0 %v1438
    %1934 = vmatpush2.bf16.msra.mxu0 %v1437
    %1935 = vmatprep.mubr.bf16.mxu0 %v534
    %1936 = vmatmul.mubr.bf16.gmra.mxu0 %v533
    %v1937 = vpop.f32.mrf.mxu0
    %v1938 = vadd.f32 0.0, %v1937
    %v1939 = vpop.f32.mrf.mxu0
    %v1940 = vadd.f32 0.0, %v1939
    %v1941 = vpop.f32.mrf.mxu0
    %v1942 = vadd.f32 0.0, %v1941
    %v1943 = vpop.f32.mrf.mxu0
    %v1944 = vadd.f32 0.0, %v1943
    %1945 = vdwg.mxu0
    %1946 = vmatprep.subr.bf16.mxu0 %v1424
    %1947 = vmatpush1.bf16.msra.mxu0 %v1423
    %1948 = vmatprep.subr.bf16.mxu0 %v1408
    %1949 = vmatpush1.bf16.msra.mxu0 %v1407
    %1950 = vmatprep.subr.bf16.mxu0 %v1392
    %1951 = vmatpush1.bf16.msra.mxu0 %v1391
    %1952 = vmatprep.subr.bf16.mxu0 %v1376
    %1953 = vmatpush1.bf16.msra.mxu0 %v1375
    %1954 = vmatprep.subr.bf16.mxu0 %v1360
    %1955 = vmatpush1.bf16.msra.mxu0 %v1359
    %1956 = vmatprep.subr.bf16.mxu0 %v1344
    %1957 = vmatpush1.bf16.msra.mxu0 %v1343
    %1958 = vmatprep.subr.bf16.mxu0 %v1328
    %1959 = vmatpush1.bf16.msra.mxu0 %v1327
    %1960 = vmatprep.subr.bf16.mxu0 %v1312
    %1961 = vmatpush1.bf16.msra.mxu0 %v1311
    %1962 = vmatprep.subr.bf16.mxu0 %v1552
    %1963 = vmatpush2.bf16.msra.mxu0 %v1551
    %1964 = vmatprep.subr.bf16.mxu0 %v1536
    %1965 = vmatpush2.bf16.msra.mxu0 %v1535
    %1966 = vmatprep.subr.bf16.mxu0 %v1520
    %1967 = vmatpush2.bf16.msra.mxu0 %v1519
    %1968 = vmatprep.subr.bf16.mxu0 %v1504
    %1969 = vmatpush2.bf16.msra.mxu0 %v1503
    %1970 = vmatprep.subr.bf16.mxu0 %v1488
    %1971 = vmatpush2.bf16.msra.mxu0 %v1487
    %1972 = vmatprep.subr.bf16.mxu0 %v1472
    %1973 = vmatpush2.bf16.msra.mxu0 %v1471
    %1974 = vmatprep.subr.bf16.mxu0 %v1456
    %1975 = vmatpush2.bf16.msra.mxu0 %v1455
    %1976 = vmatprep.subr.bf16.mxu0 %v1440
    %1977 = vmatpush2.bf16.msra.mxu0 %v1439
    %1978 = vmatprep.mubr.bf16.mxu0 %v534
    %1979 = vmatmul.mubr.bf16.gmra.mxu0 %v533
    %v1980 = vpop.f32.mrf.mxu0
    %v1981 = vadd.f32 0.0, %v1980
    %v1982 = vpop.f32.mrf.mxu0
    %v1983 = vadd.f32 0.0, %v1982
    %v1984 = vpop.f32.mrf.mxu0
    %v1985 = vadd.f32 0.0, %v1984
    %v1986 = vpop.f32.mrf.mxu0
    %v1987 = vadd.f32 0.0, %v1986
    %1988 = vdwg.mxu0
    %1989 = vmatprep.subr.bf16.mxu0 %v1426
    %1990 = vmatpush1.bf16.msra.mxu0 %v1425
    %1991 = vmatprep.subr.bf16.mxu0 %v1410
    %1992 = vmatpush1.bf16.msra.mxu0 %v1409
    %1993 = vmatprep.subr.bf16.mxu0 %v1394
    %1994 = vmatpush1.bf16.msra.mxu0 %v1393
    %1995 = vmatprep.subr.bf16.mxu0 %v1378
    %1996 = vmatpush1.bf16.msra.mxu0 %v1377
    %1997 = vmatprep.subr.bf16.mxu0 %v1362
    %1998 = vmatpush1.bf16.msra.mxu0 %v1361
    %1999 = vmatprep.subr.bf16.mxu0 %v1346
    %2000 = vmatpush1.bf16.msra.mxu0 %v1345
    %2001 = vmatprep.subr.bf16.mxu0 %v1330
    %2002 = vmatpush1.bf16.msra.mxu0 %v1329
    %2003 = vmatprep.subr.bf16.mxu0 %v1314
    %2004 = vmatpush1.bf16.msra.mxu0 %v1313
    %2005 = vmatprep.subr.bf16.mxu0 %v1554
    %2006 = vmatpush2.bf16.msra.mxu0 %v1553
    %2007 = vmatprep.subr.bf16.mxu0 %v1538
    %2008 = vmatpush2.bf16.msra.mxu0 %v1537
    %2009 = vmatprep.subr.bf16.mxu0 %v1522
    %2010 = vmatpush2.bf16.msra.mxu0 %v1521
    %2011 = vmatprep.subr.bf16.mxu0 %v1506
    %2012 = vmatpush2.bf16.msra.mxu0 %v1505
    %2013 = vmatprep.subr.bf16.mxu0 %v1490
    %2014 = vmatpush2.bf16.msra.mxu0 %v1489
    %2015 = vmatprep.subr.bf16.mxu0 %v1474
    %2016 = vmatpush2.bf16.msra.mxu0 %v1473
    %2017 = vmatprep.subr.bf16.mxu0 %v1458
    %2018 = vmatpush2.bf16.msra.mxu0 %v1457
    %2019 = vmatprep.subr.bf16.mxu0 %v1442
    %2020 = vmatpush2.bf16.msra.mxu0 %v1441
    %2021 = vmatprep.mubr.bf16.mxu0 %v534
    %2022 = vmatmul.mubr.bf16.gmra.mxu0 %v533
    %v2023 = vpop.f32.mrf.mxu0
    %v2024 = vadd.f32 0.0, %v2023
    %v2025 = vpop.f32.mrf.mxu0
    %v2026 = vadd.f32 0.0, %v2025
    %v2027 = vpop.f32.mrf.mxu0
    %v2028 = vadd.f32 0.0, %v2027
    %v2029 = vpop.f32.mrf.mxu0
    %v2030 = vadd.f32 0.0, %v2029
    %2031 = vdwg.mxu0
    %2032 = vmatprep.subr.bf16.mxu0 %v1428
    %2033 = vmatpush1.bf16.msra.mxu0 %v1427
    %2034 = vmatprep.subr.bf16.mxu0 %v1412
    %2035 = vmatpush1.bf16.msra.mxu0 %v1411
    %2036 = vmatprep.subr.bf16.mxu0 %v1396
    %2037 = vmatpush1.bf16.msra.mxu0 %v1395
    %2038 = vmatprep.subr.bf16.mxu0 %v1380
    %2039 = vmatpush1.bf16.msra.mxu0 %v1379
    %2040 = vmatprep.subr.bf16.mxu0 %v1364
    %2041 = vmatpush1.bf16.msra.mxu0 %v1363
    %2042 = vmatprep.subr.bf16.mxu0 %v1348
    %2043 = vmatpush1.bf16.msra.mxu0 %v1347
    %2044 = vmatprep.subr.bf16.mxu0 %v1332
    %2045 = vmatpush1.bf16.msra.mxu0 %v1331
    %2046 = vmatprep.subr.bf16.mxu0 %v1316
    %2047 = vmatpush1.bf16.msra.mxu0 %v1315
    %2048 = vmatprep.subr.bf16.mxu0 %v1556
    %2049 = vmatpush2.bf16.msra.mxu0 %v1555
    %2050 = vmatprep.subr.bf16.mxu0 %v1540
    %2051 = vmatpush2.bf16.msra.mxu0 %v1539
    %2052 = vmatprep.subr.bf16.mxu0 %v1524
    %2053 = vmatpush2.bf16.msra.mxu0 %v1523
    %2054 = vmatprep.subr.bf16.mxu0 %v1508
    %2055 = vmatpush2.bf16.msra.mxu0 %v1507
    %2056 = vmatprep.subr.bf16.mxu0 %v1492
    %2057 = vmatpush2.bf16.msra.mxu0 %v1491
    %2058 = vmatprep.subr.bf16.mxu0 %v1476
    %2059 = vmatpush2.bf16.msra.mxu0 %v1475
    %2060 = vmatprep.subr.bf16.mxu0 %v1460
    %2061 = vmatpush2.bf16.msra.mxu0 %v1459
    %2062 = vmatprep.subr.bf16.mxu0 %v1444
    %2063 = vmatpush2.bf16.msra.mxu0 %v1443
    %2064 = vmatprep.mubr.bf16.mxu0 %v534
    %2065 = vmatmul.mubr.bf16.gmra.mxu0 %v533
    %v2066 = vpop.f32.mrf.mxu0
    %v2067 = vadd.f32 0.0, %v2066
    %v2068 = vpop.f32.mrf.mxu0
    %v2069 = vadd.f32 0.0, %v2068
    %v2070 = vpop.f32.mrf.mxu0
    %v2071 = vadd.f32 0.0, %v2070
    %v2072 = vpop.f32.mrf.mxu0
    %v2073 = vadd.f32 0.0, %v2072
    %2074 = vdwg.mxu0
    %2075 = vmatprep.subr.bf16.mxu0 %v1430
    %2076 = vmatpush1.bf16.msra.mxu0 %v1429
    %2077 = vmatprep.subr.bf16.mxu0 %v1414
    %2078 = vmatpush1.bf16.msra.mxu0 %v1413
    %2079 = vmatprep.subr.bf16.mxu0 %v1398
    %2080 = vmatpush1.bf16.msra.mxu0 %v1397
    %2081 = vmatprep.subr.bf16.mxu0 %v1382
    %2082 = vmatpush1.bf16.msra.mxu0 %v1381
    %2083 = vmatprep.subr.bf16.mxu0 %v1366
    %2084 = vmatpush1.bf16.msra.mxu0 %v1365
    %2085 = vmatprep.subr.bf16.mxu0 %v1350
    %2086 = vmatpush1.bf16.msra.mxu0 %v1349
    %2087 = vmatprep.subr.bf16.mxu0 %v1334
    %2088 = vmatpush1.bf16.msra.mxu0 %v1333
    %2089 = vmatprep.subr.bf16.mxu0 %v1318
    %2090 = vmatpush1.bf16.msra.mxu0 %v1317
    %2091 = vmatprep.subr.bf16.mxu0 %v1558
    %2092 = vmatpush2.bf16.msra.mxu0 %v1557
    %2093 = vmatprep.subr.bf16.mxu0 %v1542
    %2094 = vmatpush2.bf16.msra.mxu0 %v1541
    %2095 = vmatprep.subr.bf16.mxu0 %v1526
    %2096 = vmatpush2.bf16.msra.mxu0 %v1525
    %2097 = vmatprep.subr.bf16.mxu0 %v1510
    %2098 = vmatpush2.bf16.msra.mxu0 %v1509
    %2099 = vmatprep.subr.bf16.mxu0 %v1494
    %2100 = vmatpush2.bf16.msra.mxu0 %v1493
    %2101 = vmatprep.subr.bf16.mxu0 %v1478
    %2102 = vmatpush2.bf16.msra.mxu0 %v1477
    %2103 = vmatprep.subr.bf16.mxu0 %v1462
    %2104 = vmatpush2.bf16.msra.mxu0 %v1461
    %2105 = vmatprep.subr.bf16.mxu0 %v1446
    %2106 = vmatpush2.bf16.msra.mxu0 %v1445
    %2107 = vmatprep.mubr.bf16.mxu0 %v534
    %2108 = vmatmul.mubr.bf16.gmra.mxu0 %v533
    %v2109 = vpop.f32.mrf.mxu0
    %v2110 = vadd.f32 0.0, %v2109
    %v2111 = vpop.f32.mrf.mxu0
    %v2112 = vadd.f32 0.0, %v2111
    %v2113 = vpop.f32.mrf.mxu0
    %v2114 = vadd.f32 0.0, %v2113
    %v2115 = vpop.f32.mrf.mxu0
    %v2116 = vadd.f32 0.0, %v2115
    %2117 = vdwg.mxu0
    %2118 = vmatprep.subr.bf16.mxu0 %v1432
    %2119 = vmatpush1.bf16.msra.mxu0 %v1431
    %2120 = vmatprep.subr.bf16.mxu0 %v1416
    %2121 = vmatpush1.bf16.msra.mxu0 %v1415
    %2122 = vmatprep.subr.bf16.mxu0 %v1400
    %2123 = vmatpush1.bf16.msra.mxu0 %v1399
    %2124 = vmatprep.subr.bf16.mxu0 %v1384
    %2125 = vmatpush1.bf16.msra.mxu0 %v1383
    %2126 = vmatprep.subr.bf16.mxu0 %v1368
    %2127 = vmatpush1.bf16.msra.mxu0 %v1367
    %2128 = vmatprep.subr.bf16.mxu0 %v1352
    %2129 = vmatpush1.bf16.msra.mxu0 %v1351
    %2130 = vmatprep.subr.bf16.mxu0 %v1336
    %2131 = vmatpush1.bf16.msra.mxu0 %v1335
    %2132 = vmatprep.subr.bf16.mxu0 %v1320
    %2133 = vmatpush1.bf16.msra.mxu0 %v1319
    %2134 = vmatprep.subr.bf16.mxu0 %v1560
    %2135 = vmatpush2.bf16.msra.mxu0 %v1559
    %2136 = vmatprep.subr.bf16.mxu0 %v1544
    %2137 = vmatpush2.bf16.msra.mxu0 %v1543
    %2138 = vmatprep.subr.bf16.mxu0 %v1528
    %2139 = vmatpush2.bf16.msra.mxu0 %v1527
    %2140 = vmatprep.subr.bf16.mxu0 %v1512
    %2141 = vmatpush2.bf16.msra.mxu0 %v1511
    %2142 = vmatprep.subr.bf16.mxu0 %v1496
    %2143 = vmatpush2.bf16.msra.mxu0 %v1495
    %2144 = vmatprep.subr.bf16.mxu0 %v1480
    %2145 = vmatpush2.bf16.msra.mxu0 %v1479
    %2146 = vmatprep.subr.bf16.mxu0 %v1464
    %2147 = vmatpush2.bf16.msra.mxu0 %v1463
    %2148 = vmatprep.subr.bf16.mxu0 %v1448
    %2149 = vmatpush2.bf16.msra.mxu0 %v1447
    %2150 = vmatprep.mubr.bf16.mxu0 %v534
    %2151 = vmatmul.mubr.bf16.gmra.mxu0 %v533
    %v2152 = vpop.f32.mrf.mxu0
    %v2153 = vadd.f32 0.0, %v2152
    %v2154 = vpop.f32.mrf.mxu0
    %v2155 = vadd.f32 0.0, %v2154
    %v2156 = vpop.f32.mrf.mxu0
    %v2157 = vadd.f32 0.0, %v2156
    %v2158 = vpop.f32.mrf.mxu0
    %v2159 = vadd.f32 0.0, %v2158
    %2160 = vdwg.mxu0
    %v2161 = vadd.f32 %v237, %v1852
    %v2162 = vadd.f32 %v238, %v1854
    %v2163 = vadd.f32 %v239, %v1895
    %v2164 = vadd.f32 %v240, %v1897
    %v2165 = vadd.f32 %v241, %v1938
    %v2166 = vadd.f32 %v242, %v1940
    %v2167 = vadd.f32 %v243, %v1981
    %v2168 = vadd.f32 %v244, %v1983
    %v2169 = vadd.f32 %v245, %v2024
    %v2170 = vadd.f32 %v246, %v2026
    %v2171 = vadd.f32 %v247, %v2067
    %v2172 = vadd.f32 %v248, %v2069
    %v2173 = vadd.f32 %v249, %v2110
    %v2174 = vadd.f32 %v250, %v2112
    %v2175 = vadd.f32 %v251, %v2153
    %v2176 = vadd.f32 %v252, %v2155
    %v2177 = vadd.f32 %v253, %v1856
    %v2178 = vadd.f32 %v254, %v1858
    %v2179 = vadd.f32 %v255, %v1899
    %v2180 = vadd.f32 %v256, %v1901
    %v2181 = vadd.f32 %v257, %v1942
    %v2182 = vadd.f32 %v258, %v1944
    %v2183 = vadd.f32 %v259, %v1985
    %v2184 = vadd.f32 %v260, %v1987
    %v2185 = vadd.f32 %v261, %v2028
    %v2186 = vadd.f32 %v262, %v2030
    %v2187 = vadd.f32 %v263, %v2071
    %v2188 = vadd.f32 %v264, %v2073
    %v2189 = vadd.f32 %v265, %v2114
    %v2190 = vadd.f32 %v266, %v2116
    %v2191 = vadd.f32 %v267, %v2157
    %v2192 = vadd.f32 %v268, %v2159
    %2193 = vst [vmem:[#allocation2] sm:$0xff] %v2161
    %2194 = vst [vmem:[#allocation2 + $0x8] sm:$0xff] %v2162
    %2195 = vst [vmem:[#allocation2 + $0x10] sm:$0xff] %v2163
    %2196 = vst [vmem:[#allocation2 + $0x18] sm:$0xff] %v2164
    %2197 = vst [vmem:[#allocation2 + $0x20] sm:$0xff] %v2165
    %2198 = vst [vmem:[#allocation2 + $0x28] sm:$0xff] %v2166
    %2199 = vst [vmem:[#allocation2 + $0x30] sm:$0xff] %v2167
    %2200 = vst [vmem:[#allocation2 + $0x38] sm:$0xff] %v2168
    %2201 = vst [vmem:[#allocation2 + $0x40] sm:$0xff] %v2169
    %2202 = vst [vmem:[#allocation2 + $0x48] sm:$0xff] %v2170
    %2203 = vst [vmem:[#allocation2 + $0x50] sm:$0xff] %v2171
    %2204 = vst [vmem:[#allocation2 + $0x58] sm:$0xff] %v2172
    %2205 = vst [vmem:[#allocation2 + $0x60] sm:$0xff] %v2173
    %2206 = vst [vmem:[#allocation2 + $0x68] sm:$0xff] %v2174
    %2207 = vst [vmem:[#allocation2 + $0x70] sm:$0xff] %v2175
    %2208 = vst [vmem:[#allocation2 + $0x78] sm:$0xff] %v2176
    %2209 = vst [vmem:[#allocation2 + $0x80] sm:$0xff] %v2177
    %2210 = vst [vmem:[#allocation2 + $0x88] sm:$0xff] %v2178
    %2211 = vst [vmem:[#allocation2 + $0x90] sm:$0xff] %v2179
    %2212 = vst [vmem:[#allocation2 + $0x98] sm:$0xff] %v2180
    %2213 = vst [vmem:[#allocation2 + $0xa0] sm:$0xff] %v2181
    %2214 = vst [vmem:[#allocation2 + $0xa8] sm:$0xff] %v2182
    %2215 = vst [vmem:[#allocation2 + $0xb0] sm:$0xff] %v2183
    %2216 = vst [vmem:[#allocation2 + $0xb8] sm:$0xff] %v2184
    %2217 = vst [vmem:[#allocation2 + $0xc0] sm:$0xff] %v2185
    %2218 = vst [vmem:[#allocation2 + $0xc8] sm:$0xff] %v2186
    %2219 = vst [vmem:[#allocation2 + $0xd0] sm:$0xff] %v2187
    %2220 = vst [vmem:[#allocation2 + $0xd8] sm:$0xff] %v2188
    %2221 = vst [vmem:[#allocation2 + $0xe0] sm:$0xff] %v2189
    %2222 = vst [vmem:[#allocation2 + $0xe8] sm:$0xff] %v2190
    %2223 = vst [vmem:[#allocation2 + $0xf0] sm:$0xff] %v2191
    %2224 = vst [vmem:[#allocation2 + $0xf8] sm:$0xff] %v2192
    // Predicated region
    $region62: #{tpu_custom_call.1} parent=1 // pred_check
      %p2225 = pneg %p117
    $region63: #{tpu_custom_call.1} parent=1 // pred_check_branch
      %2227 = sbr.rel (%p2225) target = $region65
    $region64: #{tpu_custom_call.1} parent=1 // pred_region
      %v2228 = vld [vmem:[#allocation2] sm:$0xff]
      %v2229 = vld [vmem:[#allocation2 + $0x8] sm:$0xff]
      %v2230 = vld [vmem:[#allocation2 + $0x10] sm:$0xff]
      %v2231 = vld [vmem:[#allocation2 + $0x18] sm:$0xff]
      %v2232 = vld [vmem:[#allocation2 + $0x20] sm:$0xff]
      %v2233 = vld [vmem:[#allocation2 + $0x28] sm:$0xff]
      %v2234 = vld [vmem:[#allocation2 + $0x30] sm:$0xff]
      %v2235 = vld [vmem:[#allocation2 + $0x38] sm:$0xff]
      %v2236 = vld [vmem:[#allocation2 + $0x40] sm:$0xff]
      %v2237 = vld [vmem:[#allocation2 + $0x48] sm:$0xff]
      %v2238 = vld [vmem:[#allocation2 + $0x50] sm:$0xff]
      %v2239 = vld [vmem:[#allocation2 + $0x58] sm:$0xff]
      %v2240 = vld [vmem:[#allocation2 + $0x60] sm:$0xff]
      %v2241 = vld [vmem:[#allocation2 + $0x68] sm:$0xff]
      %v2242 = vld [vmem:[#allocation2 + $0x70] sm:$0xff]
      %v2243 = vld [vmem:[#allocation2 + $0x78] sm:$0xff]
      %v2244 = vld [vmem:[#allocation2 + $0x80] sm:$0xff]
      %v2245 = vld [vmem:[#allocation2 + $0x88] sm:$0xff]
      %v2246 = vld [vmem:[#allocation2 + $0x90] sm:$0xff]
      %v2247 = vld [vmem:[#allocation2 + $0x98] sm:$0xff]
      %v2248 = vld [vmem:[#allocation2 + $0xa0] sm:$0xff]
      %v2249 = vld [vmem:[#allocation2 + $0xa8] sm:$0xff]
      %v2250 = vld [vmem:[#allocation2 + $0xb0] sm:$0xff]
      %v2251 = vld [vmem:[#allocation2 + $0xb8] sm:$0xff]
      %v2252 = vld [vmem:[#allocation2 + $0xc0] sm:$0xff]
      %v2253 = vld [vmem:[#allocation2 + $0xc8] sm:$0xff]
      %v2254 = vld [vmem:[#allocation2 + $0xd0] sm:$0xff]
      %v2255 = vld [vmem:[#allocation2 + $0xd8] sm:$0xff]
      %v2256 = vld [vmem:[#allocation2 + $0xe0] sm:$0xff]
      %v2257 = vld [vmem:[#allocation2 + $0xe8] sm:$0xff]
      %v2258 = vld [vmem:[#allocation2 + $0xf0] sm:$0xff]
      %v2259 = vld [vmem:[#allocation2 + $0xf8] sm:$0xff]
      %v2260 = vmax.f32 %v2228, 0.0
      %v2261 = vmax.f32 %v2229, 0.0
      %v2262 = vmax.f32 %v2230, 0.0
      %v2263 = vmax.f32 %v2231, 0.0
      %v2264 = vmax.f32 %v2232, 0.0
      %v2265 = vmax.f32 %v2233, 0.0
      %v2266 = vmax.f32 %v2234, 0.0
      %v2267 = vmax.f32 %v2235, 0.0
      %v2268 = vmax.f32 %v2236, 0.0
      %v2269 = vmax.f32 %v2237, 0.0
      %v2270 = vmax.f32 %v2238, 0.0
      %v2271 = vmax.f32 %v2239, 0.0
      %v2272 = vmax.f32 %v2240, 0.0
      %v2273 = vmax.f32 %v2241, 0.0
      %v2274 = vmax.f32 %v2242, 0.0
      %v2275 = vmax.f32 %v2243, 0.0
      %v2276 = vmax.f32 %v2244, 0.0
      %v2277 = vmax.f32 %v2245, 0.0
      %v2278 = vmax.f32 %v2246, 0.0
      %v2279 = vmax.f32 %v2247, 0.0
      %v2280 = vmax.f32 %v2248, 0.0
      %v2281 = vmax.f32 %v2249, 0.0
      %v2282 = vmax.f32 %v2250, 0.0
      %v2283 = vmax.f32 %v2251, 0.0
      %v2284 = vmax.f32 %v2252, 0.0
      %v2285 = vmax.f32 %v2253, 0.0
      %v2286 = vmax.f32 %v2254, 0.0
      %v2287 = vmax.f32 %v2255, 0.0
      %v2288 = vmax.f32 %v2256, 0.0
      %v2289 = vmax.f32 %v2257, 0.0
      %v2290 = vmax.f32 %v2258, 0.0
      %v2291 = vmax.f32 %v2259, 0.0
      %v2292 = vpack.c.bf16 %v2276, %v2260
      %v2293 = vpack.c.bf16 %v2277, %v2261
      %v2294 = vpack.c.bf16 %v2278, %v2262
      %v2295 = vpack.c.bf16 %v2279, %v2263
      %v2296 = vpack.c.bf16 %v2280, %v2264
      %v2297 = vpack.c.bf16 %v2281, %v2265
      %v2298 = vpack.c.bf16 %v2282, %v2266
      %v2299 = vpack.c.bf16 %v2283, %v2267
      %v2300 = vpack.c.bf16 %v2284, %v2268
      %v2301 = vpack.c.bf16 %v2285, %v2269
      %v2302 = vpack.c.bf16 %v2286, %v2270
      %v2303 = vpack.c.bf16 %v2287, %v2271
      %v2304 = vpack.c.bf16 %v2288, %v2272
      %v2305 = vpack.c.bf16 %v2289, %v2273
      %v2306 = vpack.c.bf16 %v2290, %v2274
      %v2307 = vpack.c.bf16 %v2291, %v2275
      %v2308 = vld [vmem:[#allocation9] sm:$0xff]
      %v2309 = vld [vmem:[#allocation9 + $0x8] sm:$0xff]
      %v2310 = vld [vmem:[#allocation9 + $0x10] sm:$0xff]
      %v2311 = vld [vmem:[#allocation9 + $0x18] sm:$0xff]
      %v2312 = vld [vmem:[#allocation9 + $0x20] sm:$0xff]
      %v2313 = vld [vmem:[#allocation9 + $0x28] sm:$0xff]
      %v2314 = vld [vmem:[#allocation9 + $0x30] sm:$0xff]
      %v2315 = vld [vmem:[#allocation9 + $0x38] sm:$0xff]
      %v2316 = vld [vmem:[#allocation9 + $0x40] sm:$0xff]
      %v2317 = vld [vmem:[#allocation9 + $0x48] sm:$0xff]
      %v2318 = vld [vmem:[#allocation9 + $0x50] sm:$0xff]
      %v2319 = vld [vmem:[#allocation9 + $0x58] sm:$0xff]
      %v2320 = vld [vmem:[#allocation9 + $0x60] sm:$0xff]
      %v2321 = vld [vmem:[#allocation9 + $0x68] sm:$0xff]
      %v2322 = vld [vmem:[#allocation9 + $0x70] sm:$0xff]
      %v2323 = vld [vmem:[#allocation9 + $0x78] sm:$0xff]
      %v2324 = vld [vmem:[#allocation9 + $0x80] sm:$0xff]
      %v2325 = vld [vmem:[#allocation9 + $0x88] sm:$0xff]
      %v2326 = vld [vmem:[#allocation9 + $0x90] sm:$0xff]
      %v2327 = vld [vmem:[#allocation9 + $0x98] sm:$0xff]
      %v2328 = vld [vmem:[#allocation9 + $0xa0] sm:$0xff]
      %v2329 = vld [vmem:[#allocation9 + $0xa8] sm:$0xff]
      %v2330 = vld [vmem:[#allocation9 + $0xb0] sm:$0xff]
      %v2331 = vld [vmem:[#allocation9 + $0xb8] sm:$0xff]
      %v2332 = vld [vmem:[#allocation9 + $0xc0] sm:$0xff]
      %v2333 = vld [vmem:[#allocation9 + $0xc8] sm:$0xff]
      %v2334 = vld [vmem:[#allocation9 + $0xd0] sm:$0xff]
      %v2335 = vld [vmem:[#allocation9 + $0xd8] sm:$0xff]
      %v2336 = vld [vmem:[#allocation9 + $0xe0] sm:$0xff]
      %v2337 = vld [vmem:[#allocation9 + $0xe8] sm:$0xff]
      %v2338 = vld [vmem:[#allocation9 + $0xf0] sm:$0xff]
      %v2339 = vld [vmem:[#allocation9 + $0xf8] sm:$0xff]
      %v2340 = vld [vmem:[#allocation9 + $0x100] sm:$0xff]
      %v2341 = vld [vmem:[#allocation9 + $0x108] sm:$0xff]
      %v2342 = vld [vmem:[#allocation9 + $0x110] sm:$0xff]
      %v2343 = vld [vmem:[#allocation9 + $0x118] sm:$0xff]
      %v2344 = vld [vmem:[#allocation9 + $0x120] sm:$0xff]
      %v2345 = vld [vmem:[#allocation9 + $0x128] sm:$0xff]
      %v2346 = vld [vmem:[#allocation9 + $0x130] sm:$0xff]
      %v2347 = vld [vmem:[#allocation9 + $0x138] sm:$0xff]
      %v2348 = vld [vmem:[#allocation9 + $0x140] sm:$0xff]
      %v2349 = vld [vmem:[#allocation9 + $0x148] sm:$0xff]
      %v2350 = vld [vmem:[#allocation9 + $0x150] sm:$0xff]
      %v2351 = vld [vmem:[#allocation9 + $0x158] sm:$0xff]
      %v2352 = vld [vmem:[#allocation9 + $0x160] sm:$0xff]
      %v2353 = vld [vmem:[#allocation9 + $0x168] sm:$0xff]
      %v2354 = vld [vmem:[#allocation9 + $0x170] sm:$0xff]
      %v2355 = vld [vmem:[#allocation9 + $0x178] sm:$0xff]
      %v2356 = vld [vmem:[#allocation9 + $0x180] sm:$0xff]
      %v2357 = vld [vmem:[#allocation9 + $0x188] sm:$0xff]
      %v2358 = vld [vmem:[#allocation9 + $0x190] sm:$0xff]
      %v2359 = vld [vmem:[#allocation9 + $0x198] sm:$0xff]
      %v2360 = vld [vmem:[#allocation9 + $0x1a0] sm:$0xff]
      %v2361 = vld [vmem:[#allocation9 + $0x1a8] sm:$0xff]
      %v2362 = vld [vmem:[#allocation9 + $0x1b0] sm:$0xff]
      %v2363 = vld [vmem:[#allocation9 + $0x1b8] sm:$0xff]
      %v2364 = vld [vmem:[#allocation9 + $0x1c0] sm:$0xff]
      %v2365 = vld [vmem:[#allocation9 + $0x1c8] sm:$0xff]
      %v2366 = vld [vmem:[#allocation9 + $0x1d0] sm:$0xff]
      %v2367 = vld [vmem:[#allocation9 + $0x1d8] sm:$0xff]
      %v2368 = vld [vmem:[#allocation9 + $0x1e0] sm:$0xff]
      %v2369 = vld [vmem:[#allocation9 + $0x1e8] sm:$0xff]
      %v2370 = vld [vmem:[#allocation9 + $0x1f0] sm:$0xff]
      %v2371 = vld [vmem:[#allocation9 + $0x1f8] sm:$0xff]
      %v2372 = vld [vmem:[#allocation9 + $0x200] sm:$0xff]
      %v2373 = vld [vmem:[#allocation9 + $0x208] sm:$0xff]
      %v2374 = vld [vmem:[#allocation9 + $0x210] sm:$0xff]
      %v2375 = vld [vmem:[#allocation9 + $0x218] sm:$0xff]
      %v2376 = vld [vmem:[#allocation9 + $0x220] sm:$0xff]
      %v2377 = vld [vmem:[#allocation9 + $0x228] sm:$0xff]
      %v2378 = vld [vmem:[#allocation9 + $0x230] sm:$0xff]
      %v2379 = vld [vmem:[#allocation9 + $0x238] sm:$0xff]
      %v2380 = vld [vmem:[#allocation9 + $0x240] sm:$0xff]
      %v2381 = vld [vmem:[#allocation9 + $0x248] sm:$0xff]
      %v2382 = vld [vmem:[#allocation9 + $0x250] sm:$0xff]
      %v2383 = vld [vmem:[#allocation9 + $0x258] sm:$0xff]
      %v2384 = vld [vmem:[#allocation9 + $0x260] sm:$0xff]
      %v2385 = vld [vmem:[#allocation9 + $0x268] sm:$0xff]
      %v2386 = vld [vmem:[#allocation9 + $0x270] sm:$0xff]
      %v2387 = vld [vmem:[#allocation9 + $0x278] sm:$0xff]
      %v2388 = vld [vmem:[#allocation9 + $0x280] sm:$0xff]
      %v2389 = vld [vmem:[#allocation9 + $0x288] sm:$0xff]
      %v2390 = vld [vmem:[#allocation9 + $0x290] sm:$0xff]
      %v2391 = vld [vmem:[#allocation9 + $0x298] sm:$0xff]
      %v2392 = vld [vmem:[#allocation9 + $0x2a0] sm:$0xff]
      %v2393 = vld [vmem:[#allocation9 + $0x2a8] sm:$0xff]
      %v2394 = vld [vmem:[#allocation9 + $0x2b0] sm:$0xff]
      %v2395 = vld [vmem:[#allocation9 + $0x2b8] sm:$0xff]
      %v2396 = vld [vmem:[#allocation9 + $0x2c0] sm:$0xff]
      %v2397 = vld [vmem:[#allocation9 + $0x2c8] sm:$0xff]
      %v2398 = vld [vmem:[#allocation9 + $0x2d0] sm:$0xff]
      %v2399 = vld [vmem:[#allocation9 + $0x2d8] sm:$0xff]
      %v2400 = vld [vmem:[#allocation9 + $0x2e0] sm:$0xff]
      %v2401 = vld [vmem:[#allocation9 + $0x2e8] sm:$0xff]
      %v2402 = vld [vmem:[#allocation9 + $0x2f0] sm:$0xff]
      %v2403 = vld [vmem:[#allocation9 + $0x2f8] sm:$0xff]
      %v2404 = vld [vmem:[#allocation9 + $0x300] sm:$0xff]
      %v2405 = vld [vmem:[#allocation9 + $0x308] sm:$0xff]
      %v2406 = vld [vmem:[#allocation9 + $0x310] sm:$0xff]
      %v2407 = vld [vmem:[#allocation9 + $0x318] sm:$0xff]
      %v2408 = vld [vmem:[#allocation9 + $0x320] sm:$0xff]
      %v2409 = vld [vmem:[#allocation9 + $0x328] sm:$0xff]
      %v2410 = vld [vmem:[#allocation9 + $0x330] sm:$0xff]
      %v2411 = vld [vmem:[#allocation9 + $0x338] sm:$0xff]
      %v2412 = vld [vmem:[#allocation9 + $0x340] sm:$0xff]
      %v2413 = vld [vmem:[#allocation9 + $0x348] sm:$0xff]
      %v2414 = vld [vmem:[#allocation9 + $0x350] sm:$0xff]
      %v2415 = vld [vmem:[#allocation9 + $0x358] sm:$0xff]
      %v2416 = vld [vmem:[#allocation9 + $0x360] sm:$0xff]
      %v2417 = vld [vmem:[#allocation9 + $0x368] sm:$0xff]
      %v2418 = vld [vmem:[#allocation9 + $0x370] sm:$0xff]
      %v2419 = vld [vmem:[#allocation9 + $0x378] sm:$0xff]
      %v2420 = vld [vmem:[#allocation9 + $0x380] sm:$0xff]
      %v2421 = vld [vmem:[#allocation9 + $0x388] sm:$0xff]
      %v2422 = vld [vmem:[#allocation9 + $0x390] sm:$0xff]
      %v2423 = vld [vmem:[#allocation9 + $0x398] sm:$0xff]
      %v2424 = vld [vmem:[#allocation9 + $0x3a0] sm:$0xff]
      %v2425 = vld [vmem:[#allocation9 + $0x3a8] sm:$0xff]
      %v2426 = vld [vmem:[#allocation9 + $0x3b0] sm:$0xff]
      %v2427 = vld [vmem:[#allocation9 + $0x3b8] sm:$0xff]
      %v2428 = vld [vmem:[#allocation9 + $0x3c0] sm:$0xff]
      %v2429 = vld [vmem:[#allocation9 + $0x3c8] sm:$0xff]
      %v2430 = vld [vmem:[#allocation9 + $0x3d0] sm:$0xff]
      %v2431 = vld [vmem:[#allocation9 + $0x3d8] sm:$0xff]
      %v2432 = vld [vmem:[#allocation9 + $0x3e0] sm:$0xff]
      %v2433 = vld [vmem:[#allocation9 + $0x3e8] sm:$0xff]
      %v2434 = vld [vmem:[#allocation9 + $0x3f0] sm:$0xff]
      %v2435 = vld [vmem:[#allocation9 + $0x3f8] sm:$0xff]
      %v2436 = vld [vmem:[#allocation9 + $0x400] sm:$0xff]
      %v2437 = vld [vmem:[#allocation9 + $0x408] sm:$0xff]
      %v2438 = vld [vmem:[#allocation9 + $0x410] sm:$0xff]
      %v2439 = vld [vmem:[#allocation9 + $0x418] sm:$0xff]
      %v2440 = vld [vmem:[#allocation9 + $0x420] sm:$0xff]
      %v2441 = vld [vmem:[#allocation9 + $0x428] sm:$0xff]
      %v2442 = vld [vmem:[#allocation9 + $0x430] sm:$0xff]
      %v2443 = vld [vmem:[#allocation9 + $0x438] sm:$0xff]
      %v2444 = vld [vmem:[#allocation9 + $0x440] sm:$0xff]
      %v2445 = vld [vmem:[#allocation9 + $0x448] sm:$0xff]
      %v2446 = vld [vmem:[#allocation9 + $0x450] sm:$0xff]
      %v2447 = vld [vmem:[#allocation9 + $0x458] sm:$0xff]
      %v2448 = vld [vmem:[#allocation9 + $0x460] sm:$0xff]
      %v2449 = vld [vmem:[#allocation9 + $0x468] sm:$0xff]
      %v2450 = vld [vmem:[#allocation9 + $0x470] sm:$0xff]
      %v2451 = vld [vmem:[#allocation9 + $0x478] sm:$0xff]
      %v2452 = vld [vmem:[#allocation9 + $0x480] sm:$0xff]
      %v2453 = vld [vmem:[#allocation9 + $0x488] sm:$0xff]
      %v2454 = vld [vmem:[#allocation9 + $0x490] sm:$0xff]
      %v2455 = vld [vmem:[#allocation9 + $0x498] sm:$0xff]
      %v2456 = vld [vmem:[#allocation9 + $0x4a0] sm:$0xff]
      %v2457 = vld [vmem:[#allocation9 + $0x4a8] sm:$0xff]
      %v2458 = vld [vmem:[#allocation9 + $0x4b0] sm:$0xff]
      %v2459 = vld [vmem:[#allocation9 + $0x4b8] sm:$0xff]
      %v2460 = vld [vmem:[#allocation9 + $0x4c0] sm:$0xff]
      %v2461 = vld [vmem:[#allocation9 + $0x4c8] sm:$0xff]
      %v2462 = vld [vmem:[#allocation9 + $0x4d0] sm:$0xff]
      %v2463 = vld [vmem:[#allocation9 + $0x4d8] sm:$0xff]
      %v2464 = vld [vmem:[#allocation9 + $0x4e0] sm:$0xff]
      %v2465 = vld [vmem:[#allocation9 + $0x4e8] sm:$0xff]
      %v2466 = vld [vmem:[#allocation9 + $0x4f0] sm:$0xff]
      %v2467 = vld [vmem:[#allocation9 + $0x4f8] sm:$0xff]
      %v2468 = vld [vmem:[#allocation9 + $0x500] sm:$0xff]
      %v2469 = vld [vmem:[#allocation9 + $0x508] sm:$0xff]
      %v2470 = vld [vmem:[#allocation9 + $0x510] sm:$0xff]
      %v2471 = vld [vmem:[#allocation9 + $0x518] sm:$0xff]
      %v2472 = vld [vmem:[#allocation9 + $0x520] sm:$0xff]
      %v2473 = vld [vmem:[#allocation9 + $0x528] sm:$0xff]
      %v2474 = vld [vmem:[#allocation9 + $0x530] sm:$0xff]
      %v2475 = vld [vmem:[#allocation9 + $0x538] sm:$0xff]
      %v2476 = vld [vmem:[#allocation9 + $0x540] sm:$0xff]
      %v2477 = vld [vmem:[#allocation9 + $0x548] sm:$0xff]
      %v2478 = vld [vmem:[#allocation9 + $0x550] sm:$0xff]
      %v2479 = vld [vmem:[#allocation9 + $0x558] sm:$0xff]
      %v2480 = vld [vmem:[#allocation9 + $0x560] sm:$0xff]
      %v2481 = vld [vmem:[#allocation9 + $0x568] sm:$0xff]
      %v2482 = vld [vmem:[#allocation9 + $0x570] sm:$0xff]
      %v2483 = vld [vmem:[#allocation9 + $0x578] sm:$0xff]
      %v2484 = vld [vmem:[#allocation9 + $0x580] sm:$0xff]
      %v2485 = vld [vmem:[#allocation9 + $0x588] sm:$0xff]
      %v2486 = vld [vmem:[#allocation9 + $0x590] sm:$0xff]
      %v2487 = vld [vmem:[#allocation9 + $0x598] sm:$0xff]
      %v2488 = vld [vmem:[#allocation9 + $0x5a0] sm:$0xff]
      %v2489 = vld [vmem:[#allocation9 + $0x5a8] sm:$0xff]
      %v2490 = vld [vmem:[#allocation9 + $0x5b0] sm:$0xff]
      %v2491 = vld [vmem:[#allocation9 + $0x5b8] sm:$0xff]
      %v2492 = vld [vmem:[#allocation9 + $0x5c0] sm:$0xff]
      %v2493 = vld [vmem:[#allocation9 + $0x5c8] sm:$0xff]
      %v2494 = vld [vmem:[#allocation9 + $0x5d0] sm:$0xff]
      %v2495 = vld [vmem:[#allocation9 + $0x5d8] sm:$0xff]
      %v2496 = vld [vmem:[#allocation9 + $0x5e0] sm:$0xff]
      %v2497 = vld [vmem:[#allocation9 + $0x5e8] sm:$0xff]
      %v2498 = vld [vmem:[#allocation9 + $0x5f0] sm:$0xff]
      %v2499 = vld [vmem:[#allocation9 + $0x5f8] sm:$0xff]
      %v2500 = vld [vmem:[#allocation9 + $0x600] sm:$0xff]
      %v2501 = vld [vmem:[#allocation9 + $0x608] sm:$0xff]
      %v2502 = vld [vmem:[#allocation9 + $0x610] sm:$0xff]
      %v2503 = vld [vmem:[#allocation9 + $0x618] sm:$0xff]
      %v2504 = vld [vmem:[#allocation9 + $0x620] sm:$0xff]
      %v2505 = vld [vmem:[#allocation9 + $0x628] sm:$0xff]
      %v2506 = vld [vmem:[#allocation9 + $0x630] sm:$0xff]
      %v2507 = vld [vmem:[#allocation9 + $0x638] sm:$0xff]
      %v2508 = vld [vmem:[#allocation9 + $0x640] sm:$0xff]
      %v2509 = vld [vmem:[#allocation9 + $0x648] sm:$0xff]
      %v2510 = vld [vmem:[#allocation9 + $0x650] sm:$0xff]
      %v2511 = vld [vmem:[#allocation9 + $0x658] sm:$0xff]
      %v2512 = vld [vmem:[#allocation9 + $0x660] sm:$0xff]
      %v2513 = vld [vmem:[#allocation9 + $0x668] sm:$0xff]
      %v2514 = vld [vmem:[#allocation9 + $0x670] sm:$0xff]
      %v2515 = vld [vmem:[#allocation9 + $0x678] sm:$0xff]
      %v2516 = vld [vmem:[#allocation9 + $0x680] sm:$0xff]
      %v2517 = vld [vmem:[#allocation9 + $0x688] sm:$0xff]
      %v2518 = vld [vmem:[#allocation9 + $0x690] sm:$0xff]
      %v2519 = vld [vmem:[#allocation9 + $0x698] sm:$0xff]
      %v2520 = vld [vmem:[#allocation9 + $0x6a0] sm:$0xff]
      %v2521 = vld [vmem:[#allocation9 + $0x6a8] sm:$0xff]
      %v2522 = vld [vmem:[#allocation9 + $0x6b0] sm:$0xff]
      %v2523 = vld [vmem:[#allocation9 + $0x6b8] sm:$0xff]
      %v2524 = vld [vmem:[#allocation9 + $0x6c0] sm:$0xff]
      %v2525 = vld [vmem:[#allocation9 + $0x6c8] sm:$0xff]
      %v2526 = vld [vmem:[#allocation9 + $0x6d0] sm:$0xff]
      %v2527 = vld [vmem:[#allocation9 + $0x6d8] sm:$0xff]
      %v2528 = vld [vmem:[#allocation9 + $0x6e0] sm:$0xff]
      %v2529 = vld [vmem:[#allocation9 + $0x6e8] sm:$0xff]
      %v2530 = vld [vmem:[#allocation9 + $0x6f0] sm:$0xff]
      %v2531 = vld [vmem:[#allocation9 + $0x6f8] sm:$0xff]
      %v2532 = vld [vmem:[#allocation9 + $0x700] sm:$0xff]
      %v2533 = vld [vmem:[#allocation9 + $0x708] sm:$0xff]
      %v2534 = vld [vmem:[#allocation9 + $0x710] sm:$0xff]
      %v2535 = vld [vmem:[#allocation9 + $0x718] sm:$0xff]
      %v2536 = vld [vmem:[#allocation9 + $0x720] sm:$0xff]
      %v2537 = vld [vmem:[#allocation9 + $0x728] sm:$0xff]
      %v2538 = vld [vmem:[#allocation9 + $0x730] sm:$0xff]
      %v2539 = vld [vmem:[#allocation9 + $0x738] sm:$0xff]
      %v2540 = vld [vmem:[#allocation9 + $0x740] sm:$0xff]
      %v2541 = vld [vmem:[#allocation9 + $0x748] sm:$0xff]
      %v2542 = vld [vmem:[#allocation9 + $0x750] sm:$0xff]
      %v2543 = vld [vmem:[#allocation9 + $0x758] sm:$0xff]
      %v2544 = vld [vmem:[#allocation9 + $0x760] sm:$0xff]
      %v2545 = vld [vmem:[#allocation9 + $0x768] sm:$0xff]
      %v2546 = vld [vmem:[#allocation9 + $0x770] sm:$0xff]
      %v2547 = vld [vmem:[#allocation9 + $0x778] sm:$0xff]
      %v2548 = vld [vmem:[#allocation9 + $0x780] sm:$0xff]
      %v2549 = vld [vmem:[#allocation9 + $0x788] sm:$0xff]
      %v2550 = vld [vmem:[#allocation9 + $0x790] sm:$0xff]
      %v2551 = vld [vmem:[#allocation9 + $0x798] sm:$0xff]
      %v2552 = vld [vmem:[#allocation9 + $0x7a0] sm:$0xff]
      %v2553 = vld [vmem:[#allocation9 + $0x7a8] sm:$0xff]
      %v2554 = vld [vmem:[#allocation9 + $0x7b0] sm:$0xff]
      %v2555 = vld [vmem:[#allocation9 + $0x7b8] sm:$0xff]
      %v2556 = vld [vmem:[#allocation9 + $0x7c0] sm:$0xff]
      %v2557 = vld [vmem:[#allocation9 + $0x7c8] sm:$0xff]
      %v2558 = vld [vmem:[#allocation9 + $0x7d0] sm:$0xff]
      %v2559 = vld [vmem:[#allocation9 + $0x7d8] sm:$0xff]
      %v2560 = vld [vmem:[#allocation9 + $0x7e0] sm:$0xff]
      %v2561 = vld [vmem:[#allocation9 + $0x7e8] sm:$0xff]
      %v2562 = vld [vmem:[#allocation9 + $0x7f0] sm:$0xff]
      %v2563 = vld [vmem:[#allocation9 + $0x7f8] sm:$0xff]
      %v2564 = vld [vmem:[#allocation9 + $0x800] sm:$0xff]
      %v2565 = vld [vmem:[#allocation9 + $0x808] sm:$0xff]
      %v2566 = vld [vmem:[#allocation9 + $0x810] sm:$0xff]
      %v2567 = vld [vmem:[#allocation9 + $0x818] sm:$0xff]
      %v2568 = vld [vmem:[#allocation9 + $0x820] sm:$0xff]
      %v2569 = vld [vmem:[#allocation9 + $0x828] sm:$0xff]
      %v2570 = vld [vmem:[#allocation9 + $0x830] sm:$0xff]
      %v2571 = vld [vmem:[#allocation9 + $0x838] sm:$0xff]
      %v2572 = vld [vmem:[#allocation9 + $0x840] sm:$0xff]
      %v2573 = vld [vmem:[#allocation9 + $0x848] sm:$0xff]
      %v2574 = vld [vmem:[#allocation9 + $0x850] sm:$0xff]
      %v2575 = vld [vmem:[#allocation9 + $0x858] sm:$0xff]
      %v2576 = vld [vmem:[#allocation9 + $0x860] sm:$0xff]
      %v2577 = vld [vmem:[#allocation9 + $0x868] sm:$0xff]
      %v2578 = vld [vmem:[#allocation9 + $0x870] sm:$0xff]
      %v2579 = vld [vmem:[#allocation9 + $0x878] sm:$0xff]
      %v2580 = vld [vmem:[#allocation9 + $0x880] sm:$0xff]
      %v2581 = vld [vmem:[#allocation9 + $0x888] sm:$0xff]
      %v2582 = vld [vmem:[#allocation9 + $0x890] sm:$0xff]
      %v2583 = vld [vmem:[#allocation9 + $0x898] sm:$0xff]
      %v2584 = vld [vmem:[#allocation9 + $0x8a0] sm:$0xff]
      %v2585 = vld [vmem:[#allocation9 + $0x8a8] sm:$0xff]
      %v2586 = vld [vmem:[#allocation9 + $0x8b0] sm:$0xff]
      %v2587 = vld [vmem:[#allocation9 + $0x8b8] sm:$0xff]
      %v2588 = vld [vmem:[#allocation9 + $0x8c0] sm:$0xff]
      %v2589 = vld [vmem:[#allocation9 + $0x8c8] sm:$0xff]
      %v2590 = vld [vmem:[#allocation9 + $0x8d0] sm:$0xff]
      %v2591 = vld [vmem:[#allocation9 + $0x8d8] sm:$0xff]
      %v2592 = vld [vmem:[#allocation9 + $0x8e0] sm:$0xff]
      %v2593 = vld [vmem:[#allocation9 + $0x8e8] sm:$0xff]
      %v2594 = vld [vmem:[#allocation9 + $0x8f0] sm:$0xff]
      %v2595 = vld [vmem:[#allocation9 + $0x8f8] sm:$0xff]
      %v2596 = vld [vmem:[#allocation9 + $0x900] sm:$0xff]
      %v2597 = vld [vmem:[#allocation9 + $0x908] sm:$0xff]
      %v2598 = vld [vmem:[#allocation9 + $0x910] sm:$0xff]
      %v2599 = vld [vmem:[#allocation9 + $0x918] sm:$0xff]
      %v2600 = vld [vmem:[#allocation9 + $0x920] sm:$0xff]
      %v2601 = vld [vmem:[#allocation9 + $0x928] sm:$0xff]
      %v2602 = vld [vmem:[#allocation9 + $0x930] sm:$0xff]
      %v2603 = vld [vmem:[#allocation9 + $0x938] sm:$0xff]
      %v2604 = vld [vmem:[#allocation9 + $0x940] sm:$0xff]
      %v2605 = vld [vmem:[#allocation9 + $0x948] sm:$0xff]
      %v2606 = vld [vmem:[#allocation9 + $0x950] sm:$0xff]
      %v2607 = vld [vmem:[#allocation9 + $0x958] sm:$0xff]
      %v2608 = vld [vmem:[#allocation9 + $0x960] sm:$0xff]
      %v2609 = vld [vmem:[#allocation9 + $0x968] sm:$0xff]
      %v2610 = vld [vmem:[#allocation9 + $0x970] sm:$0xff]
      %v2611 = vld [vmem:[#allocation9 + $0x978] sm:$0xff]
      %v2612 = vld [vmem:[#allocation9 + $0x980] sm:$0xff]
      %v2613 = vld [vmem:[#allocation9 + $0x988] sm:$0xff]
      %v2614 = vld [vmem:[#allocation9 + $0x990] sm:$0xff]
      %v2615 = vld [vmem:[#allocation9 + $0x998] sm:$0xff]
      %v2616 = vld [vmem:[#allocation9 + $0x9a0] sm:$0xff]
      %v2617 = vld [vmem:[#allocation9 + $0x9a8] sm:$0xff]
      %v2618 = vld [vmem:[#allocation9 + $0x9b0] sm:$0xff]
      %v2619 = vld [vmem:[#allocation9 + $0x9b8] sm:$0xff]
      %v2620 = vld [vmem:[#allocation9 + $0x9c0] sm:$0xff]
      %v2621 = vld [vmem:[#allocation9 + $0x9c8] sm:$0xff]
      %v2622 = vld [vmem:[#allocation9 + $0x9d0] sm:$0xff]
      %v2623 = vld [vmem:[#allocation9 + $0x9d8] sm:$0xff]
      %v2624 = vld [vmem:[#allocation9 + $0x9e0] sm:$0xff]
      %v2625 = vld [vmem:[#allocation9 + $0x9e8] sm:$0xff]
      %v2626 = vld [vmem:[#allocation9 + $0x9f0] sm:$0xff]
      %v2627 = vld [vmem:[#allocation9 + $0x9f8] sm:$0xff]
      %v2628 = vld [vmem:[#allocation9 + $0xa00] sm:$0xff]
      %v2629 = vld [vmem:[#allocation9 + $0xa08] sm:$0xff]
      %v2630 = vld [vmem:[#allocation9 + $0xa10] sm:$0xff]
      %v2631 = vld [vmem:[#allocation9 + $0xa18] sm:$0xff]
      %v2632 = vld [vmem:[#allocation9 + $0xa20] sm:$0xff]
      %v2633 = vld [vmem:[#allocation9 + $0xa28] sm:$0xff]
      %v2634 = vld [vmem:[#allocation9 + $0xa30] sm:$0xff]
      %v2635 = vld [vmem:[#allocation9 + $0xa38] sm:$0xff]
      %v2636 = vld [vmem:[#allocation9 + $0xa40] sm:$0xff]
      %v2637 = vld [vmem:[#allocation9 + $0xa48] sm:$0xff]
      %v2638 = vld [vmem:[#allocation9 + $0xa50] sm:$0xff]
      %v2639 = vld [vmem:[#allocation9 + $0xa58] sm:$0xff]
      %v2640 = vld [vmem:[#allocation9 + $0xa60] sm:$0xff]
      %v2641 = vld [vmem:[#allocation9 + $0xa68] sm:$0xff]
      %v2642 = vld [vmem:[#allocation9 + $0xa70] sm:$0xff]
      %v2643 = vld [vmem:[#allocation9 + $0xa78] sm:$0xff]
      %v2644 = vld [vmem:[#allocation9 + $0xa80] sm:$0xff]
      %v2645 = vld [vmem:[#allocation9 + $0xa88] sm:$0xff]
      %v2646 = vld [vmem:[#allocation9 + $0xa90] sm:$0xff]
      %v2647 = vld [vmem:[#allocation9 + $0xa98] sm:$0xff]
      %v2648 = vld [vmem:[#allocation9 + $0xaa0] sm:$0xff]
      %v2649 = vld [vmem:[#allocation9 + $0xaa8] sm:$0xff]
      %v2650 = vld [vmem:[#allocation9 + $0xab0] sm:$0xff]
      %v2651 = vld [vmem:[#allocation9 + $0xab8] sm:$0xff]
      %v2652 = vld [vmem:[#allocation9 + $0xac0] sm:$0xff]
      %v2653 = vld [vmem:[#allocation9 + $0xac8] sm:$0xff]
      %v2654 = vld [vmem:[#allocation9 + $0xad0] sm:$0xff]
      %v2655 = vld [vmem:[#allocation9 + $0xad8] sm:$0xff]
      %v2656 = vld [vmem:[#allocation9 + $0xae0] sm:$0xff]
      %v2657 = vld [vmem:[#allocation9 + $0xae8] sm:$0xff]
      %v2658 = vld [vmem:[#allocation9 + $0xaf0] sm:$0xff]
      %v2659 = vld [vmem:[#allocation9 + $0xaf8] sm:$0xff]
      %v2660 = vld [vmem:[#allocation9 + $0xb00] sm:$0xff]
      %v2661 = vld [vmem:[#allocation9 + $0xb08] sm:$0xff]
      %v2662 = vld [vmem:[#allocation9 + $0xb10] sm:$0xff]
      %v2663 = vld [vmem:[#allocation9 + $0xb18] sm:$0xff]
      %v2664 = vld [vmem:[#allocation9 + $0xb20] sm:$0xff]
      %v2665 = vld [vmem:[#allocation9 + $0xb28] sm:$0xff]
      %v2666 = vld [vmem:[#allocation9 + $0xb30] sm:$0xff]
      %v2667 = vld [vmem:[#allocation9 + $0xb38] sm:$0xff]
      %v2668 = vld [vmem:[#allocation9 + $0xb40] sm:$0xff]
      %v2669 = vld [vmem:[#allocation9 + $0xb48] sm:$0xff]
      %v2670 = vld [vmem:[#allocation9 + $0xb50] sm:$0xff]
      %v2671 = vld [vmem:[#allocation9 + $0xb58] sm:$0xff]
      %v2672 = vld [vmem:[#allocation9 + $0xb60] sm:$0xff]
      %v2673 = vld [vmem:[#allocation9 + $0xb68] sm:$0xff]
      %v2674 = vld [vmem:[#allocation9 + $0xb70] sm:$0xff]
      %v2675 = vld [vmem:[#allocation9 + $0xb78] sm:$0xff]
      %v2676 = vld [vmem:[#allocation9 + $0xb80] sm:$0xff]
      %v2677 = vld [vmem:[#allocation9 + $0xb88] sm:$0xff]
      %v2678 = vld [vmem:[#allocation9 + $0xb90] sm:$0xff]
      %v2679 = vld [vmem:[#allocation9 + $0xb98] sm:$0xff]
      %v2680 = vld [vmem:[#allocation9 + $0xba0] sm:$0xff]
      %v2681 = vld [vmem:[#allocation9 + $0xba8] sm:$0xff]
      %v2682 = vld [vmem:[#allocation9 + $0xbb0] sm:$0xff]
      %v2683 = vld [vmem:[#allocation9 + $0xbb8] sm:$0xff]
      %v2684 = vld [vmem:[#allocation9 + $0xbc0] sm:$0xff]
      %v2685 = vld [vmem:[#allocation9 + $0xbc8] sm:$0xff]
      %v2686 = vld [vmem:[#allocation9 + $0xbd0] sm:$0xff]
      %v2687 = vld [vmem:[#allocation9 + $0xbd8] sm:$0xff]
      %v2688 = vld [vmem:[#allocation9 + $0xbe0] sm:$0xff]
      %v2689 = vld [vmem:[#allocation9 + $0xbe8] sm:$0xff]
      %v2690 = vld [vmem:[#allocation9 + $0xbf0] sm:$0xff]
      %v2691 = vld [vmem:[#allocation9 + $0xbf8] sm:$0xff]
      %v2692 = vld [vmem:[#allocation9 + $0xc00] sm:$0xff]
      %v2693 = vld [vmem:[#allocation9 + $0xc08] sm:$0xff]
      %v2694 = vld [vmem:[#allocation9 + $0xc10] sm:$0xff]
      %v2695 = vld [vmem:[#allocation9 + $0xc18] sm:$0xff]
      %v2696 = vld [vmem:[#allocation9 + $0xc20] sm:$0xff]
      %v2697 = vld [vmem:[#allocation9 + $0xc28] sm:$0xff]
      %v2698 = vld [vmem:[#allocation9 + $0xc30] sm:$0xff]
      %v2699 = vld [vmem:[#allocation9 + $0xc38] sm:$0xff]
      %v2700 = vld [vmem:[#allocation9 + $0xc40] sm:$0xff]
      %v2701 = vld [vmem:[#allocation9 + $0xc48] sm:$0xff]
      %v2702 = vld [vmem:[#allocation9 + $0xc50] sm:$0xff]
      %v2703 = vld [vmem:[#allocation9 + $0xc58] sm:$0xff]
      %v2704 = vld [vmem:[#allocation9 + $0xc60] sm:$0xff]
      %v2705 = vld [vmem:[#allocation9 + $0xc68] sm:$0xff]
      %v2706 = vld [vmem:[#allocation9 + $0xc70] sm:$0xff]
      %v2707 = vld [vmem:[#allocation9 + $0xc78] sm:$0xff]
      %v2708 = vld [vmem:[#allocation9 + $0xc80] sm:$0xff]
      %v2709 = vld [vmem:[#allocation9 + $0xc88] sm:$0xff]
      %v2710 = vld [vmem:[#allocation9 + $0xc90] sm:$0xff]
      %v2711 = vld [vmem:[#allocation9 + $0xc98] sm:$0xff]
      %v2712 = vld [vmem:[#allocation9 + $0xca0] sm:$0xff]
      %v2713 = vld [vmem:[#allocation9 + $0xca8] sm:$0xff]
      %v2714 = vld [vmem:[#allocation9 + $0xcb0] sm:$0xff]
      %v2715 = vld [vmem:[#allocation9 + $0xcb8] sm:$0xff]
      %v2716 = vld [vmem:[#allocation9 + $0xcc0] sm:$0xff]
      %v2717 = vld [vmem:[#allocation9 + $0xcc8] sm:$0xff]
      %v2718 = vld [vmem:[#allocation9 + $0xcd0] sm:$0xff]
      %v2719 = vld [vmem:[#allocation9 + $0xcd8] sm:$0xff]
      %v2720 = vld [vmem:[#allocation9 + $0xce0] sm:$0xff]
      %v2721 = vld [vmem:[#allocation9 + $0xce8] sm:$0xff]
      %v2722 = vld [vmem:[#allocation9 + $0xcf0] sm:$0xff]
      %v2723 = vld [vmem:[#allocation9 + $0xcf8] sm:$0xff]
      %v2724 = vld [vmem:[#allocation9 + $0xd00] sm:$0xff]
      %v2725 = vld [vmem:[#allocation9 + $0xd08] sm:$0xff]
      %v2726 = vld [vmem:[#allocation9 + $0xd10] sm:$0xff]
      %v2727 = vld [vmem:[#allocation9 + $0xd18] sm:$0xff]
      %v2728 = vld [vmem:[#allocation9 + $0xd20] sm:$0xff]
      %v2729 = vld [vmem:[#allocation9 + $0xd28] sm:$0xff]
      %v2730 = vld [vmem:[#allocation9 + $0xd30] sm:$0xff]
      %v2731 = vld [vmem:[#allocation9 + $0xd38] sm:$0xff]
      %v2732 = vld [vmem:[#allocation9 + $0xd40] sm:$0xff]
      %v2733 = vld [vmem:[#allocation9 + $0xd48] sm:$0xff]
      %v2734 = vld [vmem:[#allocation9 + $0xd50] sm:$0xff]
      %v2735 = vld [vmem:[#allocation9 + $0xd58] sm:$0xff]
      %v2736 = vld [vmem:[#allocation9 + $0xd60] sm:$0xff]
      %v2737 = vld [vmem:[#allocation9 + $0xd68] sm:$0xff]
      %v2738 = vld [vmem:[#allocation9 + $0xd70] sm:$0xff]
      %v2739 = vld [vmem:[#allocation9 + $0xd78] sm:$0xff]
      %v2740 = vld [vmem:[#allocation9 + $0xd80] sm:$0xff]
      %v2741 = vld [vmem:[#allocation9 + $0xd88] sm:$0xff]
      %v2742 = vld [vmem:[#allocation9 + $0xd90] sm:$0xff]
      %v2743 = vld [vmem:[#allocation9 + $0xd98] sm:$0xff]
      %v2744 = vld [vmem:[#allocation9 + $0xda0] sm:$0xff]
      %v2745 = vld [vmem:[#allocation9 + $0xda8] sm:$0xff]
      %v2746 = vld [vmem:[#allocation9 + $0xdb0] sm:$0xff]
      %v2747 = vld [vmem:[#allocation9 + $0xdb8] sm:$0xff]
      %v2748 = vld [vmem:[#allocation9 + $0xdc0] sm:$0xff]
      %v2749 = vld [vmem:[#allocation9 + $0xdc8] sm:$0xff]
      %v2750 = vld [vmem:[#allocation9 + $0xdd0] sm:$0xff]
      %v2751 = vld [vmem:[#allocation9 + $0xdd8] sm:$0xff]
      %v2752 = vld [vmem:[#allocation9 + $0xde0] sm:$0xff]
      %v2753 = vld [vmem:[#allocation9 + $0xde8] sm:$0xff]
      %v2754 = vld [vmem:[#allocation9 + $0xdf0] sm:$0xff]
      %v2755 = vld [vmem:[#allocation9 + $0xdf8] sm:$0xff]
      %v2756 = vld [vmem:[#allocation9 + $0xe00] sm:$0xff]
      %v2757 = vld [vmem:[#allocation9 + $0xe08] sm:$0xff]
      %v2758 = vld [vmem:[#allocation9 + $0xe10] sm:$0xff]
      %v2759 = vld [vmem:[#allocation9 + $0xe18] sm:$0xff]
      %v2760 = vld [vmem:[#allocation9 + $0xe20] sm:$0xff]
      %v2761 = vld [vmem:[#allocation9 + $0xe28] sm:$0xff]
      %v2762 = vld [vmem:[#allocation9 + $0xe30] sm:$0xff]
      %v2763 = vld [vmem:[#allocation9 + $0xe38] sm:$0xff]
      %v2764 = vld [vmem:[#allocation9 + $0xe40] sm:$0xff]
      %v2765 = vld [vmem:[#allocation9 + $0xe48] sm:$0xff]
      %v2766 = vld [vmem:[#allocation9 + $0xe50] sm:$0xff]
      %v2767 = vld [vmem:[#allocation9 + $0xe58] sm:$0xff]
      %v2768 = vld [vmem:[#allocation9 + $0xe60] sm:$0xff]
      %v2769 = vld [vmem:[#allocation9 + $0xe68] sm:$0xff]
      %v2770 = vld [vmem:[#allocation9 + $0xe70] sm:$0xff]
      %v2771 = vld [vmem:[#allocation9 + $0xe78] sm:$0xff]
      %v2772 = vld [vmem:[#allocation9 + $0xe80] sm:$0xff]
      %v2773 = vld [vmem:[#allocation9 + $0xe88] sm:$0xff]
      %v2774 = vld [vmem:[#allocation9 + $0xe90] sm:$0xff]
      %v2775 = vld [vmem:[#allocation9 + $0xe98] sm:$0xff]
      %v2776 = vld [vmem:[#allocation9 + $0xea0] sm:$0xff]
      %v2777 = vld [vmem:[#allocation9 + $0xea8] sm:$0xff]
      %v2778 = vld [vmem:[#allocation9 + $0xeb0] sm:$0xff]
      %v2779 = vld [vmem:[#allocation9 + $0xeb8] sm:$0xff]
      %v2780 = vld [vmem:[#allocation9 + $0xec0] sm:$0xff]
      %v2781 = vld [vmem:[#allocation9 + $0xec8] sm:$0xff]
      %v2782 = vld [vmem:[#allocation9 + $0xed0] sm:$0xff]
      %v2783 = vld [vmem:[#allocation9 + $0xed8] sm:$0xff]
      %v2784 = vld [vmem:[#allocation9 + $0xee0] sm:$0xff]
      %v2785 = vld [vmem:[#allocation9 + $0xee8] sm:$0xff]
      %v2786 = vld [vmem:[#allocation9 + $0xef0] sm:$0xff]
      %v2787 = vld [vmem:[#allocation9 + $0xef8] sm:$0xff]
      %v2788 = vld [vmem:[#allocation9 + $0xf00] sm:$0xff]
      %v2789 = vld [vmem:[#allocation9 + $0xf08] sm:$0xff]
      %v2790 = vld [vmem:[#allocation9 + $0xf10] sm:$0xff]
      %v2791 = vld [vmem:[#allocation9 + $0xf18] sm:$0xff]
      %v2792 = vld [vmem:[#allocation9 + $0xf20] sm:$0xff]
      %v2793 = vld [vmem:[#allocation9 + $0xf28] sm:$0xff]
      %v2794 = vld [vmem:[#allocation9 + $0xf30] sm:$0xff]
      %v2795 = vld [vmem:[#allocation9 + $0xf38] sm:$0xff]
      %v2796 = vld [vmem:[#allocation9 + $0xf40] sm:$0xff]
      %v2797 = vld [vmem:[#allocation9 + $0xf48] sm:$0xff]
      %v2798 = vld [vmem:[#allocation9 + $0xf50] sm:$0xff]
      %v2799 = vld [vmem:[#allocation9 + $0xf58] sm:$0xff]
      %v2800 = vld [vmem:[#allocation9 + $0xf60] sm:$0xff]
      %v2801 = vld [vmem:[#allocation9 + $0xf68] sm:$0xff]
      %v2802 = vld [vmem:[#allocation9 + $0xf70] sm:$0xff]
      %v2803 = vld [vmem:[#allocation9 + $0xf78] sm:$0xff]
      %v2804 = vld [vmem:[#allocation9 + $0xf80] sm:$0xff]
      %v2805 = vld [vmem:[#allocation9 + $0xf88] sm:$0xff]
      %v2806 = vld [vmem:[#allocation9 + $0xf90] sm:$0xff]
      %v2807 = vld [vmem:[#allocation9 + $0xf98] sm:$0xff]
      %v2808 = vld [vmem:[#allocation9 + $0xfa0] sm:$0xff]
      %v2809 = vld [vmem:[#allocation9 + $0xfa8] sm:$0xff]
      %v2810 = vld [vmem:[#allocation9 + $0xfb0] sm:$0xff]
      %v2811 = vld [vmem:[#allocation9 + $0xfb8] sm:$0xff]
      %v2812 = vld [vmem:[#allocation9 + $0xfc0] sm:$0xff]
      %v2813 = vld [vmem:[#allocation9 + $0xfc8] sm:$0xff]
      %v2814 = vld [vmem:[#allocation9 + $0xfd0] sm:$0xff]
      %v2815 = vld [vmem:[#allocation9 + $0xfd8] sm:$0xff]
      %v2816 = vld [vmem:[#allocation9 + $0xfe0] sm:$0xff]
      %v2817 = vld [vmem:[#allocation9 + $0xfe8] sm:$0xff]
      %v2818 = vld [vmem:[#allocation9 + $0xff0] sm:$0xff]
      %v2819 = vld [vmem:[#allocation9 + $0xff8] sm:$0xff]
      %v2820 = vld [vmem:[#allocation11] sm:$0xf]
      %v2822 = vlaneseq
      %v2823 = vshrl.u32 %v2822, 7
      %v2824 = vsub.s32 0, %v2823
      %v2825 = vrot.slane %v2820, %v2824
      %v2826 = vlaneseq
      %v2827 = vshrl.u32 %v2826, 7
      %v2828 = vsub.s32 1, %v2827
      %v2829 = vrot.slane %v2820, %v2828
      %v2830 = vlaneseq
      %v2831 = vshrl.u32 %v2830, 7
      %v2832 = vsub.s32 2, %v2831
      %v2833 = vrot.slane %v2820, %v2832
      %v2834 = vlaneseq
      %v2835 = vshrl.u32 %v2834, 7
      %v2836 = vsub.s32 3, %v2835
      %v2837 = vrot.slane %v2820, %v2836
      %v3354 = vunpack.c.l.b16 %v2308
      %v3355 = vunpack.c.h.b16 %v2308
      %v3356 = vunpack.c.l.b16 %v2309
      %v3357 = vunpack.c.h.b16 %v2309
      %v3358 = vunpack.c.l.b16 %v2310
      %v3359 = vunpack.c.h.b16 %v2310
      %v3360 = vunpack.c.l.b16 %v2311
      %v3361 = vunpack.c.h.b16 %v2311
      %v3362 = vunpack.c.l.b16 %v2312
      %v3363 = vunpack.c.h.b16 %v2312
      %v3364 = vunpack.c.l.b16 %v2313
      %v3365 = vunpack.c.h.b16 %v2313
      %v3366 = vunpack.c.l.b16 %v2314
      %v3367 = vunpack.c.h.b16 %v2314
      %v3368 = vunpack.c.l.b16 %v2315
      %v3369 = vunpack.c.h.b16 %v2315
      %v3370 = vunpack.c.l.b16 %v2316
      %v3371 = vunpack.c.h.b16 %v2316
      %v3372 = vunpack.c.l.b16 %v2317
      %v3373 = vunpack.c.h.b16 %v2317
      %v3374 = vunpack.c.l.b16 %v2318
      %v3375 = vunpack.c.h.b16 %v2318
      %v3376 = vunpack.c.l.b16 %v2319
      %v3377 = vunpack.c.h.b16 %v2319
      %v3378 = vunpack.c.l.b16 %v2320
      %v3379 = vunpack.c.h.b16 %v2320
      %v3380 = vunpack.c.l.b16 %v2321
      %v3381 = vunpack.c.h.b16 %v2321
      %v3382 = vunpack.c.l.b16 %v2322
      %v3383 = vunpack.c.h.b16 %v2322
      %v3384 = vunpack.c.l.b16 %v2323
      %v3385 = vunpack.c.h.b16 %v2323
      %v3386 = vunpack.c.l.b16 %v2324
      %v3387 = vunpack.c.h.b16 %v2324
      %v3388 = vunpack.c.l.b16 %v2325
      %v3389 = vunpack.c.h.b16 %v2325
      %v3390 = vunpack.c.l.b16 %v2326
      %v3391 = vunpack.c.h.b16 %v2326
      %v3392 = vunpack.c.l.b16 %v2327
      %v3393 = vunpack.c.h.b16 %v2327
      %v3394 = vunpack.c.l.b16 %v2328
      %v3395 = vunpack.c.h.b16 %v2328
      %v3396 = vunpack.c.l.b16 %v2329
      %v3397 = vunpack.c.h.b16 %v2329
      %v3398 = vunpack.c.l.b16 %v2330
      %v3399 = vunpack.c.h.b16 %v2330
      %v3400 = vunpack.c.l.b16 %v2331
      %v3401 = vunpack.c.h.b16 %v2331
      %v3402 = vunpack.c.l.b16 %v2332
      %v3403 = vunpack.c.h.b16 %v2332
      %v3404 = vunpack.c.l.b16 %v2333
      %v3405 = vunpack.c.h.b16 %v2333
      %v3406 = vunpack.c.l.b16 %v2334
      %v3407 = vunpack.c.h.b16 %v2334
      %v3408 = vunpack.c.l.b16 %v2335
      %v3409 = vunpack.c.h.b16 %v2335
      %v3410 = vunpack.c.l.b16 %v2336
      %v3411 = vunpack.c.h.b16 %v2336
      %v3412 = vunpack.c.l.b16 %v2337
      %v3413 = vunpack.c.h.b16 %v2337
      %v3414 = vunpack.c.l.b16 %v2338
      %v3415 = vunpack.c.h.b16 %v2338
      %v3416 = vunpack.c.l.b16 %v2339
      %v3417 = vunpack.c.h.b16 %v2339
      %v3418 = vunpack.c.l.b16 %v2340
      %v3419 = vunpack.c.h.b16 %v2340
      %v3420 = vunpack.c.l.b16 %v2341
      %v3421 = vunpack.c.h.b16 %v2341
      %v3422 = vunpack.c.l.b16 %v2342
      %v3423 = vunpack.c.h.b16 %v2342
      %v3424 = vunpack.c.l.b16 %v2343
      %v3425 = vunpack.c.h.b16 %v2343
      %v3426 = vunpack.c.l.b16 %v2344
      %v3427 = vunpack.c.h.b16 %v2344
      %v3428 = vunpack.c.l.b16 %v2345
      %v3429 = vunpack.c.h.b16 %v2345
      %v3430 = vunpack.c.l.b16 %v2346
      %v3431 = vunpack.c.h.b16 %v2346
      %v3432 = vunpack.c.l.b16 %v2347
      %v3433 = vunpack.c.h.b16 %v2347
      %v3434 = vunpack.c.l.b16 %v2348
      %v3435 = vunpack.c.h.b16 %v2348
      %v3436 = vunpack.c.l.b16 %v2349
      %v3437 = vunpack.c.h.b16 %v2349
      %v3438 = vunpack.c.l.b16 %v2350
      %v3439 = vunpack.c.h.b16 %v2350
      %v3440 = vunpack.c.l.b16 %v2351
      %v3441 = vunpack.c.h.b16 %v2351
      %v3442 = vunpack.c.l.b16 %v2352
      %v3443 = vunpack.c.h.b16 %v2352
      %v3444 = vunpack.c.l.b16 %v2353
      %v3445 = vunpack.c.h.b16 %v2353
      %v3446 = vunpack.c.l.b16 %v2354
      %v3447 = vunpack.c.h.b16 %v2354
      %v3448 = vunpack.c.l.b16 %v2355
      %v3449 = vunpack.c.h.b16 %v2355
      %v3450 = vunpack.c.l.b16 %v2356
      %v3451 = vunpack.c.h.b16 %v2356
      %v3452 = vunpack.c.l.b16 %v2357
      %v3453 = vunpack.c.h.b16 %v2357
      %v3454 = vunpack.c.l.b16 %v2358
      %v3455 = vunpack.c.h.b16 %v2358
      %v3456 = vunpack.c.l.b16 %v2359
      %v3457 = vunpack.c.h.b16 %v2359
      %v3458 = vunpack.c.l.b16 %v2360
      %v3459 = vunpack.c.h.b16 %v2360
      %v3460 = vunpack.c.l.b16 %v2361
      %v3461 = vunpack.c.h.b16 %v2361
      %v3462 = vunpack.c.l.b16 %v2362
      %v3463 = vunpack.c.h.b16 %v2362
      %v3464 = vunpack.c.l.b16 %v2363
      %v3465 = vunpack.c.h.b16 %v2363
      %v3466 = vunpack.c.l.b16 %v2364
      %v3467 = vunpack.c.h.b16 %v2364
      %v3468 = vunpack.c.l.b16 %v2365
      %v3469 = vunpack.c.h.b16 %v2365
      %v3470 = vunpack.c.l.b16 %v2366
      %v3471 = vunpack.c.h.b16 %v2366
      %v3472 = vunpack.c.l.b16 %v2367
      %v3473 = vunpack.c.h.b16 %v2367
      %v3474 = vunpack.c.l.b16 %v2368
      %v3475 = vunpack.c.h.b16 %v2368
      %v3476 = vunpack.c.l.b16 %v2369
      %v3477 = vunpack.c.h.b16 %v2369
      %v3478 = vunpack.c.l.b16 %v2370
      %v3479 = vunpack.c.h.b16 %v2370
      %v3480 = vunpack.c.l.b16 %v2371
      %v3481 = vunpack.c.h.b16 %v2371
      %v3482 = vunpack.c.l.b16 %v2372
      %v3483 = vunpack.c.h.b16 %v2372
      %v3484 = vunpack.c.l.b16 %v2373
      %v3485 = vunpack.c.h.b16 %v2373
      %v3486 = vunpack.c.l.b16 %v2374
      %v3487 = vunpack.c.h.b16 %v2374
      %v3488 = vunpack.c.l.b16 %v2375
      %v3489 = vunpack.c.h.b16 %v2375
      %v3490 = vunpack.c.l.b16 %v2376
      %v3491 = vunpack.c.h.b16 %v2376
      %v3492 = vunpack.c.l.b16 %v2377
      %v3493 = vunpack.c.h.b16 %v2377
      %v3494 = vunpack.c.l.b16 %v2378
      %v3495 = vunpack.c.h.b16 %v2378
      %v3496 = vunpack.c.l.b16 %v2379
      %v3497 = vunpack.c.h.b16 %v2379
      %v3498 = vunpack.c.l.b16 %v2380
      %v3499 = vunpack.c.h.b16 %v2380
      %v3500 = vunpack.c.l.b16 %v2381
      %v3501 = vunpack.c.h.b16 %v2381
      %v3502 = vunpack.c.l.b16 %v2382
      %v3503 = vunpack.c.h.b16 %v2382
      %v3504 = vunpack.c.l.b16 %v2383
      %v3505 = vunpack.c.h.b16 %v2383
      %v3506 = vunpack.c.l.b16 %v2384
      %v3507 = vunpack.c.h.b16 %v2384
      %v3508 = vunpack.c.l.b16 %v2385
      %v3509 = vunpack.c.h.b16 %v2385
      %v3510 = vunpack.c.l.b16 %v2386
      %v3511 = vunpack.c.h.b16 %v2386
      %v3512 = vunpack.c.l.b16 %v2387
      %v3513 = vunpack.c.h.b16 %v2387
      %v3514 = vunpack.c.l.b16 %v2388
      %v3515 = vunpack.c.h.b16 %v2388
      %v3516 = vunpack.c.l.b16 %v2389
      %v3517 = vunpack.c.h.b16 %v2389
      %v3518 = vunpack.c.l.b16 %v2390
      %v3519 = vunpack.c.h.b16 %v2390
      %v3520 = vunpack.c.l.b16 %v2391
      %v3521 = vunpack.c.h.b16 %v2391
      %v3522 = vunpack.c.l.b16 %v2392
      %v3523 = vunpack.c.h.b16 %v2392
      %v3524 = vunpack.c.l.b16 %v2393
      %v3525 = vunpack.c.h.b16 %v2393
      %v3526 = vunpack.c.l.b16 %v2394
      %v3527 = vunpack.c.h.b16 %v2394
      %v3528 = vunpack.c.l.b16 %v2395
      %v3529 = vunpack.c.h.b16 %v2395
      %v3530 = vunpack.c.l.b16 %v2396
      %v3531 = vunpack.c.h.b16 %v2396
      %v3532 = vunpack.c.l.b16 %v2397
      %v3533 = vunpack.c.h.b16 %v2397
      %v3534 = vunpack.c.l.b16 %v2398
      %v3535 = vunpack.c.h.b16 %v2398
      %v3536 = vunpack.c.l.b16 %v2399
      %v3537 = vunpack.c.h.b16 %v2399
      %v3538 = vunpack.c.l.b16 %v2400
      %v3539 = vunpack.c.h.b16 %v2400
      %v3540 = vunpack.c.l.b16 %v2401
      %v3541 = vunpack.c.h.b16 %v2401
      %v3542 = vunpack.c.l.b16 %v2402
      %v3543 = vunpack.c.h.b16 %v2402
      %v3544 = vunpack.c.l.b16 %v2403
      %v3545 = vunpack.c.h.b16 %v2403
      %v3546 = vunpack.c.l.b16 %v2404
      %v3547 = vunpack.c.h.b16 %v2404
      %v3548 = vunpack.c.l.b16 %v2405
      %v3549 = vunpack.c.h.b16 %v2405
      %v3550 = vunpack.c.l.b16 %v2406
      %v3551 = vunpack.c.h.b16 %v2406
      %v3552 = vunpack.c.l.b16 %v2407
      %v3553 = vunpack.c.h.b16 %v2407
      %v3554 = vunpack.c.l.b16 %v2408
      %v3555 = vunpack.c.h.b16 %v2408
      %v3556 = vunpack.c.l.b16 %v2409
      %v3557 = vunpack.c.h.b16 %v2409
      %v3558 = vunpack.c.l.b16 %v2410
      %v3559 = vunpack.c.h.b16 %v2410
      %v3560 = vunpack.c.l.b16 %v2411
      %v3561 = vunpack.c.h.b16 %v2411
      %v3562 = vunpack.c.l.b16 %v2412
      %v3563 = vunpack.c.h.b16 %v2412
      %v3564 = vunpack.c.l.b16 %v2413
      %v3565 = vunpack.c.h.b16 %v2413
      %v3566 = vunpack.c.l.b16 %v2414
      %v3567 = vunpack.c.h.b16 %v2414
      %v3568 = vunpack.c.l.b16 %v2415
      %v3569 = vunpack.c.h.b16 %v2415
      %v3570 = vunpack.c.l.b16 %v2416
      %v3571 = vunpack.c.h.b16 %v2416
      %v3572 = vunpack.c.l.b16 %v2417
      %v3573 = vunpack.c.h.b16 %v2417
      %v3574 = vunpack.c.l.b16 %v2418
      %v3575 = vunpack.c.h.b16 %v2418
      %v3576 = vunpack.c.l.b16 %v2419
      %v3577 = vunpack.c.h.b16 %v2419
      %v3578 = vunpack.c.l.b16 %v2420
      %v3579 = vunpack.c.h.b16 %v2420
      %v3580 = vunpack.c.l.b16 %v2421
      %v3581 = vunpack.c.h.b16 %v2421
      %v3582 = vunpack.c.l.b16 %v2422
      %v3583 = vunpack.c.h.b16 %v2422
      %v3584 = vunpack.c.l.b16 %v2423
      %v3585 = vunpack.c.h.b16 %v2423
      %v3586 = vunpack.c.l.b16 %v2424
      %v3587 = vunpack.c.h.b16 %v2424
      %v3588 = vunpack.c.l.b16 %v2425
      %v3589 = vunpack.c.h.b16 %v2425
      %v3590 = vunpack.c.l.b16 %v2426
      %v3591 = vunpack.c.h.b16 %v2426
      %v3592 = vunpack.c.l.b16 %v2427
      %v3593 = vunpack.c.h.b16 %v2427
      %v3594 = vunpack.c.l.b16 %v2428
      %v3595 = vunpack.c.h.b16 %v2428
      %v3596 = vunpack.c.l.b16 %v2429
      %v3597 = vunpack.c.h.b16 %v2429
      %v3598 = vunpack.c.l.b16 %v2430
      %v3599 = vunpack.c.h.b16 %v2430
      %v3600 = vunpack.c.l.b16 %v2431
      %v3601 = vunpack.c.h.b16 %v2431
      %v3602 = vunpack.c.l.b16 %v2432
      %v3603 = vunpack.c.h.b16 %v2432
      %v3604 = vunpack.c.l.b16 %v2433
      %v3605 = vunpack.c.h.b16 %v2433
      %v3606 = vunpack.c.l.b16 %v2434
      %v3607 = vunpack.c.h.b16 %v2434
      %v3608 = vunpack.c.l.b16 %v2435
      %v3609 = vunpack.c.h.b16 %v2435
      %v3610 = vunpack.c.l.b16 %v2436
      %v3611 = vunpack.c.h.b16 %v2436
      %v3612 = vunpack.c.l.b16 %v2437
      %v3613 = vunpack.c.h.b16 %v2437
      %v3614 = vunpack.c.l.b16 %v2438
      %v3615 = vunpack.c.h.b16 %v2438
      %v3616 = vunpack.c.l.b16 %v2439
      %v3617 = vunpack.c.h.b16 %v2439
      %v3618 = vunpack.c.l.b16 %v2440
      %v3619 = vunpack.c.h.b16 %v2440
      %v3620 = vunpack.c.l.b16 %v2441
      %v3621 = vunpack.c.h.b16 %v2441
      %v3622 = vunpack.c.l.b16 %v2442
      %v3623 = vunpack.c.h.b16 %v2442
      %v3624 = vunpack.c.l.b16 %v2443
      %v3625 = vunpack.c.h.b16 %v2443
      %v3626 = vunpack.c.l.b16 %v2444
      %v3627 = vunpack.c.h.b16 %v2444
      %v3628 = vunpack.c.l.b16 %v2445
      %v3629 = vunpack.c.h.b16 %v2445
      %v3630 = vunpack.c.l.b16 %v2446
      %v3631 = vunpack.c.h.b16 %v2446
      %v3632 = vunpack.c.l.b16 %v2447
      %v3633 = vunpack.c.h.b16 %v2447
      %v3634 = vunpack.c.l.b16 %v2448
      %v3635 = vunpack.c.h.b16 %v2448
      %v3636 = vunpack.c.l.b16 %v2449
      %v3637 = vunpack.c.h.b16 %v2449
      %v3638 = vunpack.c.l.b16 %v2450
      %v3639 = vunpack.c.h.b16 %v2450
      %v3640 = vunpack.c.l.b16 %v2451
      %v3641 = vunpack.c.h.b16 %v2451
      %v3642 = vunpack.c.l.b16 %v2452
      %v3643 = vunpack.c.h.b16 %v2452
      %v3644 = vunpack.c.l.b16 %v2453
      %v3645 = vunpack.c.h.b16 %v2453
      %v3646 = vunpack.c.l.b16 %v2454
      %v3647 = vunpack.c.h.b16 %v2454
      %v3648 = vunpack.c.l.b16 %v2455
      %v3649 = vunpack.c.h.b16 %v2455
      %v3650 = vunpack.c.l.b16 %v2456
      %v3651 = vunpack.c.h.b16 %v2456
      %v3652 = vunpack.c.l.b16 %v2457
      %v3653 = vunpack.c.h.b16 %v2457
      %v3654 = vunpack.c.l.b16 %v2458
      %v3655 = vunpack.c.h.b16 %v2458
      %v3656 = vunpack.c.l.b16 %v2459
      %v3657 = vunpack.c.h.b16 %v2459
      %v3658 = vunpack.c.l.b16 %v2460
      %v3659 = vunpack.c.h.b16 %v2460
      %v3660 = vunpack.c.l.b16 %v2461
      %v3661 = vunpack.c.h.b16 %v2461
      %v3662 = vunpack.c.l.b16 %v2462
      %v3663 = vunpack.c.h.b16 %v2462
      %v3664 = vunpack.c.l.b16 %v2463
      %v3665 = vunpack.c.h.b16 %v2463
      %v3666 = vunpack.c.l.b16 %v2464
      %v3667 = vunpack.c.h.b16 %v2464
      %v3668 = vunpack.c.l.b16 %v2465
      %v3669 = vunpack.c.h.b16 %v2465
      %v3670 = vunpack.c.l.b16 %v2466
      %v3671 = vunpack.c.h.b16 %v2466
      %v3672 = vunpack.c.l.b16 %v2467
      %v3673 = vunpack.c.h.b16 %v2467
      %v3674 = vunpack.c.l.b16 %v2468
      %v3675 = vunpack.c.h.b16 %v2468
      %v3676 = vunpack.c.l.b16 %v2469
      %v3677 = vunpack.c.h.b16 %v2469
      %v3678 = vunpack.c.l.b16 %v2470
      %v3679 = vunpack.c.h.b16 %v2470
      %v3680 = vunpack.c.l.b16 %v2471
      %v3681 = vunpack.c.h.b16 %v2471
      %v3682 = vunpack.c.l.b16 %v2472
      %v3683 = vunpack.c.h.b16 %v2472
      %v3684 = vunpack.c.l.b16 %v2473
      %v3685 = vunpack.c.h.b16 %v2473
      %v3686 = vunpack.c.l.b16 %v2474
      %v3687 = vunpack.c.h.b16 %v2474
      %v3688 = vunpack.c.l.b16 %v2475
      %v3689 = vunpack.c.h.b16 %v2475
      %v3690 = vunpack.c.l.b16 %v2476
      %v3691 = vunpack.c.h.b16 %v2476
      %v3692 = vunpack.c.l.b16 %v2477
      %v3693 = vunpack.c.h.b16 %v2477
      %v3694 = vunpack.c.l.b16 %v2478
      %v3695 = vunpack.c.h.b16 %v2478
      %v3696 = vunpack.c.l.b16 %v2479
      %v3697 = vunpack.c.h.b16 %v2479
      %v3698 = vunpack.c.l.b16 %v2480
      %v3699 = vunpack.c.h.b16 %v2480
      %v3700 = vunpack.c.l.b16 %v2481
      %v3701 = vunpack.c.h.b16 %v2481
      %v3702 = vunpack.c.l.b16 %v2482
      %v3703 = vunpack.c.h.b16 %v2482
      %v3704 = vunpack.c.l.b16 %v2483
      %v3705 = vunpack.c.h.b16 %v2483
      %v3706 = vunpack.c.l.b16 %v2484
      %v3707 = vunpack.c.h.b16 %v2484
      %v3708 = vunpack.c.l.b16 %v2485
      %v3709 = vunpack.c.h.b16 %v2485
      %v3710 = vunpack.c.l.b16 %v2486
      %v3711 = vunpack.c.h.b16 %v2486
      %v3712 = vunpack.c.l.b16 %v2487
      %v3713 = vunpack.c.h.b16 %v2487
      %v3714 = vunpack.c.l.b16 %v2488
      %v3715 = vunpack.c.h.b16 %v2488
      %v3716 = vunpack.c.l.b16 %v2489
      %v3717 = vunpack.c.h.b16 %v2489
      %v3718 = vunpack.c.l.b16 %v2490
      %v3719 = vunpack.c.h.b16 %v2490
      %v3720 = vunpack.c.l.b16 %v2491
      %v3721 = vunpack.c.h.b16 %v2491
      %v3722 = vunpack.c.l.b16 %v2492
      %v3723 = vunpack.c.h.b16 %v2492
      %v3724 = vunpack.c.l.b16 %v2493
      %v3725 = vunpack.c.h.b16 %v2493
      %v3726 = vunpack.c.l.b16 %v2494
      %v3727 = vunpack.c.h.b16 %v2494
      %v3728 = vunpack.c.l.b16 %v2495
      %v3729 = vunpack.c.h.b16 %v2495
      %v3730 = vunpack.c.l.b16 %v2496
      %v3731 = vunpack.c.h.b16 %v2496
      %v3732 = vunpack.c.l.b16 %v2497
      %v3733 = vunpack.c.h.b16 %v2497
      %v3734 = vunpack.c.l.b16 %v2498
      %v3735 = vunpack.c.h.b16 %v2498
      %v3736 = vunpack.c.l.b16 %v2499
      %v3737 = vunpack.c.h.b16 %v2499
      %v3738 = vunpack.c.l.b16 %v2500
      %v3739 = vunpack.c.h.b16 %v2500
      %v3740 = vunpack.c.l.b16 %v2501
      %v3741 = vunpack.c.h.b16 %v2501
      %v3742 = vunpack.c.l.b16 %v2502
      %v3743 = vunpack.c.h.b16 %v2502
      %v3744 = vunpack.c.l.b16 %v2503
      %v3745 = vunpack.c.h.b16 %v2503
      %v3746 = vunpack.c.l.b16 %v2504
      %v3747 = vunpack.c.h.b16 %v2504
      %v3748 = vunpack.c.l.b16 %v2505
      %v3749 = vunpack.c.h.b16 %v2505
      %v3750 = vunpack.c.l.b16 %v2506
      %v3751 = vunpack.c.h.b16 %v2506
      %v3752 = vunpack.c.l.b16 %v2507
      %v3753 = vunpack.c.h.b16 %v2507
      %v3754 = vunpack.c.l.b16 %v2508
      %v3755 = vunpack.c.h.b16 %v2508
      %v3756 = vunpack.c.l.b16 %v2509
      %v3757 = vunpack.c.h.b16 %v2509
      %v3758 = vunpack.c.l.b16 %v2510
      %v3759 = vunpack.c.h.b16 %v2510
      %v3760 = vunpack.c.l.b16 %v2511
      %v3761 = vunpack.c.h.b16 %v2511
      %v3762 = vunpack.c.l.b16 %v2512
      %v3763 = vunpack.c.h.b16 %v2512
      %v3764 = vunpack.c.l.b16 %v2513
      %v3765 = vunpack.c.h.b16 %v2513
      %v3766 = vunpack.c.l.b16 %v2514
      %v3767 = vunpack.c.h.b16 %v2514
      %v3768 = vunpack.c.l.b16 %v2515
      %v3769 = vunpack.c.h.b16 %v2515
      %v3770 = vunpack.c.l.b16 %v2516
      %v3771 = vunpack.c.h.b16 %v2516
      %v3772 = vunpack.c.l.b16 %v2517
      %v3773 = vunpack.c.h.b16 %v2517
      %v3774 = vunpack.c.l.b16 %v2518
      %v3775 = vunpack.c.h.b16 %v2518
      %v3776 = vunpack.c.l.b16 %v2519
      %v3777 = vunpack.c.h.b16 %v2519
      %v3778 = vunpack.c.l.b16 %v2520
      %v3779 = vunpack.c.h.b16 %v2520
      %v3780 = vunpack.c.l.b16 %v2521
      %v3781 = vunpack.c.h.b16 %v2521
      %v3782 = vunpack.c.l.b16 %v2522
      %v3783 = vunpack.c.h.b16 %v2522
      %v3784 = vunpack.c.l.b16 %v2523
      %v3785 = vunpack.c.h.b16 %v2523
      %v3786 = vunpack.c.l.b16 %v2524
      %v3787 = vunpack.c.h.b16 %v2524
      %v3788 = vunpack.c.l.b16 %v2525
      %v3789 = vunpack.c.h.b16 %v2525
      %v3790 = vunpack.c.l.b16 %v2526
      %v3791 = vunpack.c.h.b16 %v2526
      %v3792 = vunpack.c.l.b16 %v2527
      %v3793 = vunpack.c.h.b16 %v2527
      %v3794 = vunpack.c.l.b16 %v2528
      %v3795 = vunpack.c.h.b16 %v2528
      %v3796 = vunpack.c.l.b16 %v2529
      %v3797 = vunpack.c.h.b16 %v2529
      %v3798 = vunpack.c.l.b16 %v2530
      %v3799 = vunpack.c.h.b16 %v2530
      %v3800 = vunpack.c.l.b16 %v2531
      %v3801 = vunpack.c.h.b16 %v2531
      %v3802 = vunpack.c.l.b16 %v2532
      %v3803 = vunpack.c.h.b16 %v2532
      %v3804 = vunpack.c.l.b16 %v2533
      %v3805 = vunpack.c.h.b16 %v2533
      %v3806 = vunpack.c.l.b16 %v2534
      %v3807 = vunpack.c.h.b16 %v2534
      %v3808 = vunpack.c.l.b16 %v2535
      %v3809 = vunpack.c.h.b16 %v2535
      %v3810 = vunpack.c.l.b16 %v2536
      %v3811 = vunpack.c.h.b16 %v2536
      %v3812 = vunpack.c.l.b16 %v2537
      %v3813 = vunpack.c.h.b16 %v2537
      %v3814 = vunpack.c.l.b16 %v2538
      %v3815 = vunpack.c.h.b16 %v2538
      %v3816 = vunpack.c.l.b16 %v2539
      %v3817 = vunpack.c.h.b16 %v2539
      %v3818 = vunpack.c.l.b16 %v2540
      %v3819 = vunpack.c.h.b16 %v2540
      %v3820 = vunpack.c.l.b16 %v2541
      %v3821 = vunpack.c.h.b16 %v2541
      %v3822 = vunpack.c.l.b16 %v2542
      %v3823 = vunpack.c.h.b16 %v2542
      %v3824 = vunpack.c.l.b16 %v2543
      %v3825 = vunpack.c.h.b16 %v2543
      %v3826 = vunpack.c.l.b16 %v2544
      %v3827 = vunpack.c.h.b16 %v2544
      %v3828 = vunpack.c.l.b16 %v2545
      %v3829 = vunpack.c.h.b16 %v2545
      %v3830 = vunpack.c.l.b16 %v2546
      %v3831 = vunpack.c.h.b16 %v2546
      %v3832 = vunpack.c.l.b16 %v2547
      %v3833 = vunpack.c.h.b16 %v2547
      %v3834 = vunpack.c.l.b16 %v2548
      %v3835 = vunpack.c.h.b16 %v2548
      %v3836 = vunpack.c.l.b16 %v2549
      %v3837 = vunpack.c.h.b16 %v2549
      %v3838 = vunpack.c.l.b16 %v2550
      %v3839 = vunpack.c.h.b16 %v2550
      %v3840 = vunpack.c.l.b16 %v2551
      %v3841 = vunpack.c.h.b16 %v2551
      %v3842 = vunpack.c.l.b16 %v2552
      %v3843 = vunpack.c.h.b16 %v2552
      %v3844 = vunpack.c.l.b16 %v2553
      %v3845 = vunpack.c.h.b16 %v2553
      %v3846 = vunpack.c.l.b16 %v2554
      %v3847 = vunpack.c.h.b16 %v2554
      %v3848 = vunpack.c.l.b16 %v2555
      %v3849 = vunpack.c.h.b16 %v2555
      %v3850 = vunpack.c.l.b16 %v2556
      %v3851 = vunpack.c.h.b16 %v2556
      %v3852 = vunpack.c.l.b16 %v2557
      %v3853 = vunpack.c.h.b16 %v2557
      %v3854 = vunpack.c.l.b16 %v2558
      %v3855 = vunpack.c.h.b16 %v2558
      %v3856 = vunpack.c.l.b16 %v2559
      %v3857 = vunpack.c.h.b16 %v2559
      %v3858 = vunpack.c.l.b16 %v2560
      %v3859 = vunpack.c.h.b16 %v2560
      %v3860 = vunpack.c.l.b16 %v2561
      %v3861 = vunpack.c.h.b16 %v2561
      %v3862 = vunpack.c.l.b16 %v2562
      %v3863 = vunpack.c.h.b16 %v2562
      %v3864 = vunpack.c.l.b16 %v2563
      %v3865 = vunpack.c.h.b16 %v2563
      %v3866 = vunpack.c.l.b16 %v2564
      %v3867 = vunpack.c.h.b16 %v2564
      %v3868 = vunpack.c.l.b16 %v2565
      %v3869 = vunpack.c.h.b16 %v2565
      %v3870 = vunpack.c.l.b16 %v2566
      %v3871 = vunpack.c.h.b16 %v2566
      %v3872 = vunpack.c.l.b16 %v2567
      %v3873 = vunpack.c.h.b16 %v2567
      %v3874 = vunpack.c.l.b16 %v2568
      %v3875 = vunpack.c.h.b16 %v2568
      %v3876 = vunpack.c.l.b16 %v2569
      %v3877 = vunpack.c.h.b16 %v2569
      %v3878 = vunpack.c.l.b16 %v2570
      %v3879 = vunpack.c.h.b16 %v2570
      %v3880 = vunpack.c.l.b16 %v2571
      %v3881 = vunpack.c.h.b16 %v2571
      %v3882 = vunpack.c.l.b16 %v2572
      %v3883 = vunpack.c.h.b16 %v2572
      %v3884 = vunpack.c.l.b16 %v2573
      %v3885 = vunpack.c.h.b16 %v2573
      %v3886 = vunpack.c.l.b16 %v2574
      %v3887 = vunpack.c.h.b16 %v2574
      %v3888 = vunpack.c.l.b16 %v2575
      %v3889 = vunpack.c.h.b16 %v2575
      %v3890 = vunpack.c.l.b16 %v2576
      %v3891 = vunpack.c.h.b16 %v2576
      %v3892 = vunpack.c.l.b16 %v2577
      %v3893 = vunpack.c.h.b16 %v2577
      %v3894 = vunpack.c.l.b16 %v2578
      %v3895 = vunpack.c.h.b16 %v2578
      %v3896 = vunpack.c.l.b16 %v2579
      %v3897 = vunpack.c.h.b16 %v2579
      %v3898 = vunpack.c.l.b16 %v2580
      %v3899 = vunpack.c.h.b16 %v2580
      %v3900 = vunpack.c.l.b16 %v2581
      %v3901 = vunpack.c.h.b16 %v2581
      %v3902 = vunpack.c.l.b16 %v2582
      %v3903 = vunpack.c.h.b16 %v2582
      %v3904 = vunpack.c.l.b16 %v2583
      %v3905 = vunpack.c.h.b16 %v2583
      %v3906 = vunpack.c.l.b16 %v2584
      %v3907 = vunpack.c.h.b16 %v2584
      %v3908 = vunpack.c.l.b16 %v2585
      %v3909 = vunpack.c.h.b16 %v2585
      %v3910 = vunpack.c.l.b16 %v2586
      %v3911 = vunpack.c.h.b16 %v2586
      %v3912 = vunpack.c.l.b16 %v2587
      %v3913 = vunpack.c.h.b16 %v2587
      %v3914 = vunpack.c.l.b16 %v2588
      %v3915 = vunpack.c.h.b16 %v2588
      %v3916 = vunpack.c.l.b16 %v2589
      %v3917 = vunpack.c.h.b16 %v2589
      %v3918 = vunpack.c.l.b16 %v2590
      %v3919 = vunpack.c.h.b16 %v2590
      %v3920 = vunpack.c.l.b16 %v2591
      %v3921 = vunpack.c.h.b16 %v2591
      %v3922 = vunpack.c.l.b16 %v2592
      %v3923 = vunpack.c.h.b16 %v2592
      %v3924 = vunpack.c.l.b16 %v2593
      %v3925 = vunpack.c.h.b16 %v2593
      %v3926 = vunpack.c.l.b16 %v2594
      %v3927 = vunpack.c.h.b16 %v2594
      %v3928 = vunpack.c.l.b16 %v2595
      %v3929 = vunpack.c.h.b16 %v2595
      %v3930 = vunpack.c.l.b16 %v2596
      %v3931 = vunpack.c.h.b16 %v2596
      %v3932 = vunpack.c.l.b16 %v2597
      %v3933 = vunpack.c.h.b16 %v2597
      %v3934 = vunpack.c.l.b16 %v2598
      %v3935 = vunpack.c.h.b16 %v2598
      %v3936 = vunpack.c.l.b16 %v2599
      %v3937 = vunpack.c.h.b16 %v2599
      %v3938 = vunpack.c.l.b16 %v2600
      %v3939 = vunpack.c.h.b16 %v2600
      %v3940 = vunpack.c.l.b16 %v2601
      %v3941 = vunpack.c.h.b16 %v2601
      %v3942 = vunpack.c.l.b16 %v2602
      %v3943 = vunpack.c.h.b16 %v2602
      %v3944 = vunpack.c.l.b16 %v2603
      %v3945 = vunpack.c.h.b16 %v2603
      %v3946 = vunpack.c.l.b16 %v2604
      %v3947 = vunpack.c.h.b16 %v2604
      %v3948 = vunpack.c.l.b16 %v2605
      %v3949 = vunpack.c.h.b16 %v2605
      %v3950 = vunpack.c.l.b16 %v2606
      %v3951 = vunpack.c.h.b16 %v2606
      %v3952 = vunpack.c.l.b16 %v2607
      %v3953 = vunpack.c.h.b16 %v2607
      %v3954 = vunpack.c.l.b16 %v2608
      %v3955 = vunpack.c.h.b16 %v2608
      %v3956 = vunpack.c.l.b16 %v2609
      %v3957 = vunpack.c.h.b16 %v2609
      %v3958 = vunpack.c.l.b16 %v2610
      %v3959 = vunpack.c.h.b16 %v2610
      %v3960 = vunpack.c.l.b16 %v2611
      %v3961 = vunpack.c.h.b16 %v2611
      %v3962 = vunpack.c.l.b16 %v2612
      %v3963 = vunpack.c.h.b16 %v2612
      %v3964 = vunpack.c.l.b16 %v2613
      %v3965 = vunpack.c.h.b16 %v2613
      %v3966 = vunpack.c.l.b16 %v2614
      %v3967 = vunpack.c.h.b16 %v2614
      %v3968 = vunpack.c.l.b16 %v2615
      %v3969 = vunpack.c.h.b16 %v2615
      %v3970 = vunpack.c.l.b16 %v2616
      %v3971 = vunpack.c.h.b16 %v2616
      %v3972 = vunpack.c.l.b16 %v2617
      %v3973 = vunpack.c.h.b16 %v2617
      %v3974 = vunpack.c.l.b16 %v2618
      %v3975 = vunpack.c.h.b16 %v2618
      %v3976 = vunpack.c.l.b16 %v2619
      %v3977 = vunpack.c.h.b16 %v2619
      %v3978 = vunpack.c.l.b16 %v2620
      %v3979 = vunpack.c.h.b16 %v2620
      %v3980 = vunpack.c.l.b16 %v2621
      %v3981 = vunpack.c.h.b16 %v2621
      %v3982 = vunpack.c.l.b16 %v2622
      %v3983 = vunpack.c.h.b16 %v2622
      %v3984 = vunpack.c.l.b16 %v2623
      %v3985 = vunpack.c.h.b16 %v2623
      %v3986 = vunpack.c.l.b16 %v2624
      %v3987 = vunpack.c.h.b16 %v2624
      %v3988 = vunpack.c.l.b16 %v2625
      %v3989 = vunpack.c.h.b16 %v2625
      %v3990 = vunpack.c.l.b16 %v2626
      %v3991 = vunpack.c.h.b16 %v2626
      %v3992 = vunpack.c.l.b16 %v2627
      %v3993 = vunpack.c.h.b16 %v2627
      %v3994 = vunpack.c.l.b16 %v2628
      %v3995 = vunpack.c.h.b16 %v2628
      %v3996 = vunpack.c.l.b16 %v2629
      %v3997 = vunpack.c.h.b16 %v2629
      %v3998 = vunpack.c.l.b16 %v2630
      %v3999 = vunpack.c.h.b16 %v2630
      %v4000 = vunpack.c.l.b16 %v2631
      %v4001 = vunpack.c.h.b16 %v2631
      %v4002 = vunpack.c.l.b16 %v2632
      %v4003 = vunpack.c.h.b16 %v2632
      %v4004 = vunpack.c.l.b16 %v2633
      %v4005 = vunpack.c.h.b16 %v2633
      %v4006 = vunpack.c.l.b16 %v2634
      %v4007 = vunpack.c.h.b16 %v2634
      %v4008 = vunpack.c.l.b16 %v2635
      %v4009 = vunpack.c.h.b16 %v2635
      %v4010 = vunpack.c.l.b16 %v2636
      %v4011 = vunpack.c.h.b16 %v2636
      %v4012 = vunpack.c.l.b16 %v2637
      %v4013 = vunpack.c.h.b16 %v2637
      %v4014 = vunpack.c.l.b16 %v2638
      %v4015 = vunpack.c.h.b16 %v2638
      %v4016 = vunpack.c.l.b16 %v2639
      %v4017 = vunpack.c.h.b16 %v2639
      %v4018 = vunpack.c.l.b16 %v2640
      %v4019 = vunpack.c.h.b16 %v2640
      %v4020 = vunpack.c.l.b16 %v2641
      %v4021 = vunpack.c.h.b16 %v2641
      %v4022 = vunpack.c.l.b16 %v2642
      %v4023 = vunpack.c.h.b16 %v2642
      %v4024 = vunpack.c.l.b16 %v2643
      %v4025 = vunpack.c.h.b16 %v2643
      %v4026 = vunpack.c.l.b16 %v2644
      %v4027 = vunpack.c.h.b16 %v2644
      %v4028 = vunpack.c.l.b16 %v2645
      %v4029 = vunpack.c.h.b16 %v2645
      %v4030 = vunpack.c.l.b16 %v2646
      %v4031 = vunpack.c.h.b16 %v2646
      %v4032 = vunpack.c.l.b16 %v2647
      %v4033 = vunpack.c.h.b16 %v2647
      %v4034 = vunpack.c.l.b16 %v2648
      %v4035 = vunpack.c.h.b16 %v2648
      %v4036 = vunpack.c.l.b16 %v2649
      %v4037 = vunpack.c.h.b16 %v2649
      %v4038 = vunpack.c.l.b16 %v2650
      %v4039 = vunpack.c.h.b16 %v2650
      %v4040 = vunpack.c.l.b16 %v2651
      %v4041 = vunpack.c.h.b16 %v2651
      %v4042 = vunpack.c.l.b16 %v2652
      %v4043 = vunpack.c.h.b16 %v2652
      %v4044 = vunpack.c.l.b16 %v2653
      %v4045 = vunpack.c.h.b16 %v2653
      %v4046 = vunpack.c.l.b16 %v2654
      %v4047 = vunpack.c.h.b16 %v2654
      %v4048 = vunpack.c.l.b16 %v2655
      %v4049 = vunpack.c.h.b16 %v2655
      %v4050 = vunpack.c.l.b16 %v2656
      %v4051 = vunpack.c.h.b16 %v2656
      %v4052 = vunpack.c.l.b16 %v2657
      %v4053 = vunpack.c.h.b16 %v2657
      %v4054 = vunpack.c.l.b16 %v2658
      %v4055 = vunpack.c.h.b16 %v2658
      %v4056 = vunpack.c.l.b16 %v2659
      %v4057 = vunpack.c.h.b16 %v2659
      %v4058 = vunpack.c.l.b16 %v2660
      %v4059 = vunpack.c.h.b16 %v2660
      %v4060 = vunpack.c.l.b16 %v2661
      %v4061 = vunpack.c.h.b16 %v2661
      %v4062 = vunpack.c.l.b16 %v2662
      %v4063 = vunpack.c.h.b16 %v2662
      %v4064 = vunpack.c.l.b16 %v2663
      %v4065 = vunpack.c.h.b16 %v2663
      %v4066 = vunpack.c.l.b16 %v2664
      %v4067 = vunpack.c.h.b16 %v2664
      %v4068 = vunpack.c.l.b16 %v2665
      %v4069 = vunpack.c.h.b16 %v2665
      %v4070 = vunpack.c.l.b16 %v2666
      %v4071 = vunpack.c.h.b16 %v2666
      %v4072 = vunpack.c.l.b16 %v2667
      %v4073 = vunpack.c.h.b16 %v2667
      %v4074 = vunpack.c.l.b16 %v2668
      %v4075 = vunpack.c.h.b16 %v2668
      %v4076 = vunpack.c.l.b16 %v2669
      %v4077 = vunpack.c.h.b16 %v2669
      %v4078 = vunpack.c.l.b16 %v2670
      %v4079 = vunpack.c.h.b16 %v2670
      %v4080 = vunpack.c.l.b16 %v2671
      %v4081 = vunpack.c.h.b16 %v2671
      %v4082 = vunpack.c.l.b16 %v2672
      %v4083 = vunpack.c.h.b16 %v2672
      %v4084 = vunpack.c.l.b16 %v2673
      %v4085 = vunpack.c.h.b16 %v2673
      %v4086 = vunpack.c.l.b16 %v2674
      %v4087 = vunpack.c.h.b16 %v2674
      %v4088 = vunpack.c.l.b16 %v2675
      %v4089 = vunpack.c.h.b16 %v2675
      %v4090 = vunpack.c.l.b16 %v2676
      %v4091 = vunpack.c.h.b16 %v2676
      %v4092 = vunpack.c.l.b16 %v2677
      %v4093 = vunpack.c.h.b16 %v2677
      %v4094 = vunpack.c.l.b16 %v2678
      %v4095 = vunpack.c.h.b16 %v2678
      %v4096 = vunpack.c.l.b16 %v2679
      %v4097 = vunpack.c.h.b16 %v2679
      %v4098 = vunpack.c.l.b16 %v2680
      %v4099 = vunpack.c.h.b16 %v2680
      %v4100 = vunpack.c.l.b16 %v2681
      %v4101 = vunpack.c.h.b16 %v2681
      %v4102 = vunpack.c.l.b16 %v2682
      %v4103 = vunpack.c.h.b16 %v2682
      %v4104 = vunpack.c.l.b16 %v2683
      %v4105 = vunpack.c.h.b16 %v2683
      %v4106 = vunpack.c.l.b16 %v2684
      %v4107 = vunpack.c.h.b16 %v2684
      %v4108 = vunpack.c.l.b16 %v2685
      %v4109 = vunpack.c.h.b16 %v2685
      %v4110 = vunpack.c.l.b16 %v2686
      %v4111 = vunpack.c.h.b16 %v2686
      %v4112 = vunpack.c.l.b16 %v2687
      %v4113 = vunpack.c.h.b16 %v2687
      %v4114 = vunpack.c.l.b16 %v2688
      %v4115 = vunpack.c.h.b16 %v2688
      %v4116 = vunpack.c.l.b16 %v2689
      %v4117 = vunpack.c.h.b16 %v2689
      %v4118 = vunpack.c.l.b16 %v2690
      %v4119 = vunpack.c.h.b16 %v2690
      %v4120 = vunpack.c.l.b16 %v2691
      %v4121 = vunpack.c.h.b16 %v2691
      %v4122 = vunpack.c.l.b16 %v2692
      %v4123 = vunpack.c.h.b16 %v2692
      %v4124 = vunpack.c.l.b16 %v2693
      %v4125 = vunpack.c.h.b16 %v2693
      %v4126 = vunpack.c.l.b16 %v2694
      %v4127 = vunpack.c.h.b16 %v2694
      %v4128 = vunpack.c.l.b16 %v2695
      %v4129 = vunpack.c.h.b16 %v2695
      %v4130 = vunpack.c.l.b16 %v2696
      %v4131 = vunpack.c.h.b16 %v2696
      %v4132 = vunpack.c.l.b16 %v2697
      %v4133 = vunpack.c.h.b16 %v2697
      %v4134 = vunpack.c.l.b16 %v2698
      %v4135 = vunpack.c.h.b16 %v2698
      %v4136 = vunpack.c.l.b16 %v2699
      %v4137 = vunpack.c.h.b16 %v2699
      %v4138 = vunpack.c.l.b16 %v2700
      %v4139 = vunpack.c.h.b16 %v2700
      %v4140 = vunpack.c.l.b16 %v2701
      %v4141 = vunpack.c.h.b16 %v2701
      %v4142 = vunpack.c.l.b16 %v2702
      %v4143 = vunpack.c.h.b16 %v2702
      %v4144 = vunpack.c.l.b16 %v2703
      %v4145 = vunpack.c.h.b16 %v2703
      %v4146 = vunpack.c.l.b16 %v2704
      %v4147 = vunpack.c.h.b16 %v2704
      %v4148 = vunpack.c.l.b16 %v2705
      %v4149 = vunpack.c.h.b16 %v2705
      %v4150 = vunpack.c.l.b16 %v2706
      %v4151 = vunpack.c.h.b16 %v2706
      %v4152 = vunpack.c.l.b16 %v2707
      %v4153 = vunpack.c.h.b16 %v2707
      %v4154 = vunpack.c.l.b16 %v2708
      %v4155 = vunpack.c.h.b16 %v2708
      %v4156 = vunpack.c.l.b16 %v2709
      %v4157 = vunpack.c.h.b16 %v2709
      %v4158 = vunpack.c.l.b16 %v2710
      %v4159 = vunpack.c.h.b16 %v2710
      %v4160 = vunpack.c.l.b16 %v2711
      %v4161 = vunpack.c.h.b16 %v2711
      %v4162 = vunpack.c.l.b16 %v2712
      %v4163 = vunpack.c.h.b16 %v2712
      %v4164 = vunpack.c.l.b16 %v2713
      %v4165 = vunpack.c.h.b16 %v2713
      %v4166 = vunpack.c.l.b16 %v2714
      %v4167 = vunpack.c.h.b16 %v2714
      %v4168 = vunpack.c.l.b16 %v2715
      %v4169 = vunpack.c.h.b16 %v2715
      %v4170 = vunpack.c.l.b16 %v2716
      %v4171 = vunpack.c.h.b16 %v2716
      %v4172 = vunpack.c.l.b16 %v2717
      %v4173 = vunpack.c.h.b16 %v2717
      %v4174 = vunpack.c.l.b16 %v2718
      %v4175 = vunpack.c.h.b16 %v2718
      %v4176 = vunpack.c.l.b16 %v2719
      %v4177 = vunpack.c.h.b16 %v2719
      %v4178 = vunpack.c.l.b16 %v2720
      %v4179 = vunpack.c.h.b16 %v2720
      %v4180 = vunpack.c.l.b16 %v2721
      %v4181 = vunpack.c.h.b16 %v2721
      %v4182 = vunpack.c.l.b16 %v2722
      %v4183 = vunpack.c.h.b16 %v2722
      %v4184 = vunpack.c.l.b16 %v2723
      %v4185 = vunpack.c.h.b16 %v2723
      %v4186 = vunpack.c.l.b16 %v2724
      %v4187 = vunpack.c.h.b16 %v2724
      %v4188 = vunpack.c.l.b16 %v2725
      %v4189 = vunpack.c.h.b16 %v2725
      %v4190 = vunpack.c.l.b16 %v2726
      %v4191 = vunpack.c.h.b16 %v2726
      %v4192 = vunpack.c.l.b16 %v2727
      %v4193 = vunpack.c.h.b16 %v2727
      %v4194 = vunpack.c.l.b16 %v2728
      %v4195 = vunpack.c.h.b16 %v2728
      %v4196 = vunpack.c.l.b16 %v2729
      %v4197 = vunpack.c.h.b16 %v2729
      %v4198 = vunpack.c.l.b16 %v2730
      %v4199 = vunpack.c.h.b16 %v2730
      %v4200 = vunpack.c.l.b16 %v2731
      %v4201 = vunpack.c.h.b16 %v2731
      %v4202 = vunpack.c.l.b16 %v2732
      %v4203 = vunpack.c.h.b16 %v2732
      %v4204 = vunpack.c.l.b16 %v2733
      %v4205 = vunpack.c.h.b16 %v2733
      %v4206 = vunpack.c.l.b16 %v2734
      %v4207 = vunpack.c.h.b16 %v2734
      %v4208 = vunpack.c.l.b16 %v2735
      %v4209 = vunpack.c.h.b16 %v2735
      %v4210 = vunpack.c.l.b16 %v2736
      %v4211 = vunpack.c.h.b16 %v2736
      %v4212 = vunpack.c.l.b16 %v2737
      %v4213 = vunpack.c.h.b16 %v2737
      %v4214 = vunpack.c.l.b16 %v2738
      %v4215 = vunpack.c.h.b16 %v2738
      %v4216 = vunpack.c.l.b16 %v2739
      %v4217 = vunpack.c.h.b16 %v2739
      %v4218 = vunpack.c.l.b16 %v2740
      %v4219 = vunpack.c.h.b16 %v2740
      %v4220 = vunpack.c.l.b16 %v2741
      %v4221 = vunpack.c.h.b16 %v2741
      %v4222 = vunpack.c.l.b16 %v2742
      %v4223 = vunpack.c.h.b16 %v2742
      %v4224 = vunpack.c.l.b16 %v2743
      %v4225 = vunpack.c.h.b16 %v2743
      %v4226 = vunpack.c.l.b16 %v2744
      %v4227 = vunpack.c.h.b16 %v2744
      %v4228 = vunpack.c.l.b16 %v2745
      %v4229 = vunpack.c.h.b16 %v2745
      %v4230 = vunpack.c.l.b16 %v2746
      %v4231 = vunpack.c.h.b16 %v2746
      %v4232 = vunpack.c.l.b16 %v2747
      %v4233 = vunpack.c.h.b16 %v2747
      %v4234 = vunpack.c.l.b16 %v2748
      %v4235 = vunpack.c.h.b16 %v2748
      %v4236 = vunpack.c.l.b16 %v2749
      %v4237 = vunpack.c.h.b16 %v2749
      %v4238 = vunpack.c.l.b16 %v2750
      %v4239 = vunpack.c.h.b16 %v2750
      %v4240 = vunpack.c.l.b16 %v2751
      %v4241 = vunpack.c.h.b16 %v2751
      %v4242 = vunpack.c.l.b16 %v2752
      %v4243 = vunpack.c.h.b16 %v2752
      %v4244 = vunpack.c.l.b16 %v2753
      %v4245 = vunpack.c.h.b16 %v2753
      %v4246 = vunpack.c.l.b16 %v2754
      %v4247 = vunpack.c.h.b16 %v2754
      %v4248 = vunpack.c.l.b16 %v2755
      %v4249 = vunpack.c.h.b16 %v2755
      %v4250 = vunpack.c.l.b16 %v2756
      %v4251 = vunpack.c.h.b16 %v2756
      %v4252 = vunpack.c.l.b16 %v2757
      %v4253 = vunpack.c.h.b16 %v2757
      %v4254 = vunpack.c.l.b16 %v2758
      %v4255 = vunpack.c.h.b16 %v2758
      %v4256 = vunpack.c.l.b16 %v2759
      %v4257 = vunpack.c.h.b16 %v2759
      %v4258 = vunpack.c.l.b16 %v2760
      %v4259 = vunpack.c.h.b16 %v2760
      %v4260 = vunpack.c.l.b16 %v2761
      %v4261 = vunpack.c.h.b16 %v2761
      %v4262 = vunpack.c.l.b16 %v2762
      %v4263 = vunpack.c.h.b16 %v2762
      %v4264 = vunpack.c.l.b16 %v2763
      %v4265 = vunpack.c.h.b16 %v2763
      %v4266 = vunpack.c.l.b16 %v2764
      %v4267 = vunpack.c.h.b16 %v2764
      %v4268 = vunpack.c.l.b16 %v2765
      %v4269 = vunpack.c.h.b16 %v2765
      %v4270 = vunpack.c.l.b16 %v2766
      %v4271 = vunpack.c.h.b16 %v2766
      %v4272 = vunpack.c.l.b16 %v2767
      %v4273 = vunpack.c.h.b16 %v2767
      %v4274 = vunpack.c.l.b16 %v2768
      %v4275 = vunpack.c.h.b16 %v2768
      %v4276 = vunpack.c.l.b16 %v2769
      %v4277 = vunpack.c.h.b16 %v2769
      %v4278 = vunpack.c.l.b16 %v2770
      %v4279 = vunpack.c.h.b16 %v2770
      %v4280 = vunpack.c.l.b16 %v2771
      %v4281 = vunpack.c.h.b16 %v2771
      %v4282 = vunpack.c.l.b16 %v2772
      %v4283 = vunpack.c.h.b16 %v2772
      %v4284 = vunpack.c.l.b16 %v2773
      %v4285 = vunpack.c.h.b16 %v2773
      %v4286 = vunpack.c.l.b16 %v2774
      %v4287 = vunpack.c.h.b16 %v2774
      %v4288 = vunpack.c.l.b16 %v2775
      %v4289 = vunpack.c.h.b16 %v2775
      %v4290 = vunpack.c.l.b16 %v2776
      %v4291 = vunpack.c.h.b16 %v2776
      %v4292 = vunpack.c.l.b16 %v2777
      %v4293 = vunpack.c.h.b16 %v2777
      %v4294 = vunpack.c.l.b16 %v2778
      %v4295 = vunpack.c.h.b16 %v2778
      %v4296 = vunpack.c.l.b16 %v2779
      %v4297 = vunpack.c.h.b16 %v2779
      %v4298 = vunpack.c.l.b16 %v2780
      %v4299 = vunpack.c.h.b16 %v2780
      %v4300 = vunpack.c.l.b16 %v2781
      %v4301 = vunpack.c.h.b16 %v2781
      %v4302 = vunpack.c.l.b16 %v2782
      %v4303 = vunpack.c.h.b16 %v2782
      %v4304 = vunpack.c.l.b16 %v2783
      %v4305 = vunpack.c.h.b16 %v2783
      %v4306 = vunpack.c.l.b16 %v2784
      %v4307 = vunpack.c.h.b16 %v2784
      %v4308 = vunpack.c.l.b16 %v2785
      %v4309 = vunpack.c.h.b16 %v2785
      %v4310 = vunpack.c.l.b16 %v2786
      %v4311 = vunpack.c.h.b16 %v2786
      %v4312 = vunpack.c.l.b16 %v2787
      %v4313 = vunpack.c.h.b16 %v2787
      %v4314 = vunpack.c.l.b16 %v2788
      %v4315 = vunpack.c.h.b16 %v2788
      %v4316 = vunpack.c.l.b16 %v2789
      %v4317 = vunpack.c.h.b16 %v2789
      %v4318 = vunpack.c.l.b16 %v2790
      %v4319 = vunpack.c.h.b16 %v2790
      %v4320 = vunpack.c.l.b16 %v2791
      %v4321 = vunpack.c.h.b16 %v2791
      %v4322 = vunpack.c.l.b16 %v2792
      %v4323 = vunpack.c.h.b16 %v2792
      %v4324 = vunpack.c.l.b16 %v2793
      %v4325 = vunpack.c.h.b16 %v2793
      %v4326 = vunpack.c.l.b16 %v2794
      %v4327 = vunpack.c.h.b16 %v2794
      %v4328 = vunpack.c.l.b16 %v2795
      %v4329 = vunpack.c.h.b16 %v2795
      %v4330 = vunpack.c.l.b16 %v2796
      %v4331 = vunpack.c.h.b16 %v2796
      %v4332 = vunpack.c.l.b16 %v2797
      %v4333 = vunpack.c.h.b16 %v2797
      %v4334 = vunpack.c.l.b16 %v2798
      %v4335 = vunpack.c.h.b16 %v2798
      %v4336 = vunpack.c.l.b16 %v2799
      %v4337 = vunpack.c.h.b16 %v2799
      %v4338 = vunpack.c.l.b16 %v2800
      %v4339 = vunpack.c.h.b16 %v2800
      %v4340 = vunpack.c.l.b16 %v2801
      %v4341 = vunpack.c.h.b16 %v2801
      %v4342 = vunpack.c.l.b16 %v2802
      %v4343 = vunpack.c.h.b16 %v2802
      %v4344 = vunpack.c.l.b16 %v2803
      %v4345 = vunpack.c.h.b16 %v2803
      %v4346 = vunpack.c.l.b16 %v2804
      %v4347 = vunpack.c.h.b16 %v2804
      %v4348 = vunpack.c.l.b16 %v2805
      %v4349 = vunpack.c.h.b16 %v2805
      %v4350 = vunpack.c.l.b16 %v2806
      %v4351 = vunpack.c.h.b16 %v2806
      %v4352 = vunpack.c.l.b16 %v2807
      %v4353 = vunpack.c.h.b16 %v2807
      %v4354 = vunpack.c.l.b16 %v2808
      %v4355 = vunpack.c.h.b16 %v2808
      %v4356 = vunpack.c.l.b16 %v2809
      %v4357 = vunpack.c.h.b16 %v2809
      %v4358 = vunpack.c.l.b16 %v2810
      %v4359 = vunpack.c.h.b16 %v2810
      %v4360 = vunpack.c.l.b16 %v2811
      %v4361 = vunpack.c.h.b16 %v2811
      %v4362 = vunpack.c.l.b16 %v2812
      %v4363 = vunpack.c.h.b16 %v2812
      %v4364 = vunpack.c.l.b16 %v2813
      %v4365 = vunpack.c.h.b16 %v2813
      %v4366 = vunpack.c.l.b16 %v2814
      %v4367 = vunpack.c.h.b16 %v2814
      %v4368 = vunpack.c.l.b16 %v2815
      %v4369 = vunpack.c.h.b16 %v2815
      %v4370 = vunpack.c.l.b16 %v2816
      %v4371 = vunpack.c.h.b16 %v2816
      %v4372 = vunpack.c.l.b16 %v2817
      %v4373 = vunpack.c.h.b16 %v2817
      %v4374 = vunpack.c.l.b16 %v2818
      %v4375 = vunpack.c.h.b16 %v2818
      %v4376 = vunpack.c.l.b16 %v2819
      %v4377 = vunpack.c.h.b16 %v2819
      %v4378 = vpack.c.b16 %v3358, %v3354
      %v4379 = vpack.c.b16 %v3359, %v3355
      %v4380 = vpack.c.b16 %v3360, %v3356
      %v4381 = vpack.c.b16 %v3361, %v3357
      %v4382 = vpack.c.b16 %v3366, %v3362
      %v4383 = vpack.c.b16 %v3367, %v3363
      %v4384 = vpack.c.b16 %v3368, %v3364
      %v4385 = vpack.c.b16 %v3369, %v3365
      %v4386 = vpack.c.b16 %v3374, %v3370
      %v4387 = vpack.c.b16 %v3375, %v3371
      %v4388 = vpack.c.b16 %v3376, %v3372
      %v4389 = vpack.c.b16 %v3377, %v3373
      %v4390 = vpack.c.b16 %v3382, %v3378
      %v4391 = vpack.c.b16 %v3383, %v3379
      %v4392 = vpack.c.b16 %v3384, %v3380
      %v4393 = vpack.c.b16 %v3385, %v3381
      %v4394 = vpack.c.b16 %v3390, %v3386
      %v4395 = vpack.c.b16 %v3391, %v3387
      %v4396 = vpack.c.b16 %v3392, %v3388
      %v4397 = vpack.c.b16 %v3393, %v3389
      %v4398 = vpack.c.b16 %v3398, %v3394
      %v4399 = vpack.c.b16 %v3399, %v3395
      %v4400 = vpack.c.b16 %v3400, %v3396
      %v4401 = vpack.c.b16 %v3401, %v3397
      %v4402 = vpack.c.b16 %v3406, %v3402
      %v4403 = vpack.c.b16 %v3407, %v3403
      %v4404 = vpack.c.b16 %v3408, %v3404
      %v4405 = vpack.c.b16 %v3409, %v3405
      %v4406 = vpack.c.b16 %v3414, %v3410
      %v4407 = vpack.c.b16 %v3415, %v3411
      %v4408 = vpack.c.b16 %v3416, %v3412
      %v4409 = vpack.c.b16 %v3417, %v3413
      %v4410 = vpack.c.b16 %v3422, %v3418
      %v4411 = vpack.c.b16 %v3423, %v3419
      %v4412 = vpack.c.b16 %v3424, %v3420
      %v4413 = vpack.c.b16 %v3425, %v3421
      %v4414 = vpack.c.b16 %v3430, %v3426
      %v4415 = vpack.c.b16 %v3431, %v3427
      %v4416 = vpack.c.b16 %v3432, %v3428
      %v4417 = vpack.c.b16 %v3433, %v3429
      %v4418 = vpack.c.b16 %v3438, %v3434
      %v4419 = vpack.c.b16 %v3439, %v3435
      %v4420 = vpack.c.b16 %v3440, %v3436
      %v4421 = vpack.c.b16 %v3441, %v3437
      %v4422 = vpack.c.b16 %v3446, %v3442
      %v4423 = vpack.c.b16 %v3447, %v3443
      %v4424 = vpack.c.b16 %v3448, %v3444
      %v4425 = vpack.c.b16 %v3449, %v3445
      %v4426 = vpack.c.b16 %v3454, %v3450
      %v4427 = vpack.c.b16 %v3455, %v3451
      %v4428 = vpack.c.b16 %v3456, %v3452
      %v4429 = vpack.c.b16 %v3457, %v3453
      %v4430 = vpack.c.b16 %v3462, %v3458
      %v4431 = vpack.c.b16 %v3463, %v3459
      %v4432 = vpack.c.b16 %v3464, %v3460
      %v4433 = vpack.c.b16 %v3465, %v3461
      %v4434 = vpack.c.b16 %v3470, %v3466
      %v4435 = vpack.c.b16 %v3471, %v3467
      %v4436 = vpack.c.b16 %v3472, %v3468
      %v4437 = vpack.c.b16 %v3473, %v3469
      %v4438 = vpack.c.b16 %v3478, %v3474
      %v4439 = vpack.c.b16 %v3479, %v3475
      %v4440 = vpack.c.b16 %v3480, %v3476
      %v4441 = vpack.c.b16 %v3481, %v3477
      %v4442 = vpack.c.b16 %v3486, %v3482
      %v4443 = vpack.c.b16 %v3487, %v3483
      %v4444 = vpack.c.b16 %v3488, %v3484
      %v4445 = vpack.c.b16 %v3489, %v3485
      %v4446 = vpack.c.b16 %v3494, %v3490
      %v4447 = vpack.c.b16 %v3495, %v3491
      %v4448 = vpack.c.b16 %v3496, %v3492
      %v4449 = vpack.c.b16 %v3497, %v3493
      %v4450 = vpack.c.b16 %v3502, %v3498
      %v4451 = vpack.c.b16 %v3503, %v3499
      %v4452 = vpack.c.b16 %v3504, %v3500
      %v4453 = vpack.c.b16 %v3505, %v3501
      %v4454 = vpack.c.b16 %v3510, %v3506
      %v4455 = vpack.c.b16 %v3511, %v3507
      %v4456 = vpack.c.b16 %v3512, %v3508
      %v4457 = vpack.c.b16 %v3513, %v3509
      %v4458 = vpack.c.b16 %v3518, %v3514
      %v4459 = vpack.c.b16 %v3519, %v3515
      %v4460 = vpack.c.b16 %v3520, %v3516
      %v4461 = vpack.c.b16 %v3521, %v3517
      %v4462 = vpack.c.b16 %v3526, %v3522
      %v4463 = vpack.c.b16 %v3527, %v3523
      %v4464 = vpack.c.b16 %v3528, %v3524
      %v4465 = vpack.c.b16 %v3529, %v3525
      %v4466 = vpack.c.b16 %v3534, %v3530
      %v4467 = vpack.c.b16 %v3535, %v3531
      %v4468 = vpack.c.b16 %v3536, %v3532
      %v4469 = vpack.c.b16 %v3537, %v3533
      %v4470 = vpack.c.b16 %v3542, %v3538
      %v4471 = vpack.c.b16 %v3543, %v3539
      %v4472 = vpack.c.b16 %v3544, %v3540
      %v4473 = vpack.c.b16 %v3545, %v3541
      %v4474 = vpack.c.b16 %v3550, %v3546
      %v4475 = vpack.c.b16 %v3551, %v3547
      %v4476 = vpack.c.b16 %v3552, %v3548
      %v4477 = vpack.c.b16 %v3553, %v3549
      %v4478 = vpack.c.b16 %v3558, %v3554
      %v4479 = vpack.c.b16 %v3559, %v3555
      %v4480 = vpack.c.b16 %v3560, %v3556
      %v4481 = vpack.c.b16 %v3561, %v3557
      %v4482 = vpack.c.b16 %v3566, %v3562
      %v4483 = vpack.c.b16 %v3567, %v3563
      %v4484 = vpack.c.b16 %v3568, %v3564
      %v4485 = vpack.c.b16 %v3569, %v3565
      %v4486 = vpack.c.b16 %v3574, %v3570
      %v4487 = vpack.c.b16 %v3575, %v3571
      %v4488 = vpack.c.b16 %v3576, %v3572
      %v4489 = vpack.c.b16 %v3577, %v3573
      %v4490 = vpack.c.b16 %v3582, %v3578
      %v4491 = vpack.c.b16 %v3583, %v3579
      %v4492 = vpack.c.b16 %v3584, %v3580
      %v4493 = vpack.c.b16 %v3585, %v3581
      %v4494 = vpack.c.b16 %v3590, %v3586
      %v4495 = vpack.c.b16 %v3591, %v3587
      %v4496 = vpack.c.b16 %v3592, %v3588
      %v4497 = vpack.c.b16 %v3593, %v3589
      %v4498 = vpack.c.b16 %v3598, %v3594
      %v4499 = vpack.c.b16 %v3599, %v3595
      %v4500 = vpack.c.b16 %v3600, %v3596
      %v4501 = vpack.c.b16 %v3601, %v3597
      %v4502 = vpack.c.b16 %v3606, %v3602
      %v4503 = vpack.c.b16 %v3607, %v3603
      %v4504 = vpack.c.b16 %v3608, %v3604
      %v4505 = vpack.c.b16 %v3609, %v3605
      %v4506 = vpack.c.b16 %v3614, %v3610
      %v4507 = vpack.c.b16 %v3615, %v3611
      %v4508 = vpack.c.b16 %v3616, %v3612
      %v4509 = vpack.c.b16 %v3617, %v3613
      %v4510 = vpack.c.b16 %v3622, %v3618
      %v4511 = vpack.c.b16 %v3623, %v3619
      %v4512 = vpack.c.b16 %v3624, %v3620
      %v4513 = vpack.c.b16 %v3625, %v3621
      %v4514 = vpack.c.b16 %v3630, %v3626
      %v4515 = vpack.c.b16 %v3631, %v3627
      %v4516 = vpack.c.b16 %v3632, %v3628
      %v4517 = vpack.c.b16 %v3633, %v3629
      %v4518 = vpack.c.b16 %v3638, %v3634
      %v4519 = vpack.c.b16 %v3639, %v3635
      %v4520 = vpack.c.b16 %v3640, %v3636
      %v4521 = vpack.c.b16 %v3641, %v3637
      %v4522 = vpack.c.b16 %v3646, %v3642
      %v4523 = vpack.c.b16 %v3647, %v3643
      %v4524 = vpack.c.b16 %v3648, %v3644
      %v4525 = vpack.c.b16 %v3649, %v3645
      %v4526 = vpack.c.b16 %v3654, %v3650
      %v4527 = vpack.c.b16 %v3655, %v3651
      %v4528 = vpack.c.b16 %v3656, %v3652
      %v4529 = vpack.c.b16 %v3657, %v3653
      %v4530 = vpack.c.b16 %v3662, %v3658
      %v4531 = vpack.c.b16 %v3663, %v3659
      %v4532 = vpack.c.b16 %v3664, %v3660
      %v4533 = vpack.c.b16 %v3665, %v3661
      %v4534 = vpack.c.b16 %v3670, %v3666
      %v4535 = vpack.c.b16 %v3671, %v3667
      %v4536 = vpack.c.b16 %v3672, %v3668
      %v4537 = vpack.c.b16 %v3673, %v3669
      %v4538 = vpack.c.b16 %v3678, %v3674
      %v4539 = vpack.c.b16 %v3679, %v3675
      %v4540 = vpack.c.b16 %v3680, %v3676
      %v4541 = vpack.c.b16 %v3681, %v3677
      %v4542 = vpack.c.b16 %v3686, %v3682
      %v4543 = vpack.c.b16 %v3687, %v3683
      %v4544 = vpack.c.b16 %v3688, %v3684
      %v4545 = vpack.c.b16 %v3689, %v3685
      %v4546 = vpack.c.b16 %v3694, %v3690
      %v4547 = vpack.c.b16 %v3695, %v3691
      %v4548 = vpack.c.b16 %v3696, %v3692
      %v4549 = vpack.c.b16 %v3697, %v3693
      %v4550 = vpack.c.b16 %v3702, %v3698
      %v4551 = vpack.c.b16 %v3703, %v3699
      %v4552 = vpack.c.b16 %v3704, %v3700
      %v4553 = vpack.c.b16 %v3705, %v3701
      %v4554 = vpack.c.b16 %v3710, %v3706
      %v4555 = vpack.c.b16 %v3711, %v3707
      %v4556 = vpack.c.b16 %v3712, %v3708
      %v4557 = vpack.c.b16 %v3713, %v3709
      %v4558 = vpack.c.b16 %v3718, %v3714
      %v4559 = vpack.c.b16 %v3719, %v3715
      %v4560 = vpack.c.b16 %v3720, %v3716
      %v4561 = vpack.c.b16 %v3721, %v3717
      %v4562 = vpack.c.b16 %v3726, %v3722
      %v4563 = vpack.c.b16 %v3727, %v3723
      %v4564 = vpack.c.b16 %v3728, %v3724
      %v4565 = vpack.c.b16 %v3729, %v3725
      %v4566 = vpack.c.b16 %v3734, %v3730
      %v4567 = vpack.c.b16 %v3735, %v3731
      %v4568 = vpack.c.b16 %v3736, %v3732
      %v4569 = vpack.c.b16 %v3737, %v3733
      %v4570 = vpack.c.b16 %v3742, %v3738
      %v4571 = vpack.c.b16 %v3743, %v3739
      %v4572 = vpack.c.b16 %v3744, %v3740
      %v4573 = vpack.c.b16 %v3745, %v3741
      %v4574 = vpack.c.b16 %v3750, %v3746
      %v4575 = vpack.c.b16 %v3751, %v3747
      %v4576 = vpack.c.b16 %v3752, %v3748
      %v4577 = vpack.c.b16 %v3753, %v3749
      %v4578 = vpack.c.b16 %v3758, %v3754
      %v4579 = vpack.c.b16 %v3759, %v3755
      %v4580 = vpack.c.b16 %v3760, %v3756
      %v4581 = vpack.c.b16 %v3761, %v3757
      %v4582 = vpack.c.b16 %v3766, %v3762
      %v4583 = vpack.c.b16 %v3767, %v3763
      %v4584 = vpack.c.b16 %v3768, %v3764
      %v4585 = vpack.c.b16 %v3769, %v3765
      %v4586 = vpack.c.b16 %v3774, %v3770
      %v4587 = vpack.c.b16 %v3775, %v3771
      %v4588 = vpack.c.b16 %v3776, %v3772
      %v4589 = vpack.c.b16 %v3777, %v3773
      %v4590 = vpack.c.b16 %v3782, %v3778
      %v4591 = vpack.c.b16 %v3783, %v3779
      %v4592 = vpack.c.b16 %v3784, %v3780
      %v4593 = vpack.c.b16 %v3785, %v3781
      %v4594 = vpack.c.b16 %v3790, %v3786
      %v4595 = vpack.c.b16 %v3791, %v3787
      %v4596 = vpack.c.b16 %v3792, %v3788
      %v4597 = vpack.c.b16 %v3793, %v3789
      %v4598 = vpack.c.b16 %v3798, %v3794
      %v4599 = vpack.c.b16 %v3799, %v3795
      %v4600 = vpack.c.b16 %v3800, %v3796
      %v4601 = vpack.c.b16 %v3801, %v3797
      %v4602 = vpack.c.b16 %v3806, %v3802
      %v4603 = vpack.c.b16 %v3807, %v3803
      %v4604 = vpack.c.b16 %v3808, %v3804
      %v4605 = vpack.c.b16 %v3809, %v3805
      %v4606 = vpack.c.b16 %v3814, %v3810
      %v4607 = vpack.c.b16 %v3815, %v3811
      %v4608 = vpack.c.b16 %v3816, %v3812
      %v4609 = vpack.c.b16 %v3817, %v3813
      %v4610 = vpack.c.b16 %v3822, %v3818
      %v4611 = vpack.c.b16 %v3823, %v3819
      %v4612 = vpack.c.b16 %v3824, %v3820
      %v4613 = vpack.c.b16 %v3825, %v3821
      %v4614 = vpack.c.b16 %v3830, %v3826
      %v4615 = vpack.c.b16 %v3831, %v3827
      %v4616 = vpack.c.b16 %v3832, %v3828
      %v4617 = vpack.c.b16 %v3833, %v3829
      %v4618 = vpack.c.b16 %v3838, %v3834
      %v4619 = vpack.c.b16 %v3839, %v3835
      %v4620 = vpack.c.b16 %v3840, %v3836
      %v4621 = vpack.c.b16 %v3841, %v3837
      %v4622 = vpack.c.b16 %v3846, %v3842
      %v4623 = vpack.c.b16 %v3847, %v3843
      %v4624 = vpack.c.b16 %v3848, %v3844
      %v4625 = vpack.c.b16 %v3849, %v3845
      %v4626 = vpack.c.b16 %v3854, %v3850
      %v4627 = vpack.c.b16 %v3855, %v3851
      %v4628 = vpack.c.b16 %v3856, %v3852
      %v4629 = vpack.c.b16 %v3857, %v3853
      %v4630 = vpack.c.b16 %v3862, %v3858
      %v4631 = vpack.c.b16 %v3863, %v3859
      %v4632 = vpack.c.b16 %v3864, %v3860
      %v4633 = vpack.c.b16 %v3865, %v3861
      %v4634 = vpack.c.b16 %v3870, %v3866
      %v4635 = vpack.c.b16 %v3871, %v3867
      %v4636 = vpack.c.b16 %v3872, %v3868
      %v4637 = vpack.c.b16 %v3873, %v3869
      %v4638 = vpack.c.b16 %v3878, %v3874
      %v4639 = vpack.c.b16 %v3879, %v3875
      %v4640 = vpack.c.b16 %v3880, %v3876
      %v4641 = vpack.c.b16 %v3881, %v3877
      %v4642 = vpack.c.b16 %v3886, %v3882
      %v4643 = vpack.c.b16 %v3887, %v3883
      %v4644 = vpack.c.b16 %v3888, %v3884
      %v4645 = vpack.c.b16 %v3889, %v3885
      %v4646 = vpack.c.b16 %v3894, %v3890
      %v4647 = vpack.c.b16 %v3895, %v3891
      %v4648 = vpack.c.b16 %v3896, %v3892
      %v4649 = vpack.c.b16 %v3897, %v3893
      %v4650 = vpack.c.b16 %v3902, %v3898
      %v4651 = vpack.c.b16 %v3903, %v3899
      %v4652 = vpack.c.b16 %v3904, %v3900
      %v4653 = vpack.c.b16 %v3905, %v3901
      %v4654 = vpack.c.b16 %v3910, %v3906
      %v4655 = vpack.c.b16 %v3911, %v3907
      %v4656 = vpack.c.b16 %v3912, %v3908
      %v4657 = vpack.c.b16 %v3913, %v3909
      %v4658 = vpack.c.b16 %v3918, %v3914
      %v4659 = vpack.c.b16 %v3919, %v3915
      %v4660 = vpack.c.b16 %v3920, %v3916
      %v4661 = vpack.c.b16 %v3921, %v3917
      %v4662 = vpack.c.b16 %v3926, %v3922
      %v4663 = vpack.c.b16 %v3927, %v3923
      %v4664 = vpack.c.b16 %v3928, %v3924
      %v4665 = vpack.c.b16 %v3929, %v3925
      %v4666 = vpack.c.b16 %v3934, %v3930
      %v4667 = vpack.c.b16 %v3935, %v3931
      %v4668 = vpack.c.b16 %v3936, %v3932
      %v4669 = vpack.c.b16 %v3937, %v3933
      %v4670 = vpack.c.b16 %v3942, %v3938
      %v4671 = vpack.c.b16 %v3943, %v3939
      %v4672 = vpack.c.b16 %v3944, %v3940
      %v4673 = vpack.c.b16 %v3945, %v3941
      %v4674 = vpack.c.b16 %v3950, %v3946
      %v4675 = vpack.c.b16 %v3951, %v3947
      %v4676 = vpack.c.b16 %v3952, %v3948
      %v4677 = vpack.c.b16 %v3953, %v3949
      %v4678 = vpack.c.b16 %v3958, %v3954
      %v4679 = vpack.c.b16 %v3959, %v3955
      %v4680 = vpack.c.b16 %v3960, %v3956
      %v4681 = vpack.c.b16 %v3961, %v3957
      %v4682 = vpack.c.b16 %v3966, %v3962
      %v4683 = vpack.c.b16 %v3967, %v3963
      %v4684 = vpack.c.b16 %v3968, %v3964
      %v4685 = vpack.c.b16 %v3969, %v3965
      %v4686 = vpack.c.b16 %v3974, %v3970
      %v4687 = vpack.c.b16 %v3975, %v3971
      %v4688 = vpack.c.b16 %v3976, %v3972
      %v4689 = vpack.c.b16 %v3977, %v3973
      %v4690 = vpack.c.b16 %v3982, %v3978
      %v4691 = vpack.c.b16 %v3983, %v3979
      %v4692 = vpack.c.b16 %v3984, %v3980
      %v4693 = vpack.c.b16 %v3985, %v3981
      %v4694 = vpack.c.b16 %v3990, %v3986
      %v4695 = vpack.c.b16 %v3991, %v3987
      %v4696 = vpack.c.b16 %v3992, %v3988
      %v4697 = vpack.c.b16 %v3993, %v3989
      %v4698 = vpack.c.b16 %v3998, %v3994
      %v4699 = vpack.c.b16 %v3999, %v3995
      %v4700 = vpack.c.b16 %v4000, %v3996
      %v4701 = vpack.c.b16 %v4001, %v3997
      %v4702 = vpack.c.b16 %v4006, %v4002
      %v4703 = vpack.c.b16 %v4007, %v4003
      %v4704 = vpack.c.b16 %v4008, %v4004
      %v4705 = vpack.c.b16 %v4009, %v4005
      %v4706 = vpack.c.b16 %v4014, %v4010
      %v4707 = vpack.c.b16 %v4015, %v4011
      %v4708 = vpack.c.b16 %v4016, %v4012
      %v4709 = vpack.c.b16 %v4017, %v4013
      %v4710 = vpack.c.b16 %v4022, %v4018
      %v4711 = vpack.c.b16 %v4023, %v4019
      %v4712 = vpack.c.b16 %v4024, %v4020
      %v4713 = vpack.c.b16 %v4025, %v4021
      %v4714 = vpack.c.b16 %v4030, %v4026
      %v4715 = vpack.c.b16 %v4031, %v4027
      %v4716 = vpack.c.b16 %v4032, %v4028
      %v4717 = vpack.c.b16 %v4033, %v4029
      %v4718 = vpack.c.b16 %v4038, %v4034
      %v4719 = vpack.c.b16 %v4039, %v4035
      %v4720 = vpack.c.b16 %v4040, %v4036
      %v4721 = vpack.c.b16 %v4041, %v4037
      %v4722 = vpack.c.b16 %v4046, %v4042
      %v4723 = vpack.c.b16 %v4047, %v4043
      %v4724 = vpack.c.b16 %v4048, %v4044
      %v4725 = vpack.c.b16 %v4049, %v4045
      %v4726 = vpack.c.b16 %v4054, %v4050
      %v4727 = vpack.c.b16 %v4055, %v4051
      %v4728 = vpack.c.b16 %v4056, %v4052
      %v4729 = vpack.c.b16 %v4057, %v4053
      %v4730 = vpack.c.b16 %v4062, %v4058
      %v4731 = vpack.c.b16 %v4063, %v4059
      %v4732 = vpack.c.b16 %v4064, %v4060
      %v4733 = vpack.c.b16 %v4065, %v4061
      %v4734 = vpack.c.b16 %v4070, %v4066
      %v4735 = vpack.c.b16 %v4071, %v4067
      %v4736 = vpack.c.b16 %v4072, %v4068
      %v4737 = vpack.c.b16 %v4073, %v4069
      %v4738 = vpack.c.b16 %v4078, %v4074
      %v4739 = vpack.c.b16 %v4079, %v4075
      %v4740 = vpack.c.b16 %v4080, %v4076
      %v4741 = vpack.c.b16 %v4081, %v4077
      %v4742 = vpack.c.b16 %v4086, %v4082
      %v4743 = vpack.c.b16 %v4087, %v4083
      %v4744 = vpack.c.b16 %v4088, %v4084
      %v4745 = vpack.c.b16 %v4089, %v4085
      %v4746 = vpack.c.b16 %v4094, %v4090
      %v4747 = vpack.c.b16 %v4095, %v4091
      %v4748 = vpack.c.b16 %v4096, %v4092
      %v4749 = vpack.c.b16 %v4097, %v4093
      %v4750 = vpack.c.b16 %v4102, %v4098
      %v4751 = vpack.c.b16 %v4103, %v4099
      %v4752 = vpack.c.b16 %v4104, %v4100
      %v4753 = vpack.c.b16 %v4105, %v4101
      %v4754 = vpack.c.b16 %v4110, %v4106
      %v4755 = vpack.c.b16 %v4111, %v4107
      %v4756 = vpack.c.b16 %v4112, %v4108
      %v4757 = vpack.c.b16 %v4113, %v4109
      %v4758 = vpack.c.b16 %v4118, %v4114
      %v4759 = vpack.c.b16 %v4119, %v4115
      %v4760 = vpack.c.b16 %v4120, %v4116
      %v4761 = vpack.c.b16 %v4121, %v4117
      %v4762 = vpack.c.b16 %v4126, %v4122
      %v4763 = vpack.c.b16 %v4127, %v4123
      %v4764 = vpack.c.b16 %v4128, %v4124
      %v4765 = vpack.c.b16 %v4129, %v4125
      %v4766 = vpack.c.b16 %v4134, %v4130
      %v4767 = vpack.c.b16 %v4135, %v4131
      %v4768 = vpack.c.b16 %v4136, %v4132
      %v4769 = vpack.c.b16 %v4137, %v4133
      %v4770 = vpack.c.b16 %v4142, %v4138
      %v4771 = vpack.c.b16 %v4143, %v4139
      %v4772 = vpack.c.b16 %v4144, %v4140
      %v4773 = vpack.c.b16 %v4145, %v4141
      %v4774 = vpack.c.b16 %v4150, %v4146
      %v4775 = vpack.c.b16 %v4151, %v4147
      %v4776 = vpack.c.b16 %v4152, %v4148
      %v4777 = vpack.c.b16 %v4153, %v4149
      %v4778 = vpack.c.b16 %v4158, %v4154
      %v4779 = vpack.c.b16 %v4159, %v4155
      %v4780 = vpack.c.b16 %v4160, %v4156
      %v4781 = vpack.c.b16 %v4161, %v4157
      %v4782 = vpack.c.b16 %v4166, %v4162
      %v4783 = vpack.c.b16 %v4167, %v4163
      %v4784 = vpack.c.b16 %v4168, %v4164
      %v4785 = vpack.c.b16 %v4169, %v4165
      %v4786 = vpack.c.b16 %v4174, %v4170
      %v4787 = vpack.c.b16 %v4175, %v4171
      %v4788 = vpack.c.b16 %v4176, %v4172
      %v4789 = vpack.c.b16 %v4177, %v4173
      %v4790 = vpack.c.b16 %v4182, %v4178
      %v4791 = vpack.c.b16 %v4183, %v4179
      %v4792 = vpack.c.b16 %v4184, %v4180
      %v4793 = vpack.c.b16 %v4185, %v4181
      %v4794 = vpack.c.b16 %v4190, %v4186
      %v4795 = vpack.c.b16 %v4191, %v4187
      %v4796 = vpack.c.b16 %v4192, %v4188
      %v4797 = vpack.c.b16 %v4193, %v4189
      %v4798 = vpack.c.b16 %v4198, %v4194
      %v4799 = vpack.c.b16 %v4199, %v4195
      %v4800 = vpack.c.b16 %v4200, %v4196
      %v4801 = vpack.c.b16 %v4201, %v4197
      %v4802 = vpack.c.b16 %v4206, %v4202
      %v4803 = vpack.c.b16 %v4207, %v4203
      %v4804 = vpack.c.b16 %v4208, %v4204
      %v4805 = vpack.c.b16 %v4209, %v4205
      %v4806 = vpack.c.b16 %v4214, %v4210
      %v4807 = vpack.c.b16 %v4215, %v4211
      %v4808 = vpack.c.b16 %v4216, %v4212
      %v4809 = vpack.c.b16 %v4217, %v4213
      %v4810 = vpack.c.b16 %v4222, %v4218
      %v4811 = vpack.c.b16 %v4223, %v4219
      %v4812 = vpack.c.b16 %v4224, %v4220
      %v4813 = vpack.c.b16 %v4225, %v4221
      %v4814 = vpack.c.b16 %v4230, %v4226
      %v4815 = vpack.c.b16 %v4231, %v4227
      %v4816 = vpack.c.b16 %v4232, %v4228
      %v4817 = vpack.c.b16 %v4233, %v4229
      %v4818 = vpack.c.b16 %v4238, %v4234
      %v4819 = vpack.c.b16 %v4239, %v4235
      %v4820 = vpack.c.b16 %v4240, %v4236
      %v4821 = vpack.c.b16 %v4241, %v4237
      %v4822 = vpack.c.b16 %v4246, %v4242
      %v4823 = vpack.c.b16 %v4247, %v4243
      %v4824 = vpack.c.b16 %v4248, %v4244
      %v4825 = vpack.c.b16 %v4249, %v4245
      %v4826 = vpack.c.b16 %v4254, %v4250
      %v4827 = vpack.c.b16 %v4255, %v4251
      %v4828 = vpack.c.b16 %v4256, %v4252
      %v4829 = vpack.c.b16 %v4257, %v4253
      %v4830 = vpack.c.b16 %v4262, %v4258
      %v4831 = vpack.c.b16 %v4263, %v4259
      %v4832 = vpack.c.b16 %v4264, %v4260
      %v4833 = vpack.c.b16 %v4265, %v4261
      %v4834 = vpack.c.b16 %v4270, %v4266
      %v4835 = vpack.c.b16 %v4271, %v4267
      %v4836 = vpack.c.b16 %v4272, %v4268
      %v4837 = vpack.c.b16 %v4273, %v4269
      %v4838 = vpack.c.b16 %v4278, %v4274
      %v4839 = vpack.c.b16 %v4279, %v4275
      %v4840 = vpack.c.b16 %v4280, %v4276
      %v4841 = vpack.c.b16 %v4281, %v4277
      %v4842 = vpack.c.b16 %v4286, %v4282
      %v4843 = vpack.c.b16 %v4287, %v4283
      %v4844 = vpack.c.b16 %v4288, %v4284
      %v4845 = vpack.c.b16 %v4289, %v4285
      %v4846 = vpack.c.b16 %v4294, %v4290
      %v4847 = vpack.c.b16 %v4295, %v4291
      %v4848 = vpack.c.b16 %v4296, %v4292
      %v4849 = vpack.c.b16 %v4297, %v4293
      %v4850 = vpack.c.b16 %v4302, %v4298
      %v4851 = vpack.c.b16 %v4303, %v4299
      %v4852 = vpack.c.b16 %v4304, %v4300
      %v4853 = vpack.c.b16 %v4305, %v4301
      %v4854 = vpack.c.b16 %v4310, %v4306
      %v4855 = vpack.c.b16 %v4311, %v4307
      %v4856 = vpack.c.b16 %v4312, %v4308
      %v4857 = vpack.c.b16 %v4313, %v4309
      %v4858 = vpack.c.b16 %v4318, %v4314
      %v4859 = vpack.c.b16 %v4319, %v4315
      %v4860 = vpack.c.b16 %v4320, %v4316
      %v4861 = vpack.c.b16 %v4321, %v4317
      %v4862 = vpack.c.b16 %v4326, %v4322
      %v4863 = vpack.c.b16 %v4327, %v4323
      %v4864 = vpack.c.b16 %v4328, %v4324
      %v4865 = vpack.c.b16 %v4329, %v4325
      %v4866 = vpack.c.b16 %v4334, %v4330
      %v4867 = vpack.c.b16 %v4335, %v4331
      %v4868 = vpack.c.b16 %v4336, %v4332
      %v4869 = vpack.c.b16 %v4337, %v4333
      %v4870 = vpack.c.b16 %v4342, %v4338
      %v4871 = vpack.c.b16 %v4343, %v4339
      %v4872 = vpack.c.b16 %v4344, %v4340
      %v4873 = vpack.c.b16 %v4345, %v4341
      %v4874 = vpack.c.b16 %v4350, %v4346
      %v4875 = vpack.c.b16 %v4351, %v4347
      %v4876 = vpack.c.b16 %v4352, %v4348
      %v4877 = vpack.c.b16 %v4353, %v4349
      %v4878 = vpack.c.b16 %v4358, %v4354
      %v4879 = vpack.c.b16 %v4359, %v4355
      %v4880 = vpack.c.b16 %v4360, %v4356
      %v4881 = vpack.c.b16 %v4361, %v4357
      %v4882 = vpack.c.b16 %v4366, %v4362
      %v4883 = vpack.c.b16 %v4367, %v4363
      %v4884 = vpack.c.b16 %v4368, %v4364
      %v4885 = vpack.c.b16 %v4369, %v4365
      %v4886 = vpack.c.b16 %v4374, %v4370
      %v4887 = vpack.c.b16 %v4375, %v4371
      %v4888 = vpack.c.b16 %v4376, %v4372
      %v4889 = vpack.c.b16 %v4377, %v4373
      %5402 = vmatprep.subr.bf16.mxu0 %v4407
      %5403 = vmatpush1.bf16.msra.mxu0 %v4406
      %5404 = vmatprep.subr.bf16.mxu0 %v4403
      %5405 = vmatpush1.bf16.msra.mxu0 %v4402
      %5406 = vmatprep.subr.bf16.mxu0 %v4399
      %5407 = vmatpush1.bf16.msra.mxu0 %v4398
      %5408 = vmatprep.subr.bf16.mxu0 %v4395
      %5409 = vmatpush1.bf16.msra.mxu0 %v4394
      %5410 = vmatprep.subr.bf16.mxu0 %v4391
      %5411 = vmatpush1.bf16.msra.mxu0 %v4390
      %5412 = vmatprep.subr.bf16.mxu0 %v4387
      %5413 = vmatpush1.bf16.msra.mxu0 %v4386
      %5414 = vmatprep.subr.bf16.mxu0 %v4383
      %5415 = vmatpush1.bf16.msra.mxu0 %v4382
      %5416 = vmatprep.subr.bf16.mxu0 %v4379
      %5417 = vmatpush1.bf16.msra.mxu0 %v4378
      %5418 = vmatprep.subr.bf16.mxu0 %v4439
      %5419 = vmatpush2.bf16.msra.mxu0 %v4438
      %5420 = vmatprep.subr.bf16.mxu0 %v4435
      %5421 = vmatpush2.bf16.msra.mxu0 %v4434
      %5422 = vmatprep.subr.bf16.mxu0 %v4431
      %5423 = vmatpush2.bf16.msra.mxu0 %v4430
      %5424 = vmatprep.subr.bf16.mxu0 %v4427
      %5425 = vmatpush2.bf16.msra.mxu0 %v4426
      %5426 = vmatprep.subr.bf16.mxu0 %v4423
      %5427 = vmatpush2.bf16.msra.mxu0 %v4422
      %5428 = vmatprep.subr.bf16.mxu0 %v4419
      %5429 = vmatpush2.bf16.msra.mxu0 %v4418
      %5430 = vmatprep.subr.bf16.mxu0 %v4415
      %5431 = vmatpush2.bf16.msra.mxu0 %v4414
      %5432 = vmatprep.subr.bf16.mxu0 %v4411
      %5433 = vmatpush2.bf16.msra.mxu0 %v4410
      %5434 = vmatprep.mubr.bf16.mxu0 %v2293
      %5435 = vmatmul.mubr.bf16.gmra.mxu0 %v2292
      %v5436 = vpop.f32.mrf.mxu0
      %v5437 = vadd.f32 %v2825, %v5436
      %v5438 = vpop.f32.mrf.mxu0
      %v5439 = vadd.f32 %v2829, %v5438
      %v5440 = vpop.f32.mrf.mxu0
      %v5441 = vadd.f32 %v2825, %v5440
      %v5442 = vpop.f32.mrf.mxu0
      %v5443 = vadd.f32 %v2829, %v5442
      %5444 = vdwg.mxu0
      %5445 = vmatprep.subr.bf16.mxu0 %v4471
      %5446 = vmatpush1.bf16.msra.mxu0 %v4470
      %5447 = vmatprep.subr.bf16.mxu0 %v4467
      %5448 = vmatpush1.bf16.msra.mxu0 %v4466
      %5449 = vmatprep.subr.bf16.mxu0 %v4463
      %5450 = vmatpush1.bf16.msra.mxu0 %v4462
      %5451 = vmatprep.subr.bf16.mxu0 %v4459
      %5452 = vmatpush1.bf16.msra.mxu0 %v4458
      %5453 = vmatprep.subr.bf16.mxu0 %v4455
      %5454 = vmatpush1.bf16.msra.mxu0 %v4454
      %5455 = vmatprep.subr.bf16.mxu0 %v4451
      %5456 = vmatpush1.bf16.msra.mxu0 %v4450
      %5457 = vmatprep.subr.bf16.mxu0 %v4447
      %5458 = vmatpush1.bf16.msra.mxu0 %v4446
      %5459 = vmatprep.subr.bf16.mxu0 %v4443
      %5460 = vmatpush1.bf16.msra.mxu0 %v4442
      %5461 = vmatprep.subr.bf16.mxu0 %v4503
      %5462 = vmatpush2.bf16.msra.mxu0 %v4502
      %5463 = vmatprep.subr.bf16.mxu0 %v4499
      %5464 = vmatpush2.bf16.msra.mxu0 %v4498
      %5465 = vmatprep.subr.bf16.mxu0 %v4495
      %5466 = vmatpush2.bf16.msra.mxu0 %v4494
      %5467 = vmatprep.subr.bf16.mxu0 %v4491
      %5468 = vmatpush2.bf16.msra.mxu0 %v4490
      %5469 = vmatprep.subr.bf16.mxu0 %v4487
      %5470 = vmatpush2.bf16.msra.mxu0 %v4486
      %5471 = vmatprep.subr.bf16.mxu0 %v4483
      %5472 = vmatpush2.bf16.msra.mxu0 %v4482
      %5473 = vmatprep.subr.bf16.mxu0 %v4479
      %5474 = vmatpush2.bf16.msra.mxu0 %v4478
      %5475 = vmatprep.subr.bf16.mxu0 %v4475
      %5476 = vmatpush2.bf16.msra.mxu0 %v4474
      %5477 = vmatprep.mubr.bf16.mxu0 %v2295
      %5478 = vmatmul.mubr.bf16.gmra.mxu0 %v2294
      %v5479 = vpop.f32.mrf.mxu0
      %v5480 = vadd.f32 %v5437, %v5479
      %v5481 = vpop.f32.mrf.mxu0
      %v5482 = vadd.f32 %v5439, %v5481
      %v5483 = vpop.f32.mrf.mxu0
      %v5484 = vadd.f32 %v5441, %v5483
      %v5485 = vpop.f32.mrf.mxu0
      %v5486 = vadd.f32 %v5443, %v5485
      %5487 = vdwg.mxu0
      %5488 = vmatprep.subr.bf16.mxu0 %v4535
      %5489 = vmatpush1.bf16.msra.mxu0 %v4534
      %5490 = vmatprep.subr.bf16.mxu0 %v4531
      %5491 = vmatpush1.bf16.msra.mxu0 %v4530
      %5492 = vmatprep.subr.bf16.mxu0 %v4527
      %5493 = vmatpush1.bf16.msra.mxu0 %v4526
      %5494 = vmatprep.subr.bf16.mxu0 %v4523
      %5495 = vmatpush1.bf16.msra.mxu0 %v4522
      %5496 = vmatprep.subr.bf16.mxu0 %v4519
      %5497 = vmatpush1.bf16.msra.mxu0 %v4518
      %5498 = vmatprep.subr.bf16.mxu0 %v4515
      %5499 = vmatpush1.bf16.msra.mxu0 %v4514
      %5500 = vmatprep.subr.bf16.mxu0 %v4511
      %5501 = vmatpush1.bf16.msra.mxu0 %v4510
      %5502 = vmatprep.subr.bf16.mxu0 %v4507
      %5503 = vmatpush1.bf16.msra.mxu0 %v4506
      %5504 = vmatprep.subr.bf16.mxu0 %v4567
      %5505 = vmatpush2.bf16.msra.mxu0 %v4566
      %5506 = vmatprep.subr.bf16.mxu0 %v4563
      %5507 = vmatpush2.bf16.msra.mxu0 %v4562
      %5508 = vmatprep.subr.bf16.mxu0 %v4559
      %5509 = vmatpush2.bf16.msra.mxu0 %v4558
      %5510 = vmatprep.subr.bf16.mxu0 %v4555
      %5511 = vmatpush2.bf16.msra.mxu0 %v4554
      %5512 = vmatprep.subr.bf16.mxu0 %v4551
      %5513 = vmatpush2.bf16.msra.mxu0 %v4550
      %5514 = vmatprep.subr.bf16.mxu0 %v4547
      %5515 = vmatpush2.bf16.msra.mxu0 %v4546
      %5516 = vmatprep.subr.bf16.mxu0 %v4543
      %5517 = vmatpush2.bf16.msra.mxu0 %v4542
      %5518 = vmatprep.subr.bf16.mxu0 %v4539
      %5519 = vmatpush2.bf16.msra.mxu0 %v4538
      %5520 = vmatprep.mubr.bf16.mxu0 %v2297
      %5521 = vmatmul.mubr.bf16.gmra.mxu0 %v2296
      %v5522 = vpop.f32.mrf.mxu0
      %v5523 = vadd.f32 %v5480, %v5522
      %v5524 = vpop.f32.mrf.mxu0
      %v5525 = vadd.f32 %v5482, %v5524
      %v5526 = vpop.f32.mrf.mxu0
      %v5527 = vadd.f32 %v5484, %v5526
      %v5528 = vpop.f32.mrf.mxu0
      %v5529 = vadd.f32 %v5486, %v5528
      %5530 = vdwg.mxu0
      %5531 = vmatprep.subr.bf16.mxu0 %v4599
      %5532 = vmatpush1.bf16.msra.mxu0 %v4598
      %5533 = vmatprep.subr.bf16.mxu0 %v4595
      %5534 = vmatpush1.bf16.msra.mxu0 %v4594
      %5535 = vmatprep.subr.bf16.mxu0 %v4591
      %5536 = vmatpush1.bf16.msra.mxu0 %v4590
      %5537 = vmatprep.subr.bf16.mxu0 %v4587
      %5538 = vmatpush1.bf16.msra.mxu0 %v4586
      %5539 = vmatprep.subr.bf16.mxu0 %v4583
      %5540 = vmatpush1.bf16.msra.mxu0 %v4582
      %5541 = vmatprep.subr.bf16.mxu0 %v4579
      %5542 = vmatpush1.bf16.msra.mxu0 %v4578
      %5543 = vmatprep.subr.bf16.mxu0 %v4575
      %5544 = vmatpush1.bf16.msra.mxu0 %v4574
      %5545 = vmatprep.subr.bf16.mxu0 %v4571
      %5546 = vmatpush1.bf16.msra.mxu0 %v4570
      %5547 = vmatprep.subr.bf16.mxu0 %v4631
      %5548 = vmatpush2.bf16.msra.mxu0 %v4630
      %5549 = vmatprep.subr.bf16.mxu0 %v4627
      %5550 = vmatpush2.bf16.msra.mxu0 %v4626
      %5551 = vmatprep.subr.bf16.mxu0 %v4623
      %5552 = vmatpush2.bf16.msra.mxu0 %v4622
      %5553 = vmatprep.subr.bf16.mxu0 %v4619
      %5554 = vmatpush2.bf16.msra.mxu0 %v4618
      %5555 = vmatprep.subr.bf16.mxu0 %v4615
      %5556 = vmatpush2.bf16.msra.mxu0 %v4614
      %5557 = vmatprep.subr.bf16.mxu0 %v4611
      %5558 = vmatpush2.bf16.msra.mxu0 %v4610
      %5559 = vmatprep.subr.bf16.mxu0 %v4607
      %5560 = vmatpush2.bf16.msra.mxu0 %v4606
      %5561 = vmatprep.subr.bf16.mxu0 %v4603
      %5562 = vmatpush2.bf16.msra.mxu0 %v4602
      %5563 = vmatprep.mubr.bf16.mxu0 %v2299
      %5564 = vmatmul.mubr.bf16.gmra.mxu0 %v2298
      %v5565 = vpop.f32.mrf.mxu0
      %v5566 = vadd.f32 %v5523, %v5565
      %v5567 = vpop.f32.mrf.mxu0
      %v5568 = vadd.f32 %v5525, %v5567
      %v5569 = vpop.f32.mrf.mxu0
      %v5570 = vadd.f32 %v5527, %v5569
      %v5571 = vpop.f32.mrf.mxu0
      %v5572 = vadd.f32 %v5529, %v5571
      %5573 = vdwg.mxu0
      %5574 = vmatprep.subr.bf16.mxu0 %v4663
      %5575 = vmatpush1.bf16.msra.mxu0 %v4662
      %5576 = vmatprep.subr.bf16.mxu0 %v4659
      %5577 = vmatpush1.bf16.msra.mxu0 %v4658
      %5578 = vmatprep.subr.bf16.mxu0 %v4655
      %5579 = vmatpush1.bf16.msra.mxu0 %v4654
      %5580 = vmatprep.subr.bf16.mxu0 %v4651
      %5581 = vmatpush1.bf16.msra.mxu0 %v4650
      %5582 = vmatprep.subr.bf16.mxu0 %v4647
      %5583 = vmatpush1.bf16.msra.mxu0 %v4646
      %5584 = vmatprep.subr.bf16.mxu0 %v4643
      %5585 = vmatpush1.bf16.msra.mxu0 %v4642
      %5586 = vmatprep.subr.bf16.mxu0 %v4639
      %5587 = vmatpush1.bf16.msra.mxu0 %v4638
      %5588 = vmatprep.subr.bf16.mxu0 %v4635
      %5589 = vmatpush1.bf16.msra.mxu0 %v4634
      %5590 = vmatprep.subr.bf16.mxu0 %v4695
      %5591 = vmatpush2.bf16.msra.mxu0 %v4694
      %5592 = vmatprep.subr.bf16.mxu0 %v4691
      %5593 = vmatpush2.bf16.msra.mxu0 %v4690
      %5594 = vmatprep.subr.bf16.mxu0 %v4687
      %5595 = vmatpush2.bf16.msra.mxu0 %v4686
      %5596 = vmatprep.subr.bf16.mxu0 %v4683
      %5597 = vmatpush2.bf16.msra.mxu0 %v4682
      %5598 = vmatprep.subr.bf16.mxu0 %v4679
      %5599 = vmatpush2.bf16.msra.mxu0 %v4678
      %5600 = vmatprep.subr.bf16.mxu0 %v4675
      %5601 = vmatpush2.bf16.msra.mxu0 %v4674
      %5602 = vmatprep.subr.bf16.mxu0 %v4671
      %5603 = vmatpush2.bf16.msra.mxu0 %v4670
      %5604 = vmatprep.subr.bf16.mxu0 %v4667
      %5605 = vmatpush2.bf16.msra.mxu0 %v4666
      %5606 = vmatprep.mubr.bf16.mxu0 %v2301
      %5607 = vmatmul.mubr.bf16.gmra.mxu0 %v2300
      %v5608 = vpop.f32.mrf.mxu0
      %v5609 = vadd.f32 %v5566, %v5608
      %v5610 = vpop.f32.mrf.mxu0
      %v5611 = vadd.f32 %v5568, %v5610
      %v5612 = vpop.f32.mrf.mxu0
      %v5613 = vadd.f32 %v5570, %v5612
      %v5614 = vpop.f32.mrf.mxu0
      %v5615 = vadd.f32 %v5572, %v5614
      %5616 = vdwg.mxu0
      %5617 = vmatprep.subr.bf16.mxu0 %v4727
      %5618 = vmatpush1.bf16.msra.mxu0 %v4726
      %5619 = vmatprep.subr.bf16.mxu0 %v4723
      %5620 = vmatpush1.bf16.msra.mxu0 %v4722
      %5621 = vmatprep.subr.bf16.mxu0 %v4719
      %5622 = vmatpush1.bf16.msra.mxu0 %v4718
      %5623 = vmatprep.subr.bf16.mxu0 %v4715
      %5624 = vmatpush1.bf16.msra.mxu0 %v4714
      %5625 = vmatprep.subr.bf16.mxu0 %v4711
      %5626 = vmatpush1.bf16.msra.mxu0 %v4710
      %5627 = vmatprep.subr.bf16.mxu0 %v4707
      %5628 = vmatpush1.bf16.msra.mxu0 %v4706
      %5629 = vmatprep.subr.bf16.mxu0 %v4703
      %5630 = vmatpush1.bf16.msra.mxu0 %v4702
      %5631 = vmatprep.subr.bf16.mxu0 %v4699
      %5632 = vmatpush1.bf16.msra.mxu0 %v4698
      %5633 = vmatprep.subr.bf16.mxu0 %v4759
      %5634 = vmatpush2.bf16.msra.mxu0 %v4758
      %5635 = vmatprep.subr.bf16.mxu0 %v4755
      %5636 = vmatpush2.bf16.msra.mxu0 %v4754
      %5637 = vmatprep.subr.bf16.mxu0 %v4751
      %5638 = vmatpush2.bf16.msra.mxu0 %v4750
      %5639 = vmatprep.subr.bf16.mxu0 %v4747
      %5640 = vmatpush2.bf16.msra.mxu0 %v4746
      %5641 = vmatprep.subr.bf16.mxu0 %v4743
      %5642 = vmatpush2.bf16.msra.mxu0 %v4742
      %5643 = vmatprep.subr.bf16.mxu0 %v4739
      %5644 = vmatpush2.bf16.msra.mxu0 %v4738
      %5645 = vmatprep.subr.bf16.mxu0 %v4735
      %5646 = vmatpush2.bf16.msra.mxu0 %v4734
      %5647 = vmatprep.subr.bf16.mxu0 %v4731
      %5648 = vmatpush2.bf16.msra.mxu0 %v4730
      %5649 = vmatprep.mubr.bf16.mxu0 %v2303
      %5650 = vmatmul.mubr.bf16.gmra.mxu0 %v2302
      %v5651 = vpop.f32.mrf.mxu0
      %v5652 = vadd.f32 %v5609, %v5651
      %v5653 = vpop.f32.mrf.mxu0
      %v5654 = vadd.f32 %v5611, %v5653
      %v5655 = vpop.f32.mrf.mxu0
      %v5656 = vadd.f32 %v5613, %v5655
      %v5657 = vpop.f32.mrf.mxu0
      %v5658 = vadd.f32 %v5615, %v5657
      %5659 = vdwg.mxu0
      %5660 = vmatprep.subr.bf16.mxu0 %v4791
      %5661 = vmatpush1.bf16.msra.mxu0 %v4790
      %5662 = vmatprep.subr.bf16.mxu0 %v4787
      %5663 = vmatpush1.bf16.msra.mxu0 %v4786
      %5664 = vmatprep.subr.bf16.mxu0 %v4783
      %5665 = vmatpush1.bf16.msra.mxu0 %v4782
      %5666 = vmatprep.subr.bf16.mxu0 %v4779
      %5667 = vmatpush1.bf16.msra.mxu0 %v4778
      %5668 = vmatprep.subr.bf16.mxu0 %v4775
      %5669 = vmatpush1.bf16.msra.mxu0 %v4774
      %5670 = vmatprep.subr.bf16.mxu0 %v4771
      %5671 = vmatpush1.bf16.msra.mxu0 %v4770
      %5672 = vmatprep.subr.bf16.mxu0 %v4767
      %5673 = vmatpush1.bf16.msra.mxu0 %v4766
      %5674 = vmatprep.subr.bf16.mxu0 %v4763
      %5675 = vmatpush1.bf16.msra.mxu0 %v4762
      %5676 = vmatprep.subr.bf16.mxu0 %v4823
      %5677 = vmatpush2.bf16.msra.mxu0 %v4822
      %5678 = vmatprep.subr.bf16.mxu0 %v4819
      %5679 = vmatpush2.bf16.msra.mxu0 %v4818
      %5680 = vmatprep.subr.bf16.mxu0 %v4815
      %5681 = vmatpush2.bf16.msra.mxu0 %v4814
      %5682 = vmatprep.subr.bf16.mxu0 %v4811
      %5683 = vmatpush2.bf16.msra.mxu0 %v4810
      %5684 = vmatprep.subr.bf16.mxu0 %v4807
      %5685 = vmatpush2.bf16.msra.mxu0 %v4806
      %5686 = vmatprep.subr.bf16.mxu0 %v4803
      %5687 = vmatpush2.bf16.msra.mxu0 %v4802
      %5688 = vmatprep.subr.bf16.mxu0 %v4799
      %5689 = vmatpush2.bf16.msra.mxu0 %v4798
      %5690 = vmatprep.subr.bf16.mxu0 %v4795
      %5691 = vmatpush2.bf16.msra.mxu0 %v4794
      %5692 = vmatprep.mubr.bf16.mxu0 %v2305
      %5693 = vmatmul.mubr.bf16.gmra.mxu0 %v2304
      %v5694 = vpop.f32.mrf.mxu0
      %v5695 = vadd.f32 %v5652, %v5694
      %v5696 = vpop.f32.mrf.mxu0
      %v5697 = vadd.f32 %v5654, %v5696
      %v5698 = vpop.f32.mrf.mxu0
      %v5699 = vadd.f32 %v5656, %v5698
      %v5700 = vpop.f32.mrf.mxu0
      %v5701 = vadd.f32 %v5658, %v5700
      %5702 = vdwg.mxu0
      %5703 = vmatprep.subr.bf16.mxu0 %v4855
      %5704 = vmatpush1.bf16.msra.mxu0 %v4854
      %5705 = vmatprep.subr.bf16.mxu0 %v4851
      %5706 = vmatpush1.bf16.msra.mxu0 %v4850
      %5707 = vmatprep.subr.bf16.mxu0 %v4847
      %5708 = vmatpush1.bf16.msra.mxu0 %v4846
      %5709 = vmatprep.subr.bf16.mxu0 %v4843
      %5710 = vmatpush1.bf16.msra.mxu0 %v4842
      %5711 = vmatprep.subr.bf16.mxu0 %v4839
      %5712 = vmatpush1.bf16.msra.mxu0 %v4838
      %5713 = vmatprep.subr.bf16.mxu0 %v4835
      %5714 = vmatpush1.bf16.msra.mxu0 %v4834
      %5715 = vmatprep.subr.bf16.mxu0 %v4831
      %5716 = vmatpush1.bf16.msra.mxu0 %v4830
      %5717 = vmatprep.subr.bf16.mxu0 %v4827
      %5718 = vmatpush1.bf16.msra.mxu0 %v4826
      %5719 = vmatprep.subr.bf16.mxu0 %v4887
      %5720 = vmatpush2.bf16.msra.mxu0 %v4886
      %5721 = vmatprep.subr.bf16.mxu0 %v4883
      %5722 = vmatpush2.bf16.msra.mxu0 %v4882
      %5723 = vmatprep.subr.bf16.mxu0 %v4879
      %5724 = vmatpush2.bf16.msra.mxu0 %v4878
      %5725 = vmatprep.subr.bf16.mxu0 %v4875
      %5726 = vmatpush2.bf16.msra.mxu0 %v4874
      %5727 = vmatprep.subr.bf16.mxu0 %v4871
      %5728 = vmatpush2.bf16.msra.mxu0 %v4870
      %5729 = vmatprep.subr.bf16.mxu0 %v4867
      %5730 = vmatpush2.bf16.msra.mxu0 %v4866
      %5731 = vmatprep.subr.bf16.mxu0 %v4863
      %5732 = vmatpush2.bf16.msra.mxu0 %v4862
      %5733 = vmatprep.subr.bf16.mxu0 %v4859
      %5734 = vmatpush2.bf16.msra.mxu0 %v4858
      %5735 = vmatprep.mubr.bf16.mxu0 %v2307
      %5736 = vmatmul.mubr.bf16.gmra.mxu0 %v2306
      %v5737 = vpop.f32.mrf.mxu0
      %v5738 = vadd.f32 %v5695, %v5737
      %v5739 = vpop.f32.mrf.mxu0
      %v5740 = vadd.f32 %v5697, %v5739
      %v5741 = vpop.f32.mrf.mxu0
      %v5742 = vadd.f32 %v5699, %v5741
      %v5743 = vpop.f32.mrf.mxu0
      %v5744 = vadd.f32 %v5701, %v5743
      %5745 = vdwg.mxu0
      %5746 = vmatprep.subr.bf16.mxu0 %v4409
      %5747 = vmatpush1.bf16.msra.mxu0 %v4408
      %5748 = vmatprep.subr.bf16.mxu0 %v4405
      %5749 = vmatpush1.bf16.msra.mxu0 %v4404
      %5750 = vmatprep.subr.bf16.mxu0 %v4401
      %5751 = vmatpush1.bf16.msra.mxu0 %v4400
      %5752 = vmatprep.subr.bf16.mxu0 %v4397
      %5753 = vmatpush1.bf16.msra.mxu0 %v4396
      %5754 = vmatprep.subr.bf16.mxu0 %v4393
      %5755 = vmatpush1.bf16.msra.mxu0 %v4392
      %5756 = vmatprep.subr.bf16.mxu0 %v4389
      %5757 = vmatpush1.bf16.msra.mxu0 %v4388
      %5758 = vmatprep.subr.bf16.mxu0 %v4385
      %5759 = vmatpush1.bf16.msra.mxu0 %v4384
      %5760 = vmatprep.subr.bf16.mxu0 %v4381
      %5761 = vmatpush1.bf16.msra.mxu0 %v4380
      %5762 = vmatprep.subr.bf16.mxu0 %v4441
      %5763 = vmatpush2.bf16.msra.mxu0 %v4440
      %5764 = vmatprep.subr.bf16.mxu0 %v4437
      %5765 = vmatpush2.bf16.msra.mxu0 %v4436
      %5766 = vmatprep.subr.bf16.mxu0 %v4433
      %5767 = vmatpush2.bf16.msra.mxu0 %v4432
      %5768 = vmatprep.subr.bf16.mxu0 %v4429
      %5769 = vmatpush2.bf16.msra.mxu0 %v4428
      %5770 = vmatprep.subr.bf16.mxu0 %v4425
      %5771 = vmatpush2.bf16.msra.mxu0 %v4424
      %5772 = vmatprep.subr.bf16.mxu0 %v4421
      %5773 = vmatpush2.bf16.msra.mxu0 %v4420
      %5774 = vmatprep.subr.bf16.mxu0 %v4417
      %5775 = vmatpush2.bf16.msra.mxu0 %v4416
      %5776 = vmatprep.subr.bf16.mxu0 %v4413
      %5777 = vmatpush2.bf16.msra.mxu0 %v4412
      %5778 = vmatprep.mubr.bf16.mxu0 %v2293
      %5779 = vmatmul.mubr.bf16.gmra.mxu0 %v2292
      %v5780 = vpop.f32.mrf.mxu0
      %v5781 = vadd.f32 %v2833, %v5780
      %v5782 = vpop.f32.mrf.mxu0
      %v5783 = vadd.f32 %v2837, %v5782
      %v5784 = vpop.f32.mrf.mxu0
      %v5785 = vadd.f32 %v2833, %v5784
      %v5786 = vpop.f32.mrf.mxu0
      %v5787 = vadd.f32 %v2837, %v5786
      %5788 = vdwg.mxu0
      %5789 = vmatprep.subr.bf16.mxu0 %v4473
      %5790 = vmatpush1.bf16.msra.mxu0 %v4472
      %5791 = vmatprep.subr.bf16.mxu0 %v4469
      %5792 = vmatpush1.bf16.msra.mxu0 %v4468
      %5793 = vmatprep.subr.bf16.mxu0 %v4465
      %5794 = vmatpush1.bf16.msra.mxu0 %v4464
      %5795 = vmatprep.subr.bf16.mxu0 %v4461
      %5796 = vmatpush1.bf16.msra.mxu0 %v4460
      %5797 = vmatprep.subr.bf16.mxu0 %v4457
      %5798 = vmatpush1.bf16.msra.mxu0 %v4456
      %5799 = vmatprep.subr.bf16.mxu0 %v4453
      %5800 = vmatpush1.bf16.msra.mxu0 %v4452
      %5801 = vmatprep.subr.bf16.mxu0 %v4449
      %5802 = vmatpush1.bf16.msra.mxu0 %v4448
      %5803 = vmatprep.subr.bf16.mxu0 %v4445
      %5804 = vmatpush1.bf16.msra.mxu0 %v4444
      %5805 = vmatprep.subr.bf16.mxu0 %v4505
      %5806 = vmatpush2.bf16.msra.mxu0 %v4504
      %5807 = vmatprep.subr.bf16.mxu0 %v4501
      %5808 = vmatpush2.bf16.msra.mxu0 %v4500
      %5809 = vmatprep.subr.bf16.mxu0 %v4497
      %5810 = vmatpush2.bf16.msra.mxu0 %v4496
      %5811 = vmatprep.subr.bf16.mxu0 %v4493
      %5812 = vmatpush2.bf16.msra.mxu0 %v4492
      %5813 = vmatprep.subr.bf16.mxu0 %v4489
      %5814 = vmatpush2.bf16.msra.mxu0 %v4488
      %5815 = vmatprep.subr.bf16.mxu0 %v4485
      %5816 = vmatpush2.bf16.msra.mxu0 %v4484
      %5817 = vmatprep.subr.bf16.mxu0 %v4481
      %5818 = vmatpush2.bf16.msra.mxu0 %v4480
      %5819 = vmatprep.subr.bf16.mxu0 %v4477
      %5820 = vmatpush2.bf16.msra.mxu0 %v4476
      %5821 = vmatprep.mubr.bf16.mxu0 %v2295
      %5822 = vmatmul.mubr.bf16.gmra.mxu0 %v2294
      %v5823 = vpop.f32.mrf.mxu0
      %v5824 = vadd.f32 %v5781, %v5823
      %v5825 = vpop.f32.mrf.mxu0
      %v5826 = vadd.f32 %v5783, %v5825
      %v5827 = vpop.f32.mrf.mxu0
      %v5828 = vadd.f32 %v5785, %v5827
      %v5829 = vpop.f32.mrf.mxu0
      %v5830 = vadd.f32 %v5787, %v5829
      %5831 = vdwg.mxu0
      %5832 = vmatprep.subr.bf16.mxu0 %v4537
      %5833 = vmatpush1.bf16.msra.mxu0 %v4536
      %5834 = vmatprep.subr.bf16.mxu0 %v4533
      %5835 = vmatpush1.bf16.msra.mxu0 %v4532
      %5836 = vmatprep.subr.bf16.mxu0 %v4529
      %5837 = vmatpush1.bf16.msra.mxu0 %v4528
      %5838 = vmatprep.subr.bf16.mxu0 %v4525
      %5839 = vmatpush1.bf16.msra.mxu0 %v4524
      %5840 = vmatprep.subr.bf16.mxu0 %v4521
      %5841 = vmatpush1.bf16.msra.mxu0 %v4520
      %5842 = vmatprep.subr.bf16.mxu0 %v4517
      %5843 = vmatpush1.bf16.msra.mxu0 %v4516
      %5844 = vmatprep.subr.bf16.mxu0 %v4513
      %5845 = vmatpush1.bf16.msra.mxu0 %v4512
      %5846 = vmatprep.subr.bf16.mxu0 %v4509
      %5847 = vmatpush1.bf16.msra.mxu0 %v4508
      %5848 = vmatprep.subr.bf16.mxu0 %v4569
      %5849 = vmatpush2.bf16.msra.mxu0 %v4568
      %5850 = vmatprep.subr.bf16.mxu0 %v4565
      %5851 = vmatpush2.bf16.msra.mxu0 %v4564
      %5852 = vmatprep.subr.bf16.mxu0 %v4561
      %5853 = vmatpush2.bf16.msra.mxu0 %v4560
      %5854 = vmatprep.subr.bf16.mxu0 %v4557
      %5855 = vmatpush2.bf16.msra.mxu0 %v4556
      %5856 = vmatprep.subr.bf16.mxu0 %v4553
      %5857 = vmatpush2.bf16.msra.mxu0 %v4552
      %5858 = vmatprep.subr.bf16.mxu0 %v4549
      %5859 = vmatpush2.bf16.msra.mxu0 %v4548
      %5860 = vmatprep.subr.bf16.mxu0 %v4545
      %5861 = vmatpush2.bf16.msra.mxu0 %v4544
      %5862 = vmatprep.subr.bf16.mxu0 %v4541
      %5863 = vmatpush2.bf16.msra.mxu0 %v4540
      %5864 = vmatprep.mubr.bf16.mxu0 %v2297
      %5865 = vmatmul.mubr.bf16.gmra.mxu0 %v2296
      %v5866 = vpop.f32.mrf.mxu0
      %v5867 = vadd.f32 %v5824, %v5866
      %v5868 = vpop.f32.mrf.mxu0
      %v5869 = vadd.f32 %v5826, %v5868
      %v5870 = vpop.f32.mrf.mxu0
      %v5871 = vadd.f32 %v5828, %v5870
      %v5872 = vpop.f32.mrf.mxu0
      %v5873 = vadd.f32 %v5830, %v5872
      %5874 = vdwg.mxu0
      %5875 = vmatprep.subr.bf16.mxu0 %v4601
      %5876 = vmatpush1.bf16.msra.mxu0 %v4600
      %5877 = vmatprep.subr.bf16.mxu0 %v4597
      %5878 = vmatpush1.bf16.msra.mxu0 %v4596
      %5879 = vmatprep.subr.bf16.mxu0 %v4593
      %5880 = vmatpush1.bf16.msra.mxu0 %v4592
      %5881 = vmatprep.subr.bf16.mxu0 %v4589
      %5882 = vmatpush1.bf16.msra.mxu0 %v4588
      %5883 = vmatprep.subr.bf16.mxu0 %v4585
      %5884 = vmatpush1.bf16.msra.mxu0 %v4584
      %5885 = vmatprep.subr.bf16.mxu0 %v4581
      %5886 = vmatpush1.bf16.msra.mxu0 %v4580
      %5887 = vmatprep.subr.bf16.mxu0 %v4577
      %5888 = vmatpush1.bf16.msra.mxu0 %v4576
      %5889 = vmatprep.subr.bf16.mxu0 %v4573
      %5890 = vmatpush1.bf16.msra.mxu0 %v4572
      %5891 = vmatprep.subr.bf16.mxu0 %v4633
      %5892 = vmatpush2.bf16.msra.mxu0 %v4632
      %5893 = vmatprep.subr.bf16.mxu0 %v4629
      %5894 = vmatpush2.bf16.msra.mxu0 %v4628
      %5895 = vmatprep.subr.bf16.mxu0 %v4625
      %5896 = vmatpush2.bf16.msra.mxu0 %v4624
      %5897 = vmatprep.subr.bf16.mxu0 %v4621
      %5898 = vmatpush2.bf16.msra.mxu0 %v4620
      %5899 = vmatprep.subr.bf16.mxu0 %v4617
      %5900 = vmatpush2.bf16.msra.mxu0 %v4616
      %5901 = vmatprep.subr.bf16.mxu0 %v4613
      %5902 = vmatpush2.bf16.msra.mxu0 %v4612
      %5903 = vmatprep.subr.bf16.mxu0 %v4609
      %5904 = vmatpush2.bf16.msra.mxu0 %v4608
      %5905 = vmatprep.subr.bf16.mxu0 %v4605
      %5906 = vmatpush2.bf16.msra.mxu0 %v4604
      %5907 = vmatprep.mubr.bf16.mxu0 %v2299
      %5908 = vmatmul.mubr.bf16.gmra.mxu0 %v2298
      %v5909 = vpop.f32.mrf.mxu0
      %v5910 = vadd.f32 %v5867, %v5909
      %v5911 = vpop.f32.mrf.mxu0
      %v5912 = vadd.f32 %v5869, %v5911
      %v5913 = vpop.f32.mrf.mxu0
      %v5914 = vadd.f32 %v5871, %v5913
      %v5915 = vpop.f32.mrf.mxu0
      %v5916 = vadd.f32 %v5873, %v5915
      %5917 = vdwg.mxu0
      %5918 = vmatprep.subr.bf16.mxu0 %v4665
      %5919 = vmatpush1.bf16.msra.mxu0 %v4664
      %5920 = vmatprep.subr.bf16.mxu0 %v4661
      %5921 = vmatpush1.bf16.msra.mxu0 %v4660
      %5922 = vmatprep.subr.bf16.mxu0 %v4657
      %5923 = vmatpush1.bf16.msra.mxu0 %v4656
      %5924 = vmatprep.subr.bf16.mxu0 %v4653
      %5925 = vmatpush1.bf16.msra.mxu0 %v4652
      %5926 = vmatprep.subr.bf16.mxu0 %v4649
      %5927 = vmatpush1.bf16.msra.mxu0 %v4648
      %5928 = vmatprep.subr.bf16.mxu0 %v4645
      %5929 = vmatpush1.bf16.msra.mxu0 %v4644
      %5930 = vmatprep.subr.bf16.mxu0 %v4641
      %5931 = vmatpush1.bf16.msra.mxu0 %v4640
      %5932 = vmatprep.subr.bf16.mxu0 %v4637
      %5933 = vmatpush1.bf16.msra.mxu0 %v4636
      %5934 = vmatprep.subr.bf16.mxu0 %v4697
      %5935 = vmatpush2.bf16.msra.mxu0 %v4696
      %5936 = vmatprep.subr.bf16.mxu0 %v4693
      %5937 = vmatpush2.bf16.msra.mxu0 %v4692
      %5938 = vmatprep.subr.bf16.mxu0 %v4689
      %5939 = vmatpush2.bf16.msra.mxu0 %v4688
      %5940 = vmatprep.subr.bf16.mxu0 %v4685
      %5941 = vmatpush2.bf16.msra.mxu0 %v4684
      %5942 = vmatprep.subr.bf16.mxu0 %v4681
      %5943 = vmatpush2.bf16.msra.mxu0 %v4680
      %5944 = vmatprep.subr.bf16.mxu0 %v4677
      %5945 = vmatpush2.bf16.msra.mxu0 %v4676
      %5946 = vmatprep.subr.bf16.mxu0 %v4673
      %5947 = vmatpush2.bf16.msra.mxu0 %v4672
      %5948 = vmatprep.subr.bf16.mxu0 %v4669
      %5949 = vmatpush2.bf16.msra.mxu0 %v4668
      %5950 = vmatprep.mubr.bf16.mxu0 %v2301
      %5951 = vmatmul.mubr.bf16.gmra.mxu0 %v2300
      %v5952 = vpop.f32.mrf.mxu0
      %v5953 = vadd.f32 %v5910, %v5952
      %v5954 = vpop.f32.mrf.mxu0
      %v5955 = vadd.f32 %v5912, %v5954
      %v5956 = vpop.f32.mrf.mxu0
      %v5957 = vadd.f32 %v5914, %v5956
      %v5958 = vpop.f32.mrf.mxu0
      %v5959 = vadd.f32 %v5916, %v5958
      %5960 = vdwg.mxu0
      %5961 = vmatprep.subr.bf16.mxu0 %v4729
      %5962 = vmatpush1.bf16.msra.mxu0 %v4728
      %5963 = vmatprep.subr.bf16.mxu0 %v4725
      %5964 = vmatpush1.bf16.msra.mxu0 %v4724
      %5965 = vmatprep.subr.bf16.mxu0 %v4721
      %5966 = vmatpush1.bf16.msra.mxu0 %v4720
      %5967 = vmatprep.subr.bf16.mxu0 %v4717
      %5968 = vmatpush1.bf16.msra.mxu0 %v4716
      %5969 = vmatprep.subr.bf16.mxu0 %v4713
      %5970 = vmatpush1.bf16.msra.mxu0 %v4712
      %5971 = vmatprep.subr.bf16.mxu0 %v4709
      %5972 = vmatpush1.bf16.msra.mxu0 %v4708
      %5973 = vmatprep.subr.bf16.mxu0 %v4705
      %5974 = vmatpush1.bf16.msra.mxu0 %v4704
      %5975 = vmatprep.subr.bf16.mxu0 %v4701
      %5976 = vmatpush1.bf16.msra.mxu0 %v4700
      %5977 = vmatprep.subr.bf16.mxu0 %v4761
      %5978 = vmatpush2.bf16.msra.mxu0 %v4760
      %5979 = vmatprep.subr.bf16.mxu0 %v4757
      %5980 = vmatpush2.bf16.msra.mxu0 %v4756
      %5981 = vmatprep.subr.bf16.mxu0 %v4753
      %5982 = vmatpush2.bf16.msra.mxu0 %v4752
      %5983 = vmatprep.subr.bf16.mxu0 %v4749
      %5984 = vmatpush2.bf16.msra.mxu0 %v4748
      %5985 = vmatprep.subr.bf16.mxu0 %v4745
      %5986 = vmatpush2.bf16.msra.mxu0 %v4744
      %5987 = vmatprep.subr.bf16.mxu0 %v4741
      %5988 = vmatpush2.bf16.msra.mxu0 %v4740
      %5989 = vmatprep.subr.bf16.mxu0 %v4737
      %5990 = vmatpush2.bf16.msra.mxu0 %v4736
      %5991 = vmatprep.subr.bf16.mxu0 %v4733
      %5992 = vmatpush2.bf16.msra.mxu0 %v4732
      %5993 = vmatprep.mubr.bf16.mxu0 %v2303
      %5994 = vmatmul.mubr.bf16.gmra.mxu0 %v2302
      %v5995 = vpop.f32.mrf.mxu0
      %v5996 = vadd.f32 %v5953, %v5995
      %v5997 = vpop.f32.mrf.mxu0
      %v5998 = vadd.f32 %v5955, %v5997
      %v5999 = vpop.f32.mrf.mxu0
      %v6000 = vadd.f32 %v5957, %v5999
      %v6001 = vpop.f32.mrf.mxu0
      %v6002 = vadd.f32 %v5959, %v6001
      %6003 = vdwg.mxu0
      %6004 = vmatprep.subr.bf16.mxu0 %v4793
      %6005 = vmatpush1.bf16.msra.mxu0 %v4792
      %6006 = vmatprep.subr.bf16.mxu0 %v4789
      %6007 = vmatpush1.bf16.msra.mxu0 %v4788
      %6008 = vmatprep.subr.bf16.mxu0 %v4785
      %6009 = vmatpush1.bf16.msra.mxu0 %v4784
      %6010 = vmatprep.subr.bf16.mxu0 %v4781
      %6011 = vmatpush1.bf16.msra.mxu0 %v4780
      %6012 = vmatprep.subr.bf16.mxu0 %v4777
      %6013 = vmatpush1.bf16.msra.mxu0 %v4776
      %6014 = vmatprep.subr.bf16.mxu0 %v4773
      %6015 = vmatpush1.bf16.msra.mxu0 %v4772
      %6016 = vmatprep.subr.bf16.mxu0 %v4769
      %6017 = vmatpush1.bf16.msra.mxu0 %v4768
      %6018 = vmatprep.subr.bf16.mxu0 %v4765
      %6019 = vmatpush1.bf16.msra.mxu0 %v4764
      %6020 = vmatprep.subr.bf16.mxu0 %v4825
      %6021 = vmatpush2.bf16.msra.mxu0 %v4824
      %6022 = vmatprep.subr.bf16.mxu0 %v4821
      %6023 = vmatpush2.bf16.msra.mxu0 %v4820
      %6024 = vmatprep.subr.bf16.mxu0 %v4817
      %6025 = vmatpush2.bf16.msra.mxu0 %v4816
      %6026 = vmatprep.subr.bf16.mxu0 %v4813
      %6027 = vmatpush2.bf16.msra.mxu0 %v4812
      %6028 = vmatprep.subr.bf16.mxu0 %v4809
      %6029 = vmatpush2.bf16.msra.mxu0 %v4808
      %6030 = vmatprep.subr.bf16.mxu0 %v4805
      %6031 = vmatpush2.bf16.msra.mxu0 %v4804
      %6032 = vmatprep.subr.bf16.mxu0 %v4801
      %6033 = vmatpush2.bf16.msra.mxu0 %v4800
      %6034 = vmatprep.subr.bf16.mxu0 %v4797
      %6035 = vmatpush2.bf16.msra.mxu0 %v4796
      %6036 = vmatprep.mubr.bf16.mxu0 %v2305
      %6037 = vmatmul.mubr.bf16.gmra.mxu0 %v2304
      %v6038 = vpop.f32.mrf.mxu0
      %v6039 = vadd.f32 %v5996, %v6038
      %v6040 = vpop.f32.mrf.mxu0
      %v6041 = vadd.f32 %v5998, %v6040
      %v6042 = vpop.f32.mrf.mxu0
      %v6043 = vadd.f32 %v6000, %v6042
      %v6044 = vpop.f32.mrf.mxu0
      %v6045 = vadd.f32 %v6002, %v6044
      %6046 = vdwg.mxu0
      %6047 = vmatprep.subr.bf16.mxu0 %v4857
      %6048 = vmatpush1.bf16.msra.mxu0 %v4856
      %6049 = vmatprep.subr.bf16.mxu0 %v4853
      %6050 = vmatpush1.bf16.msra.mxu0 %v4852
      %6051 = vmatprep.subr.bf16.mxu0 %v4849
      %6052 = vmatpush1.bf16.msra.mxu0 %v4848
      %6053 = vmatprep.subr.bf16.mxu0 %v4845
      %6054 = vmatpush1.bf16.msra.mxu0 %v4844
      %6055 = vmatprep.subr.bf16.mxu0 %v4841
      %6056 = vmatpush1.bf16.msra.mxu0 %v4840
      %6057 = vmatprep.subr.bf16.mxu0 %v4837
      %6058 = vmatpush1.bf16.msra.mxu0 %v4836
      %6059 = vmatprep.subr.bf16.mxu0 %v4833
      %6060 = vmatpush1.bf16.msra.mxu0 %v4832
      %6061 = vmatprep.subr.bf16.mxu0 %v4829
      %6062 = vmatpush1.bf16.msra.mxu0 %v4828
      %6063 = vmatprep.subr.bf16.mxu0 %v4889
      %6064 = vmatpush2.bf16.msra.mxu0 %v4888
      %6065 = vmatprep.subr.bf16.mxu0 %v4885
      %6066 = vmatpush2.bf16.msra.mxu0 %v4884
      %6067 = vmatprep.subr.bf16.mxu0 %v4881
      %6068 = vmatpush2.bf16.msra.mxu0 %v4880
      %6069 = vmatprep.subr.bf16.mxu0 %v4877
      %6070 = vmatpush2.bf16.msra.mxu0 %v4876
      %6071 = vmatprep.subr.bf16.mxu0 %v4873
      %6072 = vmatpush2.bf16.msra.mxu0 %v4872
      %6073 = vmatprep.subr.bf16.mxu0 %v4869
      %6074 = vmatpush2.bf16.msra.mxu0 %v4868
      %6075 = vmatprep.subr.bf16.mxu0 %v4865
      %6076 = vmatpush2.bf16.msra.mxu0 %v4864
      %6077 = vmatprep.subr.bf16.mxu0 %v4861
      %6078 = vmatpush2.bf16.msra.mxu0 %v4860
      %6079 = vmatprep.mubr.bf16.mxu0 %v2307
      %6080 = vmatmul.mubr.bf16.gmra.mxu0 %v2306
      %v6081 = vpop.f32.mrf.mxu0
      %v6082 = vadd.f32 %v6039, %v6081
      %v6083 = vpop.f32.mrf.mxu0
      %v6084 = vadd.f32 %v6041, %v6083
      %v6085 = vpop.f32.mrf.mxu0
      %v6086 = vadd.f32 %v6043, %v6085
      %v6087 = vpop.f32.mrf.mxu0
      %v6088 = vadd.f32 %v6045, %v6087
      %6089 = vdwg.mxu0
      %v6090 = vmax.f32 %v5738, 0.0
      %v6091 = vmax.f32 %v5740, 0.0
      %v6092 = vmax.f32 %v6082, 0.0
      %v6093 = vmax.f32 %v6084, 0.0
      %v6094 = vmax.f32 %v5742, 0.0
      %v6095 = vmax.f32 %v5744, 0.0
      %v6096 = vmax.f32 %v6086, 0.0
      %v6097 = vmax.f32 %v6088, 0.0
      %v6098 = vpack.c.bf16 %v6094, %v6090
      %v6099 = vpack.c.bf16 %v6095, %v6091
      %v6100 = vpack.c.bf16 %v6096, %v6092
      %v6101 = vpack.c.bf16 %v6097, %v6093
      %v6102 = vld [vmem:[#allocation12] sm:$0xf]
      %v6103 = vld [vmem:[#allocation12 + $0x4] sm:$0xf]
      %v6104 = vld [vmem:[#allocation12 + $0x8] sm:$0xf]
      %v6105 = vld [vmem:[#allocation12 + $0xc] sm:$0xf]
      %v6106 = vld [vmem:[#allocation12 + $0x10] sm:$0xf]
      %v6107 = vld [vmem:[#allocation12 + $0x14] sm:$0xf]
      %v6108 = vld [vmem:[#allocation12 + $0x18] sm:$0xf]
      %v6109 = vld [vmem:[#allocation12 + $0x1c] sm:$0xf]
      %v6110 = vld [vmem:[#allocation12 + $0x20] sm:$0xf]
      %v6111 = vld [vmem:[#allocation12 + $0x24] sm:$0xf]
      %v6112 = vld [vmem:[#allocation12 + $0x28] sm:$0xf]
      %v6113 = vld [vmem:[#allocation12 + $0x2c] sm:$0xf]
      %v6114 = vld [vmem:[#allocation12 + $0x30] sm:$0xf]
      %v6115 = vld [vmem:[#allocation12 + $0x34] sm:$0xf]
      %v6116 = vld [vmem:[#allocation12 + $0x38] sm:$0xf]
      %v6117 = vld [vmem:[#allocation12 + $0x3c] sm:$0xf]
      %v6118 = vld [vmem:[#allocation12 + $0x40] sm:$0xf]
      %v6119 = vld [vmem:[#allocation12 + $0x44] sm:$0xf]
      %v6120 = vld [vmem:[#allocation12 + $0x48] sm:$0xf]
      %v6121 = vld [vmem:[#allocation12 + $0x4c] sm:$0xf]
      %v6122 = vld [vmem:[#allocation12 + $0x50] sm:$0xf]
      %v6123 = vld [vmem:[#allocation12 + $0x54] sm:$0xf]
      %v6124 = vld [vmem:[#allocation12 + $0x58] sm:$0xf]
      %v6125 = vld [vmem:[#allocation12 + $0x5c] sm:$0xf]
      %v6126 = vld [vmem:[#allocation12 + $0x60] sm:$0xf]
      %v6127 = vld [vmem:[#allocation12 + $0x64] sm:$0xf]
      %v6128 = vld [vmem:[#allocation12 + $0x68] sm:$0xf]
      %v6129 = vld [vmem:[#allocation12 + $0x6c] sm:$0xf]
      %v6130 = vld [vmem:[#allocation12 + $0x70] sm:$0xf]
      %v6131 = vld [vmem:[#allocation12 + $0x74] sm:$0xf]
      %v6132 = vld [vmem:[#allocation12 + $0x78] sm:$0xf]
      %v6133 = vld [vmem:[#allocation12 + $0x7c] sm:$0xf]
      %v6134 = vld [vmem:[#allocation12 + $0x80] sm:$0xf]
      %v6135 = vld [vmem:[#allocation12 + $0x84] sm:$0xf]
      %v6136 = vld [vmem:[#allocation12 + $0x88] sm:$0xf]
      %v6137 = vld [vmem:[#allocation12 + $0x8c] sm:$0xf]
      %v6138 = vld [vmem:[#allocation12 + $0x90] sm:$0xf]
      %v6139 = vld [vmem:[#allocation12 + $0x94] sm:$0xf]
      %v6140 = vld [vmem:[#allocation12 + $0x98] sm:$0xf]
      %v6141 = vld [vmem:[#allocation12 + $0x9c] sm:$0xf]
      %v6142 = vld [vmem:[#allocation12 + $0xa0] sm:$0xf]
      %v6143 = vld [vmem:[#allocation12 + $0xa4] sm:$0xf]
      %v6144 = vld [vmem:[#allocation12 + $0xa8] sm:$0xf]
      %v6145 = vld [vmem:[#allocation12 + $0xac] sm:$0xf]
      %v6146 = vld [vmem:[#allocation12 + $0xb0] sm:$0xf]
      %v6147 = vld [vmem:[#allocation12 + $0xb4] sm:$0xf]
      %v6148 = vld [vmem:[#allocation12 + $0xb8] sm:$0xf]
      %v6149 = vld [vmem:[#allocation12 + $0xbc] sm:$0xf]
      %v6150 = vld [vmem:[#allocation12 + $0xc0] sm:$0xf]
      %v6151 = vld [vmem:[#allocation12 + $0xc4] sm:$0xf]
      %v6152 = vld [vmem:[#allocation12 + $0xc8] sm:$0xf]
      %v6153 = vld [vmem:[#allocation12 + $0xcc] sm:$0xf]
      %v6154 = vld [vmem:[#allocation12 + $0xd0] sm:$0xf]
      %v6155 = vld [vmem:[#allocation12 + $0xd4] sm:$0xf]
      %v6156 = vld [vmem:[#allocation12 + $0xd8] sm:$0xf]
      %v6157 = vld [vmem:[#allocation12 + $0xdc] sm:$0xf]
      %v6158 = vld [vmem:[#allocation12 + $0xe0] sm:$0xf]
      %v6159 = vld [vmem:[#allocation12 + $0xe4] sm:$0xf]
      %v6160 = vld [vmem:[#allocation12 + $0xe8] sm:$0xf]
      %v6161 = vld [vmem:[#allocation12 + $0xec] sm:$0xf]
      %v6162 = vld [vmem:[#allocation12 + $0xf0] sm:$0xf]
      %v6163 = vld [vmem:[#allocation12 + $0xf4] sm:$0xf]
      %v6164 = vld [vmem:[#allocation12 + $0xf8] sm:$0xf]
      %v6165 = vld [vmem:[#allocation12 + $0xfc] sm:$0xf]
      %v6166 = vld [vmem:[#allocation14] sm:$0x1]
      %v6168 = vlaneseq
      %v6169 = vshrl.u32 %v6168, 7
      %v6170 = vsub.s32 0, %v6169
      %v6171 = vrot.slane %v6166, %v6170
      %v6237 = vunpack.c.l.b16 %v6102
      %v6238 = vunpack.c.l.b16 %v6103
      %v6239 = vunpack.c.l.b16 %v6104
      %v6240 = vunpack.c.l.b16 %v6105
      %v6241 = vunpack.c.l.b16 %v6106
      %v6242 = vunpack.c.l.b16 %v6107
      %v6243 = vunpack.c.l.b16 %v6108
      %v6244 = vunpack.c.l.b16 %v6109
      %v6245 = vunpack.c.l.b16 %v6110
      %v6246 = vunpack.c.l.b16 %v6111
      %v6247 = vunpack.c.l.b16 %v6112
      %v6248 = vunpack.c.l.b16 %v6113
      %v6249 = vunpack.c.l.b16 %v6114
      %v6250 = vunpack.c.l.b16 %v6115
      %v6251 = vunpack.c.l.b16 %v6116
      %v6252 = vunpack.c.l.b16 %v6117
      %v6253 = vunpack.c.l.b16 %v6118
      %v6254 = vunpack.c.l.b16 %v6119
      %v6255 = vunpack.c.l.b16 %v6120
      %v6256 = vunpack.c.l.b16 %v6121
      %v6257 = vunpack.c.l.b16 %v6122
      %v6258 = vunpack.c.l.b16 %v6123
      %v6259 = vunpack.c.l.b16 %v6124
      %v6260 = vunpack.c.l.b16 %v6125
      %v6261 = vunpack.c.l.b16 %v6126
      %v6262 = vunpack.c.l.b16 %v6127
      %v6263 = vunpack.c.l.b16 %v6128
      %v6264 = vunpack.c.l.b16 %v6129
      %v6265 = vunpack.c.l.b16 %v6130
      %v6266 = vunpack.c.l.b16 %v6131
      %v6267 = vunpack.c.l.b16 %v6132
      %v6268 = vunpack.c.l.b16 %v6133
      %v6269 = vunpack.c.l.b16 %v6134
      %v6270 = vunpack.c.l.b16 %v6135
      %v6271 = vunpack.c.l.b16 %v6136
      %v6272 = vunpack.c.l.b16 %v6137
      %v6273 = vunpack.c.l.b16 %v6138
      %v6274 = vunpack.c.l.b16 %v6139
      %v6275 = vunpack.c.l.b16 %v6140
      %v6276 = vunpack.c.l.b16 %v6141
      %v6277 = vunpack.c.l.b16 %v6142
      %v6278 = vunpack.c.l.b16 %v6143
      %v6279 = vunpack.c.l.b16 %v6144
      %v6280 = vunpack.c.l.b16 %v6145
      %v6281 = vunpack.c.l.b16 %v6146
      %v6282 = vunpack.c.l.b16 %v6147
      %v6283 = vunpack.c.l.b16 %v6148
      %v6284 = vunpack.c.l.b16 %v6149
      %v6285 = vunpack.c.l.b16 %v6150
      %v6286 = vunpack.c.l.b16 %v6151
      %v6287 = vunpack.c.l.b16 %v6152
      %v6288 = vunpack.c.l.b16 %v6153
      %v6289 = vunpack.c.l.b16 %v6154
      %v6290 = vunpack.c.l.b16 %v6155
      %v6291 = vunpack.c.l.b16 %v6156
      %v6292 = vunpack.c.l.b16 %v6157
      %v6293 = vunpack.c.l.b16 %v6158
      %v6294 = vunpack.c.l.b16 %v6159
      %v6295 = vunpack.c.l.b16 %v6160
      %v6296 = vunpack.c.l.b16 %v6161
      %v6297 = vunpack.c.l.b16 %v6162
      %v6298 = vunpack.c.l.b16 %v6163
      %v6299 = vunpack.c.l.b16 %v6164
      %v6300 = vunpack.c.l.b16 %v6165
      %v6301 = vpack.c.b16 %v6238, %v6237
      %v6302 = vpack.c.b16 %v6240, %v6239
      %v6303 = vpack.c.b16 %v6242, %v6241
      %v6304 = vpack.c.b16 %v6244, %v6243
      %v6305 = vpack.c.b16 %v6246, %v6245
      %v6306 = vpack.c.b16 %v6248, %v6247
      %v6307 = vpack.c.b16 %v6250, %v6249
      %v6308 = vpack.c.b16 %v6252, %v6251
      %v6309 = vpack.c.b16 %v6254, %v6253
      %v6310 = vpack.c.b16 %v6256, %v6255
      %v6311 = vpack.c.b16 %v6258, %v6257
      %v6312 = vpack.c.b16 %v6260, %v6259
      %v6313 = vpack.c.b16 %v6262, %v6261
      %v6314 = vpack.c.b16 %v6264, %v6263
      %v6315 = vpack.c.b16 %v6266, %v6265
      %v6316 = vpack.c.b16 %v6268, %v6267
      %v6317 = vpack.c.b16 %v6270, %v6269
      %v6318 = vpack.c.b16 %v6272, %v6271
      %v6319 = vpack.c.b16 %v6274, %v6273
      %v6320 = vpack.c.b16 %v6276, %v6275
      %v6321 = vpack.c.b16 %v6278, %v6277
      %v6322 = vpack.c.b16 %v6280, %v6279
      %v6323 = vpack.c.b16 %v6282, %v6281
      %v6324 = vpack.c.b16 %v6284, %v6283
      %v6325 = vpack.c.b16 %v6286, %v6285
      %v6326 = vpack.c.b16 %v6288, %v6287
      %v6327 = vpack.c.b16 %v6290, %v6289
      %v6328 = vpack.c.b16 %v6292, %v6291
      %v6329 = vpack.c.b16 %v6294, %v6293
      %v6330 = vpack.c.b16 %v6296, %v6295
      %v6331 = vpack.c.b16 %v6298, %v6297
      %v6332 = vpack.c.b16 %v6300, %v6299
      %6365 = vmatprep.subr.bf16.mxu0 0
      %6366 = vmatpush1.bf16.msra.mxu0 %v6308
      %6367 = vmatprep.subr.bf16.mxu0 0
      %6368 = vmatpush1.bf16.msra.mxu0 %v6307
      %6369 = vmatprep.subr.bf16.mxu0 0
      %6370 = vmatpush1.bf16.msra.mxu0 %v6306
      %6371 = vmatprep.subr.bf16.mxu0 0
      %6372 = vmatpush1.bf16.msra.mxu0 %v6305
      %6373 = vmatprep.subr.bf16.mxu0 0
      %6374 = vmatpush1.bf16.msra.mxu0 %v6304
      %6375 = vmatprep.subr.bf16.mxu0 0
      %6376 = vmatpush1.bf16.msra.mxu0 %v6303
      %6377 = vmatprep.subr.bf16.mxu0 0
      %6378 = vmatpush1.bf16.msra.mxu0 %v6302
      %6379 = vmatprep.subr.bf16.mxu0 0
      %6380 = vmatpush1.bf16.msra.mxu0 %v6301
      %6381 = vmatprep.subr.bf16.mxu0 0
      %6382 = vmatpush2.bf16.msra.mxu0 %v6316
      %6383 = vmatprep.subr.bf16.mxu0 0
      %6384 = vmatpush2.bf16.msra.mxu0 %v6315
      %6385 = vmatprep.subr.bf16.mxu0 0
      %6386 = vmatpush2.bf16.msra.mxu0 %v6314
      %6387 = vmatprep.subr.bf16.mxu0 0
      %6388 = vmatpush2.bf16.msra.mxu0 %v6313
      %6389 = vmatprep.subr.bf16.mxu0 0
      %6390 = vmatpush2.bf16.msra.mxu0 %v6312
      %6391 = vmatprep.subr.bf16.mxu0 0
      %6392 = vmatpush2.bf16.msra.mxu0 %v6311
      %6393 = vmatprep.subr.bf16.mxu0 0
      %6394 = vmatpush2.bf16.msra.mxu0 %v6310
      %6395 = vmatprep.subr.bf16.mxu0 0
      %6396 = vmatpush2.bf16.msra.mxu0 %v6309
      %6397 = vmatprep.mubr.bf16.mxu0 %v6099
      %6398 = vmatmul.mubr.bf16.gmra.mxu0 %v6098
      %v6399 = vpop.f32.mrf.mxu0
      %v6400 = vadd.f32 %v6171, %v6399
      %v6401 = vpop.f32.mrf.mxu0
      %v6402 = vpop.f32.mrf.mxu0
      %v6403 = vadd.f32 %v6171, %v6402
      %v6404 = vpop.f32.mrf.mxu0
      %6405 = vdwg.mxu0
      %6406 = vmatprep.subr.bf16.mxu0 0
      %6407 = vmatpush1.bf16.msra.mxu0 %v6324
      %6408 = vmatprep.subr.bf16.mxu0 0
      %6409 = vmatpush1.bf16.msra.mxu0 %v6323
      %6410 = vmatprep.subr.bf16.mxu0 0
      %6411 = vmatpush1.bf16.msra.mxu0 %v6322
      %6412 = vmatprep.subr.bf16.mxu0 0
      %6413 = vmatpush1.bf16.msra.mxu0 %v6321
      %6414 = vmatprep.subr.bf16.mxu0 0
      %6415 = vmatpush1.bf16.msra.mxu0 %v6320
      %6416 = vmatprep.subr.bf16.mxu0 0
      %6417 = vmatpush1.bf16.msra.mxu0 %v6319
      %6418 = vmatprep.subr.bf16.mxu0 0
      %6419 = vmatpush1.bf16.msra.mxu0 %v6318
      %6420 = vmatprep.subr.bf16.mxu0 0
      %6421 = vmatpush1.bf16.msra.mxu0 %v6317
      %6422 = vmatprep.subr.bf16.mxu0 0
      %6423 = vmatpush2.bf16.msra.mxu0 %v6332
      %6424 = vmatprep.subr.bf16.mxu0 0
      %6425 = vmatpush2.bf16.msra.mxu0 %v6331
      %6426 = vmatprep.subr.bf16.mxu0 0
      %6427 = vmatpush2.bf16.msra.mxu0 %v6330
      %6428 = vmatprep.subr.bf16.mxu0 0
      %6429 = vmatpush2.bf16.msra.mxu0 %v6329
      %6430 = vmatprep.subr.bf16.mxu0 0
      %6431 = vmatpush2.bf16.msra.mxu0 %v6328
      %6432 = vmatprep.subr.bf16.mxu0 0
      %6433 = vmatpush2.bf16.msra.mxu0 %v6327
      %6434 = vmatprep.subr.bf16.mxu0 0
      %6435 = vmatpush2.bf16.msra.mxu0 %v6326
      %6436 = vmatprep.subr.bf16.mxu0 0
      %6437 = vmatpush2.bf16.msra.mxu0 %v6325
      %6438 = vmatprep.mubr.bf16.mxu0 %v6101
      %6439 = vmatmul.mubr.bf16.gmra.mxu0 %v6100
      %v6440 = vpop.f32.mrf.mxu0
      %v6441 = vadd.f32 %v6400, %v6440
      %v6442 = vpop.f32.mrf.mxu0
      %v6443 = vpop.f32.mrf.mxu0
      %v6444 = vadd.f32 %v6403, %v6443
      %v6445 = vpop.f32.mrf.mxu0
      %6446 = vdwg.mxu0
      %6447 = vst [vmem:[#allocation15] sm:$0xff] %v6441
      %6448 = vst [vmem:[#allocation15 + $0x8] sm:$0xff] %v6444
    $region65: #{tpu_custom_call.1} parent=1 // pred_fallthru
      _
    // Predicated region
    $region66: #{tpu_custom_call.1} parent=1 // pred_check
      _
    $region67: #{tpu_custom_call.1} parent=1 // pred_check_branch
      %6450 = sbr.rel (0) target = $region69
    $region68: #{tpu_custom_call.1} parent=1 // pred_region
      %s6452 = ssub.s32 256, 256
      %6453 = vsyncadd [#allocation5], %s6452
      %s6454 = sshll.u32 [#allocation15], 4
      %s6455 = int_to_ptr.vmem [resolvable:$true] %s6454
      %6460 = dma.vmem_to_hbm [thread:$0]  %s6455, 256, %s7, [#allocation5], 128, 128, 8
    $region69: #{tpu_custom_call.1} parent=1 // pred_fallthru
      _
    // Predicated region
    $region70: #{tpu_custom_call.1} parent=1 // pred_check
      _
    $region71: #{tpu_custom_call.1} parent=1 // pred_check_branch
      %6462 = sbr.rel (0) target = $region73
    $region72: #{tpu_custom_call.1} parent=1 // pred_region
      %6463 = dma.done [#allocation5], 256
    $region73: #{tpu_custom_call.1} parent=1 // pred_fallthru
      _
    %6464 = vsyncpa [#allocation4], 1
    %6465 = vsyncpa [#allocation7], 1
    %6466 = vsyncpa [#allocation10], 1
    %6467 = vsyncpa [#allocation13], 1
    %6468 = vsyncpa [#allocation5], 1

</llo_original>
